<compile_context>
chip_gen: v7x
topology: tpu7x:2x2x1
jax: 0.10.0
libtpu: 0.0.40
codegen_flags: <defaults>
</compile_context>

<pallas_src>
import functools

import jax
import jax.numpy as jnp
from jax.experimental import pallas as pl
from jax.experimental.pallas import tpu as pltpu

IN_DIM = 100
H1 = 1024
H2 = 512
H3 = 512
OUT_DIM = 121  # == input_size in the reference


def _round_up(x, m):
    return ((x + m - 1) // m) * m


def _decoder_kernel(x_ref,
                    w1_ref, b1_ref,
                    w2_ref, b2_ref,
                    w3_ref, b3_ref,
                    w4_ref, b4_ref,
                    o_ref):
    # Four back-to-back MXU matmuls: bf16 operands, f32 accumulation.
    # Elementwise math (bias, ReLU, sigmoid) stays f32; downcast to bf16 only
    # for the next matmul's operands.
    x = x_ref[...].astype(jnp.bfloat16)  # (block_b, 100)

    h = jnp.dot(x, w1_ref[...], preferred_element_type=jnp.float32) + b1_ref[...]
    h = jnp.maximum(h, 0.0).astype(jnp.bfloat16)

    h = jnp.dot(h, w2_ref[...], preferred_element_type=jnp.float32) + b2_ref[...]
    h = jnp.maximum(h, 0.0).astype(jnp.bfloat16)

    h = jnp.dot(h, w3_ref[...], preferred_element_type=jnp.float32) + b3_ref[...]
    h = jnp.maximum(h, 0.0).astype(jnp.bfloat16)

    h = jnp.dot(h, w4_ref[...], preferred_element_type=jnp.float32) + b4_ref[...]
    o_ref[...] = jax.nn.sigmoid(h).astype(o_ref.dtype)


def prepare_params(params):
    """One-time conversion to kernel layout: bf16 weights, f32 (1, N) biases.

    Do this once outside the jitted forward so the cast is not replayed on
    every call.
    """
    return tuple(
        (w.astype(jnp.bfloat16), b.astype(jnp.float32).reshape(1, -1))
        for (w, b) in params
    )


@functools.partial(jax.jit, static_argnames=("block_b",))
def decoder_forward(x, kernel_params, block_b=512):
    """x: (B, 100) float32 -> (B, 121) float32 (sigmoid outputs).

    `kernel_params` must come from `prepare_params` (bf16 weights).
    """
    (w1, b1), (w2, b2), (w3, b3), (w4, b4) = kernel_params
    B = x.shape[0]

    # Batch tile: multiple of 16 (bf16 sublane packing). Clamp to ~half the
    # batch so large B keeps >= 2 grid steps (v7x megacore) while small B
    # collapses to a single-step grid.
    half = -(-B // 2)
    block_b = min(block_b, _round_up(half, 16))
    assert block_b % 16 == 0, "block_b must be a multiple of 16"
    Bp = _round_up(B, block_b)

    x = x.astype(jnp.float32)
    if Bp != B:
        # Only pad rows when B doesn't divide the tile (padded rows sliced off
        # below). No column padding / dtype conversion happens here.
        x = jnp.pad(x, ((0, Bp - B), (0, 0)))

    # Constant-index specs: weights/biases stay VMEM-resident across the batch
    # grid (index_map never changes -> DMA'd only once).
    full = lambda shape: pl.BlockSpec(shape, lambda i: (0, 0))

    out = pl.pallas_call(
        _decoder_kernel,
        out_shape=jax.ShapeDtypeStruct((Bp, OUT_DIM), jnp.float32),
        grid_spec=pltpu.PrefetchScalarGridSpec(
            num_scalar_prefetch=0,
            grid=(Bp // block_b,),
            in_specs=[
                pl.BlockSpec((block_b, IN_DIM), lambda i: (i, 0)),  # x tile
                full((IN_DIM, H1)),  full((1, H1)),
                full((H1, H2)),      full((1, H2)),
                full((H2, H3)),      full((1, H3)),
                full((H3, OUT_DIM)), full((1, OUT_DIM)),
            ],
            out_specs=pl.BlockSpec((block_b, OUT_DIM), lambda i: (i, 0)),
        ),
        compiler_params=pltpu.CompilerParams(
            dimension_semantics=("parallel",),
            vmem_limit_bytes=32 * 1024 * 1024,
        ),
    )(x, w1, b1, w2, b2, w3, b3, w4, b4)

    if Bp != B:
        out = out[:B]
    return out


def init_params(key):
    """Deterministic init mimicking PyTorch Linear default (U(-1/sqrt(fan_in), +))."""
    dims = [(IN_DIM, H1), (H1, H2), (H2, H3), (H3, OUT_DIM)]
    params = []
    for (fan_in, fan_out) in dims:
        key, kw, kb = jax.random.split(key, 3)
        bound = 1.0 / jnp.sqrt(fan_in)
        w = jax.random.uniform(kw, (fan_in, fan_out), jnp.float32, -bound, bound)
        b = jax.random.uniform(kb, (1, fan_out), jnp.float32, -bound, bound)
        params.append((w, b))
    return params


def reference_forward_f32(x, params):
    h = x
    for i, (w, b) in enumerate(params):
        h = h @ w + b
        if i < len(params) - 1:
            h = jnp.maximum(h, 0.0)
    return jax.nn.sigmoid(h)


def reference_forward_bf16(x, params):
    """Emulates the kernel's numerics: bf16 matmul operands, f32 accumulation."""
    h = x
    for i, (w, b) in enumerate(params):
        h = jnp.dot(h.astype(jnp.bfloat16), w.astype(jnp.bfloat16),
                    preferred_element_type=jnp.float32) + b
        if i < len(params) - 1:
            h = jnp.maximum(h, 0.0)
    return jax.nn.sigmoid(h)


if __name__ == "__main__":
    key = jax.random.PRNGKey(0)
    key, kx = jax.random.split(key)
    params = init_params(key)
    kparams = prepare_params(params)  # one-time bf16 conversion, outside jit

    # Small batch: single-iteration grid path.
    B = 8
    x = jax.random.normal(kx, (B, IN_DIM), jnp.float32)
    out = jax.block_until_ready(decoder_forward(x, kparams))
    assert out.shape == (B, OUT_DIM), out.shape

    ref_bf16 = reference_forward_bf16(x, params)
    ref_f32 = reference_forward_f32(x, params)
    err_bf16 = float(jnp.max(jnp.abs(out - ref_bf16)))
    err_f32 = float(jnp.max(jnp.abs(out - ref_f32)))
    assert err_bf16 < 2e-3, err_bf16          # matches kernel numerics
    assert err_f32 < 3e-2, err_f32            # close to the f32 reference

    # Non-multiple batch: exercises row padding + multi-step grid path.
    B2 = 100
    x2 = jax.random.normal(jax.random.PRNGKey(1), (B2, IN_DIM), jnp.float32)
    out2 = jax.block_until_ready(decoder_forward(x2, kparams, block_b=64))
    assert out2.shape == (B2, OUT_DIM), out2.shape
    err2 = float(jnp.max(jnp.abs(out2 - reference_forward_bf16(x2, params))))
    assert err2 < 2e-3, err2

    print("KERNEL_OK")
</pallas_src>

<mosaic_0001>
module attributes {stable_mosaic.version = 11 : i64} {
  func.func @_decoder_kernel(%arg0: i32, %arg1: memref<16x100xf32, #tpu.memory_space<vmem>>, %arg2: memref<100x1024xbf16, #tpu.memory_space<vmem>>, %arg3: memref<1x1024xf32, #tpu.memory_space<vmem>>, %arg4: memref<1024x512xbf16, #tpu.memory_space<vmem>>, %arg5: memref<1x512xf32, #tpu.memory_space<vmem>>, %arg6: memref<512x512xbf16, #tpu.memory_space<vmem>>, %arg7: memref<1x512xf32, #tpu.memory_space<vmem>>, %arg8: memref<512x121xbf16, #tpu.memory_space<vmem>>, %arg9: memref<1x121xf32, #tpu.memory_space<vmem>>, %arg10: memref<16x121xf32, #tpu.memory_space<vmem>>) attributes {dimension_semantics = [#tpu.dimension_semantics<parallel>], iteration_bounds = array<i64: 1>, scalar_prefetch = 0 : i64, scratch_operands = 0 : i64, tpu.core_type = #tpu.core_type<tc>, window_params = [{transform_indices = @transform_0, window_bounds = array<i64: 16, 100>}, {pipeline_mode = #tpu.pipeline_mode<synchronous>, transform_indices = @transform_1, window_bounds = array<i64: 100, 1024>}, {pipeline_mode = #tpu.pipeline_mode<synchronous>, transform_indices = @transform_2, window_bounds = array<i64: 1, 1024>}, {pipeline_mode = #tpu.pipeline_mode<synchronous>, transform_indices = @transform_3, window_bounds = array<i64: 1024, 512>}, {pipeline_mode = #tpu.pipeline_mode<synchronous>, transform_indices = @transform_4, window_bounds = array<i64: 1, 512>}, {pipeline_mode = #tpu.pipeline_mode<synchronous>, transform_indices = @transform_5, window_bounds = array<i64: 512, 512>}, {pipeline_mode = #tpu.pipeline_mode<synchronous>, transform_indices = @transform_6, window_bounds = array<i64: 1, 512>}, {pipeline_mode = #tpu.pipeline_mode<synchronous>, transform_indices = @transform_7, window_bounds = array<i64: 512, 121>}, {pipeline_mode = #tpu.pipeline_mode<synchronous>, transform_indices = @transform_8, window_bounds = array<i64: 1, 121>}, {transform_indices = @transform_9, window_bounds = array<i64: 16, 121>}]} {
    %c0 = arith.constant 0 : index
    %c0_0 = arith.constant 0 : index
    %0 = vector.load %arg1[%c0, %c0_0] : memref<16x100xf32, #tpu.memory_space<vmem>>, vector<16x100xf32>
    %1 = arith.truncf %0 : vector<16x100xf32> to vector<16x100xbf16>
    %c0_1 = arith.constant 0 : index
    %c0_2 = arith.constant 0 : index
    %2 = vector.load %arg2[%c0_1, %c0_2] : memref<100x1024xbf16, #tpu.memory_space<vmem>>, vector<100x1024xbf16>
    %cst = arith.constant dense<0.000000e+00> : vector<16x1024xf32>
    %3 = tpu.matmul %1, %2, %cst {dimension_numbers = #tpu.dot_dimension_numbers<[1], [0], [0], [1], [0, 0, 1, 1], [], []>} : vector<16x100xbf16>, vector<100x1024xbf16>, vector<16x1024xf32> -> vector<16x1024xf32>
    %c0_3 = arith.constant 0 : index
    %c0_4 = arith.constant 0 : index
    %4 = vector.load %arg3[%c0_3, %c0_4] : memref<1x1024xf32, #tpu.memory_space<vmem>>, vector<1x1024xf32>
    %5 = vector.broadcast %4 : vector<1x1024xf32> to vector<16x1024xf32>
    %6 = arith.addf %3, %5 : vector<16x1024xf32>
    %cst_5 = arith.constant 0.000000e+00 : f32
    %7 = vector.broadcast %cst_5 : f32 to vector<16x1024xf32>
    %8 = arith.maximumf %6, %7 : vector<16x1024xf32>
    %9 = arith.truncf %8 : vector<16x1024xf32> to vector<16x1024xbf16>
    %c0_6 = arith.constant 0 : index
    %c0_7 = arith.constant 0 : index
    %10 = vector.load %arg4[%c0_6, %c0_7] : memref<1024x512xbf16, #tpu.memory_space<vmem>>, vector<1024x512xbf16>
    %cst_8 = arith.constant dense<0.000000e+00> : vector<16x512xf32>
    %11 = tpu.matmul %9, %10, %cst_8 {dimension_numbers = #tpu.dot_dimension_numbers<[1], [0], [0], [1], [0, 0, 1, 1], [], []>} : vector<16x1024xbf16>, vector<1024x512xbf16>, vector<16x512xf32> -> vector<16x512xf32>
    %c0_9 = arith.constant 0 : index
    %c0_10 = arith.constant 0 : index
    %12 = vector.load %arg5[%c0_9, %c0_10] : memref<1x512xf32, #tpu.memory_space<vmem>>, vector<1x512xf32>
    %13 = vector.broadcast %12 : vector<1x512xf32> to vector<16x512xf32>
    %14 = arith.addf %11, %13 : vector<16x512xf32>
    %cst_11 = arith.constant 0.000000e+00 : f32
    %15 = vector.broadcast %cst_11 : f32 to vector<16x512xf32>
    %16 = arith.maximumf %14, %15 : vector<16x512xf32>
    %17 = arith.truncf %16 : vector<16x512xf32> to vector<16x512xbf16>
    %c0_12 = arith.constant 0 : index
    %c0_13 = arith.constant 0 : index
    %18 = vector.load %arg6[%c0_12, %c0_13] : memref<512x512xbf16, #tpu.memory_space<vmem>>, vector<512x512xbf16>
    %cst_14 = arith.constant dense<0.000000e+00> : vector<16x512xf32>
    %19 = tpu.matmul %17, %18, %cst_14 {dimension_numbers = #tpu.dot_dimension_numbers<[1], [0], [0], [1], [0, 0, 1, 1], [], []>} : vector<16x512xbf16>, vector<512x512xbf16>, vector<16x512xf32> -> vector<16x512xf32>
    %c0_15 = arith.constant 0 : index
    %c0_16 = arith.constant 0 : index
    %20 = vector.load %arg7[%c0_15, %c0_16] : memref<1x512xf32, #tpu.memory_space<vmem>>, vector<1x512xf32>
    %21 = vector.broadcast %20 : vector<1x512xf32> to vector<16x512xf32>
    %22 = arith.addf %19, %21 : vector<16x512xf32>
    %cst_17 = arith.constant 0.000000e+00 : f32
    %23 = vector.broadcast %cst_17 : f32 to vector<16x512xf32>
    %24 = arith.maximumf %22, %23 : vector<16x512xf32>
    %25 = arith.truncf %24 : vector<16x512xf32> to vector<16x512xbf16>
    %c0_18 = arith.constant 0 : index
    %c0_19 = arith.constant 0 : index
    %26 = vector.load %arg8[%c0_18, %c0_19] : memref<512x121xbf16, #tpu.memory_space<vmem>>, vector<512x121xbf16>
    %cst_20 = arith.constant dense<0.000000e+00> : vector<16x121xf32>
    %27 = tpu.matmul %25, %26, %cst_20 {dimension_numbers = #tpu.dot_dimension_numbers<[1], [0], [0], [1], [0, 0, 1, 1], [], []>} : vector<16x512xbf16>, vector<512x121xbf16>, vector<16x121xf32> -> vector<16x121xf32>
    %c0_21 = arith.constant 0 : index
    %c0_22 = arith.constant 0 : index
    %28 = vector.load %arg9[%c0_21, %c0_22] : memref<1x121xf32, #tpu.memory_space<vmem>>, vector<1x121xf32>
    %29 = vector.broadcast %28 : vector<1x121xf32> to vector<16x121xf32>
    %30 = arith.addf %27, %29 : vector<16x121xf32>
    %31 = arith.negf %30 : vector<16x121xf32>
    %32 = math.exp %31 : vector<16x121xf32>
    %cst_23 = arith.constant 1.000000e+00 : f32
    %33 = vector.broadcast %cst_23 : f32 to vector<16x121xf32>
    %34 = arith.addf %33, %32 : vector<16x121xf32>
    %35 = arith.divf %33, %34 : vector<16x121xf32>
    %c0_24 = arith.constant 0 : index
    %c0_25 = arith.constant 0 : index
    %36 = vector.load %arg10[%c0_24, %c0_25] : memref<16x121xf32, #tpu.memory_space<vmem>>, vector<16x121xf32>
    tpu.vector_store %arg10[%c0_24, %c0_25], %35 {strides = array<i32>} : memref<16x121xf32, #tpu.memory_space<vmem>>, vector<16x121xf32>,
    return
  }
  func.func @transform_0(%arg0: i32) -> (i32, i32) {
    %c0_i32 = arith.constant 0 : i32
    %c0_i32_0 = arith.constant 0 : i32
    return %arg0, %c0_i32 : i32, i32
  }
  func.func @transform_1(%arg0: i32) -> (i32, i32) {
    %c0_i32 = arith.constant 0 : i32
    %c0_i32_0 = arith.constant 0 : i32
    %c0_i32_1 = arith.constant 0 : i32
    return %c0_i32, %c0_i32_0 : i32, i32
  }
  func.func @transform_2(%arg0: i32) -> (i32, i32) {
    %c0_i32 = arith.constant 0 : i32
    %c0_i32_0 = arith.constant 0 : i32
    %c0_i32_1 = arith.constant 0 : i32
    return %c0_i32, %c0_i32_0 : i32, i32
  }
  func.func @transform_3(%arg0: i32) -> (i32, i32) {
    %c0_i32 = arith.constant 0 : i32
    %c0_i32_0 = arith.constant 0 : i32
    %c0_i32_1 = arith.constant 0 : i32
    return %c0_i32, %c0_i32_0 : i32, i32
  }
  func.func @transform_4(%arg0: i32) -> (i32, i32) {
    %c0_i32 = arith.constant 0 : i32
    %c0_i32_0 = arith.constant 0 : i32
    %c0_i32_1 = arith.constant 0 : i32
    return %c0_i32, %c0_i32_0 : i32, i32
  }
  func.func @transform_5(%arg0: i32) -> (i32, i32) {
    %c0_i32 = arith.constant 0 : i32
    %c0_i32_0 = arith.constant 0 : i32
    %c0_i32_1 = arith.constant 0 : i32
    return %c0_i32, %c0_i32_0 : i32, i32
  }
  func.func @transform_6(%arg0: i32) -> (i32, i32) {
    %c0_i32 = arith.constant 0 : i32
    %c0_i32_0 = arith.constant 0 : i32
    %c0_i32_1 = arith.constant 0 : i32
    return %c0_i32, %c0_i32_0 : i32, i32
  }
  func.func @transform_7(%arg0: i32) -> (i32, i32) {
    %c0_i32 = arith.constant 0 : i32
    %c0_i32_0 = arith.constant 0 : i32
    %c0_i32_1 = arith.constant 0 : i32
    return %c0_i32, %c0_i32_0 : i32, i32
  }
  func.func @transform_8(%arg0: i32) -> (i32, i32) {
    %c0_i32 = arith.constant 0 : i32
    %c0_i32_0 = arith.constant 0 : i32
    %c0_i32_1 = arith.constant 0 : i32
    return %c0_i32, %c0_i32_0 : i32, i32
  }
  func.func @transform_9(%arg0: i32) -> (i32, i32) {
    %c0_i32 = arith.constant 0 : i32
    %c0_i32_0 = arith.constant 0 : i32
    return %arg0, %c0_i32 : i32, i32
  }
}

</mosaic_0001>

<llo_original>
// kernel: decoder_forward.1
$region0: #{decoder_forward.1}
  #allocation0 [shape = 'u32[]', space=smem, size = 0x4, offset = 0x4, fixed_abs, tag = 'smem constant byte address 0x4 - core index']
  #allocation1 [shape = 'u32[144,128]{1,0:T(1,128)}', space=vmem, size = 0x12000, scoped, tag = 'internal scratch']
  %s0 = inlined_call_operand.vmem [shape: f32[16,100], index: 0, kind: input, shape index: {}]
  %s1 = inlined_call_operand.hbm [shape: bf16[100,1024], index: 1, kind: input, shape index: {}]
  %s2 = inlined_call_operand.vmem [shape: f32[1,1024], index: 2, kind: input, shape index: {}]
  %s3 = inlined_call_operand.hbm [shape: bf16[1024,512], index: 3, kind: input, shape index: {}]
  %s4 = inlined_call_operand.vmem [shape: f32[1,512], index: 4, kind: input, shape index: {}]
  %s5 = inlined_call_operand.hbm [shape: bf16[512,512], index: 5, kind: input, shape index: {}]
  %s6 = inlined_call_operand.vmem [shape: f32[1,512], index: 6, kind: input, shape index: {}]
  %s7 = inlined_call_operand.hbm [shape: bf16[512,121], index: 7, kind: input, shape index: {}]
  %s8 = inlined_call_operand.vmem [shape: f32[1,121], index: 8, kind: input, shape index: {}]
  %s9 = inlined_call_operand.vmem [shape: f32[16,121], index: 9, kind: output, shape index: {}]
  %s10 = sld [smem:[#allocation0]]
  $region62: #{decoder_forward.1} parent=0
    _
  %s12 = ssub.s32 1, %s10
  %s13 = scalar_select 0, %s12, %s10
  $region1: #{decoder_forward.1} parent=0
    #allocation2 [shape = 'u8[212992]{0}', space=vmem, size = 0x34000, scoped, tag = 'input window, operand 1, single buffered']
    #allocation3 [shape = 's32[1]{0}', space=sflag, size = 0x4, scoped, tag = 'scoped memory for decoder_forward.1']
    #allocation4 [shape = 'u8[1048576]{0}', space=vmem, size = 0x100000, scoped, tag = 'input window, operand 3, single buffered']
    #allocation5 [shape = 's32[1]{0}', space=sflag, size = 0x4, scoped, tag = 'scoped memory for decoder_forward.1']
    #allocation6 [shape = 'u8[524288]{0}', space=vmem, size = 0x80000, scoped, tag = 'input window, operand 5, single buffered']
    #allocation7 [shape = 'u8[131072]{0}', space=vmem, size = 0x20000, scoped, tag = 'input window, operand 7, single buffered']
    #allocation8 [shape = 's32[1]{0}', space=sflag, size = 0x4, scoped, tag = 'scoped memory for decoder_forward.1']
    %14 = vsyncpa [#allocation3], 0
    %15 = vsyncpa [#allocation5], 0
    %16 = vsyncpa [#allocation8], 0
    // Predicated region
    $region2: #{decoder_forward.1} parent=1 // pred_check
      _
    $region3: #{decoder_forward.1} parent=1 // pred_check_branch
      %18 = sbr.rel (0) target = $region5
    $region4: #{decoder_forward.1} parent=1 // pred_region
      _
    $region5: #{decoder_forward.1} parent=1 // pred_fallthru
      _
    // Predicated region
    $region6: #{decoder_forward.1} parent=1 // pred_check
      _
    $region7: #{decoder_forward.1} parent=1 // pred_check_branch
      %20 = sbr.rel (0) target = $region9
    $region8: #{decoder_forward.1} parent=1 // pred_region
      %s22 = ssub.s32 6656, 6656
      %23 = vsyncadd [#allocation3], %s22
      %s24 = sshll.u32 [#allocation2], 4
      %s25 = int_to_ptr.vmem [resolvable:$true] %s24
      %30 = dma.hbm_to_vmem [thread:$0]  %s1, 6656, %s25, [#allocation3], 512, 512, 32
    $region9: #{decoder_forward.1} parent=1 // pred_fallthru
      _
    // Predicated region
    $region10: #{decoder_forward.1} parent=1 // pred_check
      _
    $region11: #{decoder_forward.1} parent=1 // pred_check_branch
      %32 = sbr.rel (0) target = $region13
    $region12: #{decoder_forward.1} parent=1 // pred_region
      _
    $region13: #{decoder_forward.1} parent=1 // pred_fallthru
      _
    // Predicated region
    $region14: #{decoder_forward.1} parent=1 // pred_check
      _
    $region15: #{decoder_forward.1} parent=1 // pred_check_branch
      %34 = sbr.rel (0) target = $region17
    $region16: #{decoder_forward.1} parent=1 // pred_region
      %s36 = ssub.s32 32768, 32768
      %37 = vsyncadd [#allocation5], %s36
      %s38 = sshll.u32 [#allocation4], 4
      %s39 = int_to_ptr.vmem [resolvable:$true] %s38
      %44 = dma.hbm_to_vmem [thread:$0]  %s3, 32768, %s39, [#allocation5], 256, 256, 16
    $region17: #{decoder_forward.1} parent=1 // pred_fallthru
      _
    // Predicated region
    $region18: #{decoder_forward.1} parent=1 // pred_check
      _
    $region19: #{decoder_forward.1} parent=1 // pred_check_branch
      %46 = sbr.rel (0) target = $region21
    $region20: #{decoder_forward.1} parent=1 // pred_region
      _
    $region21: #{decoder_forward.1} parent=1 // pred_fallthru
      _
    // Predicated region
    $region22: #{decoder_forward.1} parent=1 // pred_check
      _
    $region23: #{decoder_forward.1} parent=1 // pred_check_branch
      %48 = sbr.rel (0) target = $region25
    $region24: #{decoder_forward.1} parent=1 // pred_region
      %s50 = ssub.s32 16384, 16384
      %51 = vsyncadd [#allocation5], %s50
      %s52 = sshll.u32 [#allocation6], 4
      %s53 = int_to_ptr.vmem [resolvable:$true] %s52
      %58 = dma.hbm_to_vmem [thread:$0]  %s5, 16384, %s53, [#allocation5], 256, 256, 16
    $region25: #{decoder_forward.1} parent=1 // pred_fallthru
      _
    // Predicated region
    $region26: #{decoder_forward.1} parent=1 // pred_check
      _
    $region27: #{decoder_forward.1} parent=1 // pred_check_branch
      %60 = sbr.rel (0) target = $region29
    $region28: #{decoder_forward.1} parent=1 // pred_region
      _
    $region29: #{decoder_forward.1} parent=1 // pred_fallthru
      _
    // Predicated region
    $region30: #{decoder_forward.1} parent=1 // pred_check
      _
    $region31: #{decoder_forward.1} parent=1 // pred_check_branch
      %62 = sbr.rel (0) target = $region33
    $region32: #{decoder_forward.1} parent=1 // pred_region
      %s64 = ssub.s32 4096, 4096
      %65 = vsyncadd [#allocation8], %s64
      %s66 = sshll.u32 [#allocation7], 4
      %s67 = int_to_ptr.vmem [resolvable:$true] %s66
      %72 = dma.hbm_to_vmem [thread:$0]  %s7, 4096, %s67, [#allocation8], 64, 64, 4
    $region33: #{decoder_forward.1} parent=1 // pred_fallthru
      _
    // Predicated region
    $region34: #{decoder_forward.1} parent=1 // pred_check
      _
    $region35: #{decoder_forward.1} parent=1 // pred_check_branch
      %74 = sbr.rel (0) target = $region37
    $region36: #{decoder_forward.1} parent=1 // pred_region
      _
    $region37: #{decoder_forward.1} parent=1 // pred_fallthru
      _
    // Predicated region
    $region38: #{decoder_forward.1} parent=1 // pred_check
      _
    $region39: #{decoder_forward.1} parent=1 // pred_check_branch
      %76 = sbr.rel (0) target = $region41
    $region40: #{decoder_forward.1} parent=1 // pred_region
      %77 = dma.done [#allocation3], 6656
    $region41: #{decoder_forward.1} parent=1 // pred_fallthru
      _
    // Predicated region
    $region42: #{decoder_forward.1} parent=1 // pred_check
      _
    $region43: #{decoder_forward.1} parent=1 // pred_check_branch
      %79 = sbr.rel (0) target = $region45
    $region44: #{decoder_forward.1} parent=1 // pred_region
      %80 = dma.done [#allocation5], 32768
    $region45: #{decoder_forward.1} parent=1 // pred_fallthru
      _
    // Predicated region
    $region46: #{decoder_forward.1} parent=1 // pred_check
      _
    $region47: #{decoder_forward.1} parent=1 // pred_check_branch
      %82 = sbr.rel (0) target = $region49
    $region48: #{decoder_forward.1} parent=1 // pred_region
      %83 = dma.done [#allocation5], 16384
    $region49: #{decoder_forward.1} parent=1 // pred_fallthru
      _
    // Predicated region
    $region50: #{decoder_forward.1} parent=1 // pred_check
      _
    $region51: #{decoder_forward.1} parent=1 // pred_check_branch
      %85 = sbr.rel (0) target = $region53
    $region52: #{decoder_forward.1} parent=1 // pred_region
      %86 = dma.done [#allocation8], 4096
    $region53: #{decoder_forward.1} parent=1 // pred_fallthru
      _
    %v88 = vld [vmem:[%s0] sm:$0xff]
    %v89 = vld [vmem:[%s0 + $0x8] sm:$0xff]
    %v90 = vpack.c.bf16 %v89, %v88
    %v91 = vld [vmem:[#allocation2] sm:$0xff]
    %v92 = vld [vmem:[#allocation2 + $0x8] sm:$0xff]
    %v93 = vld [vmem:[#allocation2 + $0x10] sm:$0xff]
    %v94 = vld [vmem:[#allocation2 + $0x18] sm:$0xff]
    %v95 = vld [vmem:[#allocation2 + $0x20] sm:$0xff]
    %v96 = vld [vmem:[#allocation2 + $0x28] sm:$0xff]
    %v97 = vld [vmem:[#allocation2 + $0x30] sm:$0xff]
    %v98 = vld [vmem:[#allocation2 + $0x38] sm:$0xff]
    %v99 = vld [vmem:[#allocation2 + $0x40] sm:$0xff]
    %v100 = vld [vmem:[#allocation2 + $0x48] sm:$0xff]
    %v101 = vld [vmem:[#allocation2 + $0x50] sm:$0xff]
    %v102 = vld [vmem:[#allocation2 + $0x58] sm:$0xff]
    %v103 = vld [vmem:[#allocation2 + $0x60] sm:$0xff]
    %v104 = vld [vmem:[#allocation2 + $0x68] sm:$0xff]
    %v105 = vld [vmem:[#allocation2 + $0x70] sm:$0xff]
    %v106 = vld [vmem:[#allocation2 + $0x78] sm:$0xff]
    %v107 = vld [vmem:[#allocation2 + $0x80] sm:$0xff]
    %v108 = vld [vmem:[#allocation2 + $0x88] sm:$0xff]
    %v109 = vld [vmem:[#allocation2 + $0x90] sm:$0xff]
    %v110 = vld [vmem:[#allocation2 + $0x98] sm:$0xff]
    %v111 = vld [vmem:[#allocation2 + $0xa0] sm:$0xff]
    %v112 = vld [vmem:[#allocation2 + $0xa8] sm:$0xff]
    %v113 = vld [vmem:[#allocation2 + $0xb0] sm:$0xff]
    %v114 = vld [vmem:[#allocation2 + $0xb8] sm:$0xff]
    %v115 = vld [vmem:[#allocation2 + $0xc0] sm:$0xff]
    %v116 = vld [vmem:[#allocation2 + $0xc8] sm:$0xff]
    %v117 = vld [vmem:[#allocation2 + $0xd0] sm:$0xff]
    %v118 = vld [vmem:[#allocation2 + $0xd8] sm:$0xff]
    %v119 = vld [vmem:[#allocation2 + $0xe0] sm:$0xff]
    %v120 = vld [vmem:[#allocation2 + $0xe8] sm:$0xff]
    %v121 = vld [vmem:[#allocation2 + $0xf0] sm:$0xff]
    %v122 = vld [vmem:[#allocation2 + $0xf8] sm:$0xff]
    %v123 = vld [vmem:[#allocation2 + $0x100] sm:$0xff]
    %v124 = vld [vmem:[#allocation2 + $0x108] sm:$0xff]
    %v125 = vld [vmem:[#allocation2 + $0x110] sm:$0xff]
    %v126 = vld [vmem:[#allocation2 + $0x118] sm:$0xff]
    %v127 = vld [vmem:[#allocation2 + $0x120] sm:$0xff]
    %v128 = vld [vmem:[#allocation2 + $0x128] sm:$0xff]
    %v129 = vld [vmem:[#allocation2 + $0x130] sm:$0xff]
    %v130 = vld [vmem:[#allocation2 + $0x138] sm:$0xff]
    %v131 = vld [vmem:[#allocation2 + $0x140] sm:$0xff]
    %v132 = vld [vmem:[#allocation2 + $0x148] sm:$0xff]
    %v133 = vld [vmem:[#allocation2 + $0x150] sm:$0xff]
    %v134 = vld [vmem:[#allocation2 + $0x158] sm:$0xff]
    %v135 = vld [vmem:[#allocation2 + $0x160] sm:$0xff]
    %v136 = vld [vmem:[#allocation2 + $0x168] sm:$0xff]
    %v137 = vld [vmem:[#allocation2 + $0x170] sm:$0xff]
    %v138 = vld [vmem:[#allocation2 + $0x178] sm:$0xff]
    %v139 = vld [vmem:[#allocation2 + $0x180] sm:$0x33]
    %v140 = vld [vmem:[#allocation2 + $0x188] sm:$0x33]
    %v141 = vld [vmem:[#allocation2 + $0x190] sm:$0x33]
    %v142 = vld [vmem:[#allocation2 + $0x198] sm:$0x33]
    %v143 = vld [vmem:[%s2] sm:$0xff]
    %v145 = vlaneseq
    %v146 = vshrl.u32 %v145, 7
    %v147 = vsub.s32 0, %v146
    %v148 = vrot.slane %v143, %v147
    %v149 = vlaneseq
    %v150 = vshrl.u32 %v149, 7
    %v151 = vsub.s32 1, %v150
    %v152 = vrot.slane %v143, %v151
    %v153 = vlaneseq
    %v154 = vshrl.u32 %v153, 7
    %v155 = vsub.s32 2, %v154
    %v156 = vrot.slane %v143, %v155
    %v157 = vlaneseq
    %v158 = vshrl.u32 %v157, 7
    %v159 = vsub.s32 3, %v158
    %v160 = vrot.slane %v143, %v159
    %v161 = vlaneseq
    %v162 = vshrl.u32 %v161, 7
    %v163 = vsub.s32 4, %v162
    %v164 = vrot.slane %v143, %v163
    %v165 = vlaneseq
    %v166 = vshrl.u32 %v165, 7
    %v167 = vsub.s32 5, %v166
    %v168 = vrot.slane %v143, %v167
    %v169 = vlaneseq
    %v170 = vshrl.u32 %v169, 7
    %v171 = vsub.s32 6, %v170
    %v172 = vrot.slane %v143, %v171
    %v173 = vlaneseq
    %v174 = vshrl.u32 %v173, 7
    %v175 = vsub.s32 7, %v174
    %v176 = vrot.slane %v143, %v175
    %v237 = vunpack.c.l.b16 %v91
    %v238 = vunpack.c.h.b16 %v91
    %v239 = vunpack.c.l.b16 %v92
    %v240 = vunpack.c.h.b16 %v92
    %v241 = vunpack.c.l.b16 %v93
    %v242 = vunpack.c.h.b16 %v93
    %v243 = vunpack.c.l.b16 %v94
    %v244 = vunpack.c.h.b16 %v94
    %v245 = vunpack.c.l.b16 %v95
    %v246 = vunpack.c.h.b16 %v95
    %v247 = vunpack.c.l.b16 %v96
    %v248 = vunpack.c.h.b16 %v96
    %v249 = vunpack.c.l.b16 %v97
    %v250 = vunpack.c.h.b16 %v97
    %v251 = vunpack.c.l.b16 %v98
    %v252 = vunpack.c.h.b16 %v98
    %v253 = vunpack.c.l.b16 %v99
    %v254 = vunpack.c.h.b16 %v99
    %v255 = vunpack.c.l.b16 %v100
    %v256 = vunpack.c.h.b16 %v100
    %v257 = vunpack.c.l.b16 %v101
    %v258 = vunpack.c.h.b16 %v101
    %v259 = vunpack.c.l.b16 %v102
    %v260 = vunpack.c.h.b16 %v102
    %v261 = vunpack.c.l.b16 %v103
    %v262 = vunpack.c.h.b16 %v103
    %v263 = vunpack.c.l.b16 %v104
    %v264 = vunpack.c.h.b16 %v104
    %v265 = vunpack.c.l.b16 %v105
    %v266 = vunpack.c.h.b16 %v105
    %v267 = vunpack.c.l.b16 %v106
    %v268 = vunpack.c.h.b16 %v106
    %v269 = vunpack.c.l.b16 %v107
    %v270 = vunpack.c.h.b16 %v107
    %v271 = vunpack.c.l.b16 %v108
    %v272 = vunpack.c.h.b16 %v108
    %v273 = vunpack.c.l.b16 %v109
    %v274 = vunpack.c.h.b16 %v109
    %v275 = vunpack.c.l.b16 %v110
    %v276 = vunpack.c.h.b16 %v110
    %v277 = vunpack.c.l.b16 %v111
    %v278 = vunpack.c.h.b16 %v111
    %v279 = vunpack.c.l.b16 %v112
    %v280 = vunpack.c.h.b16 %v112
    %v281 = vunpack.c.l.b16 %v113
    %v282 = vunpack.c.h.b16 %v113
    %v283 = vunpack.c.l.b16 %v114
    %v284 = vunpack.c.h.b16 %v114
    %v285 = vunpack.c.l.b16 %v115
    %v286 = vunpack.c.h.b16 %v115
    %v287 = vunpack.c.l.b16 %v116
    %v288 = vunpack.c.h.b16 %v116
    %v289 = vunpack.c.l.b16 %v117
    %v290 = vunpack.c.h.b16 %v117
    %v291 = vunpack.c.l.b16 %v118
    %v292 = vunpack.c.h.b16 %v118
    %v293 = vunpack.c.l.b16 %v119
    %v294 = vunpack.c.h.b16 %v119
    %v295 = vunpack.c.l.b16 %v120
    %v296 = vunpack.c.h.b16 %v120
    %v297 = vunpack.c.l.b16 %v121
    %v298 = vunpack.c.h.b16 %v121
    %v299 = vunpack.c.l.b16 %v122
    %v300 = vunpack.c.h.b16 %v122
    %v301 = vunpack.c.l.b16 %v123
    %v302 = vunpack.c.h.b16 %v123
    %v303 = vunpack.c.l.b16 %v124
    %v304 = vunpack.c.h.b16 %v124
    %v305 = vunpack.c.l.b16 %v125
    %v306 = vunpack.c.h.b16 %v125
    %v307 = vunpack.c.l.b16 %v126
    %v308 = vunpack.c.h.b16 %v126
    %v309 = vunpack.c.l.b16 %v127
    %v310 = vunpack.c.h.b16 %v127
    %v311 = vunpack.c.l.b16 %v128
    %v312 = vunpack.c.h.b16 %v128
    %v313 = vunpack.c.l.b16 %v129
    %v314 = vunpack.c.h.b16 %v129
    %v315 = vunpack.c.l.b16 %v130
    %v316 = vunpack.c.h.b16 %v130
    %v317 = vunpack.c.l.b16 %v131
    %v318 = vunpack.c.h.b16 %v131
    %v319 = vunpack.c.l.b16 %v132
    %v320 = vunpack.c.h.b16 %v132
    %v321 = vunpack.c.l.b16 %v133
    %v322 = vunpack.c.h.b16 %v133
    %v323 = vunpack.c.l.b16 %v134
    %v324 = vunpack.c.h.b16 %v134
    %v325 = vunpack.c.l.b16 %v135
    %v326 = vunpack.c.h.b16 %v135
    %v327 = vunpack.c.l.b16 %v136
    %v328 = vunpack.c.h.b16 %v136
    %v329 = vunpack.c.l.b16 %v137
    %v330 = vunpack.c.h.b16 %v137
    %v331 = vunpack.c.l.b16 %v138
    %v332 = vunpack.c.h.b16 %v138
    %v333 = vunpack.c.l.b16 %v139
    %v334 = vunpack.c.h.b16 %v139
    %v335 = vunpack.c.l.b16 %v140
    %v336 = vunpack.c.h.b16 %v140
    %v337 = vunpack.c.l.b16 %v141
    %v338 = vunpack.c.h.b16 %v141
    %v339 = vunpack.c.l.b16 %v142
    %v340 = vunpack.c.h.b16 %v142
    %v341 = vpack.c.b16 %v245, %v237
    %v342 = vpack.c.b16 %v246, %v238
    %v343 = vpack.c.b16 %v247, %v239
    %v344 = vpack.c.b16 %v248, %v240
    %v345 = vpack.c.b16 %v249, %v241
    %v346 = vpack.c.b16 %v250, %v242
    %v347 = vpack.c.b16 %v251, %v243
    %v348 = vpack.c.b16 %v252, %v244
    %v349 = vpack.c.b16 %v261, %v253
    %v350 = vpack.c.b16 %v262, %v254
    %v351 = vpack.c.b16 %v263, %v255
    %v352 = vpack.c.b16 %v264, %v256
    %v353 = vpack.c.b16 %v265, %v257
    %v354 = vpack.c.b16 %v266, %v258
    %v355 = vpack.c.b16 %v267, %v259
    %v356 = vpack.c.b16 %v268, %v260
    %v357 = vpack.c.b16 %v277, %v269
    %v358 = vpack.c.b16 %v278, %v270
    %v359 = vpack.c.b16 %v279, %v271
    %v360 = vpack.c.b16 %v280, %v272
    %v361 = vpack.c.b16 %v281, %v273
    %v362 = vpack.c.b16 %v282, %v274
    %v363 = vpack.c.b16 %v283, %v275
    %v364 = vpack.c.b16 %v284, %v276
    %v365 = vpack.c.b16 %v293, %v285
    %v366 = vpack.c.b16 %v294, %v286
    %v367 = vpack.c.b16 %v295, %v287
    %v368 = vpack.c.b16 %v296, %v288
    %v369 = vpack.c.b16 %v297, %v289
    %v370 = vpack.c.b16 %v298, %v290
    %v371 = vpack.c.b16 %v299, %v291
    %v372 = vpack.c.b16 %v300, %v292
    %v373 = vpack.c.b16 %v309, %v301
    %v374 = vpack.c.b16 %v310, %v302
    %v375 = vpack.c.b16 %v311, %v303
    %v376 = vpack.c.b16 %v312, %v304
    %v377 = vpack.c.b16 %v313, %v305
    %v378 = vpack.c.b16 %v314, %v306
    %v379 = vpack.c.b16 %v315, %v307
    %v380 = vpack.c.b16 %v316, %v308
    %v381 = vpack.c.b16 %v325, %v317
    %v382 = vpack.c.b16 %v326, %v318
    %v383 = vpack.c.b16 %v327, %v319
    %v384 = vpack.c.b16 %v328, %v320
    %v385 = vpack.c.b16 %v329, %v321
    %v386 = vpack.c.b16 %v330, %v322
    %v387 = vpack.c.b16 %v331, %v323
    %v388 = vpack.c.b16 %v332, %v324
    %v389 = vpack.c.b16 %v333, %v333
    %v390 = vpack.c.b16 %v334, %v334
    %v391 = vpack.c.b16 %v335, %v335
    %v392 = vpack.c.b16 %v336, %v336
    %v393 = vpack.c.b16 %v337, %v337
    %v394 = vpack.c.b16 %v338, %v338
    %v395 = vpack.c.b16 %v339, %v339
    %v396 = vpack.c.b16 %v340, %v340
    %vm445 = vcmask 818176
    %v447 = vsel %vm445, %v90, 0
    %vm449 = vcmask 1041408
    %v451 = vsel %vm449, %v389, 0
    %v454 = vsel %vm449, %v390, 0
    %v457 = vsel %vm449, %v391, 0
    %v460 = vsel %vm449, %v392, 0
    %v463 = vsel %vm449, %v393, 0
    %v466 = vsel %vm449, %v394, 0
    %v469 = vsel %vm449, %v395, 0
    %v472 = vsel %vm449, %v396, 0
    %474 = vmatprep.subr.bf16.mxu0 %v342
    %475 = vmatpush1.bf16.msra.mxu0 %v341
    %476 = vmatprep.subr.bf16.mxu0 %v350
    %477 = vmatpush1.bf16.msra.mxu0 %v349
    %478 = vmatprep.subr.bf16.mxu0 %v358
    %479 = vmatpush1.bf16.msra.mxu0 %v357
    %480 = vmatprep.subr.bf16.mxu0 %v366
    %481 = vmatpush1.bf16.msra.mxu0 %v365
    %482 = vmatprep.subr.bf16.mxu0 %v374
    %483 = vmatpush1.bf16.msra.mxu0 %v373
    %484 = vmatprep.subr.bf16.mxu0 %v382
    %485 = vmatpush1.bf16.msra.mxu0 %v381
    %486 = vmatprep.subr.bf16.mxu0 %v454
    %487 = vmatpush1.bf16.msra.mxu0 %v451
    %488 = vmatprep.subr.bf16.mxu0 0
    %489 = vmatpush1.bf16.msra.mxu0 0
    %490 = vmatprep.subr.bf16.mxu0 0
    %491 = vmatpush1.bf16.msra.mxu0 0
    %492 = vmatprep.subr.bf16.mxu0 0
    %493 = vmatpush1.bf16.msra.mxu0 0
    %494 = vmatprep.subr.bf16.mxu0 0
    %495 = vmatpush1.bf16.msra.mxu0 0
    %496 = vmatprep.subr.bf16.mxu0 0
    %497 = vmatpush1.bf16.msra.mxu0 0
    %498 = vmatprep.subr.bf16.mxu0 0
    %499 = vmatpush1.bf16.msra.mxu0 0
    %500 = vmatprep.subr.bf16.mxu0 0
    %501 = vmatpush1.bf16.msra.mxu0 0
    %502 = vmatprep.subr.bf16.mxu0 0
    %503 = vmatpush1.bf16.msra.mxu0 0
    %504 = vmatprep.subr.bf16.mxu0 0
    %505 = vmatpush1.bf16.msra.mxu0 0
    %506 = vmatprep.mubr.bf16.mxu0 0
    %507 = vmatmul.mubr.bf16.gmra.mrb[0].mxu0 %v447
    %v508 = vpop.f32.mrb[0].mxu0
    %v509 = vadd.f32 %v148, %v508
    %v510 = vpop.f32.mrb[0].mxu0
    %v511 = vadd.f32 %v152, %v510
    %v512 = vpop.f32.mrb[0].mxu0
    %v513 = vadd.f32 %v148, %v512
    %v514 = vpop.f32.mrb[0].mxu0
    %v515 = vadd.f32 %v152, %v514
    %516 = vdwg.mxu0
    %517 = vmatprep.subr.bf16.mxu0 %v344
    %518 = vmatpush1.bf16.msra.mxu0 %v343
    %519 = vmatprep.subr.bf16.mxu0 %v352
    %520 = vmatpush1.bf16.msra.mxu0 %v351
    %521 = vmatprep.subr.bf16.mxu0 %v360
    %522 = vmatpush1.bf16.msra.mxu0 %v359
    %523 = vmatprep.subr.bf16.mxu0 %v368
    %524 = vmatpush1.bf16.msra.mxu0 %v367
    %525 = vmatprep.subr.bf16.mxu0 %v376
    %526 = vmatpush1.bf16.msra.mxu0 %v375
    %527 = vmatprep.subr.bf16.mxu0 %v384
    %528 = vmatpush1.bf16.msra.mxu0 %v383
    %529 = vmatprep.subr.bf16.mxu0 %v460
    %530 = vmatpush1.bf16.msra.mxu0 %v457
    %531 = vmatprep.subr.bf16.mxu0 0
    %532 = vmatpush1.bf16.msra.mxu0 0
    %533 = vmatprep.subr.bf16.mxu0 0
    %534 = vmatpush1.bf16.msra.mxu0 0
    %535 = vmatprep.subr.bf16.mxu0 0
    %536 = vmatpush1.bf16.msra.mxu0 0
    %537 = vmatprep.subr.bf16.mxu0 0
    %538 = vmatpush1.bf16.msra.mxu0 0
    %539 = vmatprep.subr.bf16.mxu0 0
    %540 = vmatpush1.bf16.msra.mxu0 0
    %541 = vmatprep.subr.bf16.mxu0 0
    %542 = vmatpush1.bf16.msra.mxu0 0
    %543 = vmatprep.subr.bf16.mxu0 0
    %544 = vmatpush1.bf16.msra.mxu0 0
    %545 = vmatprep.subr.bf16.mxu0 0
    %546 = vmatpush1.bf16.msra.mxu0 0
    %547 = vmatprep.subr.bf16.mxu0 0
    %548 = vmatpush1.bf16.msra.mxu0 0
    %549 = vmatprep.mubr.bf16.mxu0 0
    %550 = vmatmul.mubr.bf16.gmra.mrb[0].mxu0 %v447
    %v551 = vpop.f32.mrb[0].mxu0
    %v552 = vadd.f32 %v156, %v551
    %v553 = vpop.f32.mrb[0].mxu0
    %v554 = vadd.f32 %v160, %v553
    %v555 = vpop.f32.mrb[0].mxu0
    %v556 = vadd.f32 %v156, %v555
    %v557 = vpop.f32.mrb[0].mxu0
    %v558 = vadd.f32 %v160, %v557
    %559 = vdwg.mxu0
    %560 = vmatprep.subr.bf16.mxu0 %v346
    %561 = vmatpush1.bf16.msra.mxu0 %v345
    %562 = vmatprep.subr.bf16.mxu0 %v354
    %563 = vmatpush1.bf16.msra.mxu0 %v353
    %564 = vmatprep.subr.bf16.mxu0 %v362
    %565 = vmatpush1.bf16.msra.mxu0 %v361
    %566 = vmatprep.subr.bf16.mxu0 %v370
    %567 = vmatpush1.bf16.msra.mxu0 %v369
    %568 = vmatprep.subr.bf16.mxu0 %v378
    %569 = vmatpush1.bf16.msra.mxu0 %v377
    %570 = vmatprep.subr.bf16.mxu0 %v386
    %571 = vmatpush1.bf16.msra.mxu0 %v385
    %572 = vmatprep.subr.bf16.mxu0 %v466
    %573 = vmatpush1.bf16.msra.mxu0 %v463
    %574 = vmatprep.subr.bf16.mxu0 0
    %575 = vmatpush1.bf16.msra.mxu0 0
    %576 = vmatprep.subr.bf16.mxu0 0
    %577 = vmatpush1.bf16.msra.mxu0 0
    %578 = vmatprep.subr.bf16.mxu0 0
    %579 = vmatpush1.bf16.msra.mxu0 0
    %580 = vmatprep.subr.bf16.mxu0 0
    %581 = vmatpush1.bf16.msra.mxu0 0
    %582 = vmatprep.subr.bf16.mxu0 0
    %583 = vmatpush1.bf16.msra.mxu0 0
    %584 = vmatprep.subr.bf16.mxu0 0
    %585 = vmatpush1.bf16.msra.mxu0 0
    %586 = vmatprep.subr.bf16.mxu0 0
    %587 = vmatpush1.bf16.msra.mxu0 0
    %588 = vmatprep.subr.bf16.mxu0 0
    %589 = vmatpush1.bf16.msra.mxu0 0
    %590 = vmatprep.subr.bf16.mxu0 0
    %591 = vmatpush1.bf16.msra.mxu0 0
    %592 = vmatprep.mubr.bf16.mxu0 0
    %593 = vmatmul.mubr.bf16.gmra.mrb[0].mxu0 %v447
    %v594 = vpop.f32.mrb[0].mxu0
    %v595 = vadd.f32 %v164, %v594
    %v596 = vpop.f32.mrb[0].mxu0
    %v597 = vadd.f32 %v168, %v596
    %v598 = vpop.f32.mrb[0].mxu0
    %v599 = vadd.f32 %v164, %v598
    %v600 = vpop.f32.mrb[0].mxu0
    %v601 = vadd.f32 %v168, %v600
    %602 = vdwg.mxu0
    %603 = vmatprep.subr.bf16.mxu0 %v348
    %604 = vmatpush1.bf16.msra.mxu0 %v347
    %605 = vmatprep.subr.bf16.mxu0 %v356
    %606 = vmatpush1.bf16.msra.mxu0 %v355
    %607 = vmatprep.subr.bf16.mxu0 %v364
    %608 = vmatpush1.bf16.msra.mxu0 %v363
    %609 = vmatprep.subr.bf16.mxu0 %v372
    %610 = vmatpush1.bf16.msra.mxu0 %v371
    %611 = vmatprep.subr.bf16.mxu0 %v380
    %612 = vmatpush1.bf16.msra.mxu0 %v379
    %613 = vmatprep.subr.bf16.mxu0 %v388
    %614 = vmatpush1.bf16.msra.mxu0 %v387
    %615 = vmatprep.subr.bf16.mxu0 %v472
    %616 = vmatpush1.bf16.msra.mxu0 %v469
    %617 = vmatprep.subr.bf16.mxu0 0
    %618 = vmatpush1.bf16.msra.mxu0 0
    %619 = vmatprep.subr.bf16.mxu0 0
    %620 = vmatpush1.bf16.msra.mxu0 0
    %621 = vmatprep.subr.bf16.mxu0 0
    %622 = vmatpush1.bf16.msra.mxu0 0
    %623 = vmatprep.subr.bf16.mxu0 0
    %624 = vmatpush1.bf16.msra.mxu0 0
    %625 = vmatprep.subr.bf16.mxu0 0
    %626 = vmatpush1.bf16.msra.mxu0 0
    %627 = vmatprep.subr.bf16.mxu0 0
    %628 = vmatpush1.bf16.msra.mxu0 0
    %629 = vmatprep.subr.bf16.mxu0 0
    %630 = vmatpush1.bf16.msra.mxu0 0
    %631 = vmatprep.subr.bf16.mxu0 0
    %632 = vmatpush1.bf16.msra.mxu0 0
    %633 = vmatprep.subr.bf16.mxu0 0
    %634 = vmatpush1.bf16.msra.mxu0 0
    %635 = vmatprep.mubr.bf16.mxu0 0
    %636 = vmatmul.mubr.bf16.gmra.mrb[0].mxu0 %v447
    %v637 = vpop.f32.mrb[0].mxu0
    %v638 = vadd.f32 %v172, %v637
    %v639 = vpop.f32.mrb[0].mxu0
    %v640 = vadd.f32 %v176, %v639
    %v641 = vpop.f32.mrb[0].mxu0
    %v642 = vadd.f32 %v172, %v641
    %v643 = vpop.f32.mrb[0].mxu0
    %v644 = vadd.f32 %v176, %v643
    %645 = vdwg.mxu0
    %v646 = vmax.f32 %v509, 0.0
    %v647 = vmax.f32 %v511, 0.0
    %v648 = vmax.f32 %v552, 0.0
    %v649 = vmax.f32 %v554, 0.0
    %v650 = vmax.f32 %v595, 0.0
    %v651 = vmax.f32 %v597, 0.0
    %v652 = vmax.f32 %v638, 0.0
    %v653 = vmax.f32 %v640, 0.0
    %v654 = vmax.f32 %v513, 0.0
    %v655 = vmax.f32 %v515, 0.0
    %v656 = vmax.f32 %v556, 0.0
    %v657 = vmax.f32 %v558, 0.0
    %v658 = vmax.f32 %v599, 0.0
    %v659 = vmax.f32 %v601, 0.0
    %v660 = vmax.f32 %v642, 0.0
    %v661 = vmax.f32 %v644, 0.0
    %v662 = vpack.c.bf16 %v654, %v646
    %v663 = vpack.c.bf16 %v655, %v647
    %v664 = vpack.c.bf16 %v656, %v648
    %v665 = vpack.c.bf16 %v657, %v649
    %v666 = vpack.c.bf16 %v658, %v650
    %v667 = vpack.c.bf16 %v659, %v651
    %v668 = vpack.c.bf16 %v660, %v652
    %v669 = vpack.c.bf16 %v661, %v653
    %v670 = vld [vmem:[#allocation4] sm:$0xff]
    %v671 = vld [vmem:[#allocation4 + $0x8] sm:$0xff]
    %v672 = vld [vmem:[#allocation4 + $0x10] sm:$0xff]
    %v673 = vld [vmem:[#allocation4 + $0x18] sm:$0xff]
    %v674 = vld [vmem:[#allocation4 + $0x20] sm:$0xff]
    %v675 = vld [vmem:[#allocation4 + $0x28] sm:$0xff]
    %v676 = vld [vmem:[#allocation4 + $0x30] sm:$0xff]
    %v677 = vld [vmem:[#allocation4 + $0x38] sm:$0xff]
    %v678 = vld [vmem:[#allocation4 + $0x40] sm:$0xff]
    %v679 = vld [vmem:[#allocation4 + $0x48] sm:$0xff]
    %v680 = vld [vmem:[#allocation4 + $0x50] sm:$0xff]
    %v681 = vld [vmem:[#allocation4 + $0x58] sm:$0xff]
    %v682 = vld [vmem:[#allocation4 + $0x60] sm:$0xff]
    %v683 = vld [vmem:[#allocation4 + $0x68] sm:$0xff]
    %v684 = vld [vmem:[#allocation4 + $0x70] sm:$0xff]
    %v685 = vld [vmem:[#allocation4 + $0x78] sm:$0xff]
    %v686 = vld [vmem:[#allocation4 + $0x80] sm:$0xff]
    %v687 = vld [vmem:[#allocation4 + $0x88] sm:$0xff]
    %v688 = vld [vmem:[#allocation4 + $0x90] sm:$0xff]
    %v689 = vld [vmem:[#allocation4 + $0x98] sm:$0xff]
    %v690 = vld [vmem:[#allocation4 + $0xa0] sm:$0xff]
    %v691 = vld [vmem:[#allocation4 + $0xa8] sm:$0xff]
    %v692 = vld [vmem:[#allocation4 + $0xb0] sm:$0xff]
    %v693 = vld [vmem:[#allocation4 + $0xb8] sm:$0xff]
    %v694 = vld [vmem:[#allocation4 + $0xc0] sm:$0xff]
    %v695 = vld [vmem:[#allocation4 + $0xc8] sm:$0xff]
    %v696 = vld [vmem:[#allocation4 + $0xd0] sm:$0xff]
    %v697 = vld [vmem:[#allocation4 + $0xd8] sm:$0xff]
    %v698 = vld [vmem:[#allocation4 + $0xe0] sm:$0xff]
    %v699 = vld [vmem:[#allocation4 + $0xe8] sm:$0xff]
    %v700 = vld [vmem:[#allocation4 + $0xf0] sm:$0xff]
    %v701 = vld [vmem:[#allocation4 + $0xf8] sm:$0xff]
    %v702 = vld [vmem:[#allocation4 + $0x100] sm:$0xff]
    %v703 = vld [vmem:[#allocation4 + $0x108] sm:$0xff]
    %v704 = vld [vmem:[#allocation4 + $0x110] sm:$0xff]
    %v705 = vld [vmem:[#allocation4 + $0x118] sm:$0xff]
    %v706 = vld [vmem:[#allocation4 + $0x120] sm:$0xff]
    %v707 = vld [vmem:[#allocation4 + $0x128] sm:$0xff]
    %v708 = vld [vmem:[#allocation4 + $0x130] sm:$0xff]
    %v709 = vld [vmem:[#allocation4 + $0x138] sm:$0xff]
    %v710 = vld [vmem:[#allocation4 + $0x140] sm:$0xff]
    %v711 = vld [vmem:[#allocation4 + $0x148] sm:$0xff]
    %v712 = vld [vmem:[#allocation4 + $0x150] sm:$0xff]
    %v713 = vld [vmem:[#allocation4 + $0x158] sm:$0xff]
    %v714 = vld [vmem:[#allocation4 + $0x160] sm:$0xff]
    %v715 = vld [vmem:[#allocation4 + $0x168] sm:$0xff]
    %v716 = vld [vmem:[#allocation4 + $0x170] sm:$0xff]
    %v717 = vld [vmem:[#allocation4 + $0x178] sm:$0xff]
    %v718 = vld [vmem:[#allocation4 + $0x180] sm:$0xff]
    %v719 = vld [vmem:[#allocation4 + $0x188] sm:$0xff]
    %v720 = vld [vmem:[#allocation4 + $0x190] sm:$0xff]
    %v721 = vld [vmem:[#allocation4 + $0x198] sm:$0xff]
    %v722 = vld [vmem:[#allocation4 + $0x1a0] sm:$0xff]
    %v723 = vld [vmem:[#allocation4 + $0x1a8] sm:$0xff]
    %v724 = vld [vmem:[#allocation4 + $0x1b0] sm:$0xff]
    %v725 = vld [vmem:[#allocation4 + $0x1b8] sm:$0xff]
    %v726 = vld [vmem:[#allocation4 + $0x1c0] sm:$0xff]
    %v727 = vld [vmem:[#allocation4 + $0x1c8] sm:$0xff]
    %v728 = vld [vmem:[#allocation4 + $0x1d0] sm:$0xff]
    %v729 = vld [vmem:[#allocation4 + $0x1d8] sm:$0xff]
    %v730 = vld [vmem:[#allocation4 + $0x1e0] sm:$0xff]
    %v731 = vld [vmem:[#allocation4 + $0x1e8] sm:$0xff]
    %v732 = vld [vmem:[#allocation4 + $0x1f0] sm:$0xff]
    %v733 = vld [vmem:[#allocation4 + $0x1f8] sm:$0xff]
    %v734 = vld [vmem:[#allocation4 + $0x200] sm:$0xff]
    %v735 = vld [vmem:[#allocation4 + $0x208] sm:$0xff]
    %v736 = vld [vmem:[#allocation4 + $0x210] sm:$0xff]
    %v737 = vld [vmem:[#allocation4 + $0x218] sm:$0xff]
    %v738 = vld [vmem:[#allocation4 + $0x220] sm:$0xff]
    %v739 = vld [vmem:[#allocation4 + $0x228] sm:$0xff]
    %v740 = vld [vmem:[#allocation4 + $0x230] sm:$0xff]
    %v741 = vld [vmem:[#allocation4 + $0x238] sm:$0xff]
    %v742 = vld [vmem:[#allocation4 + $0x240] sm:$0xff]
    %v743 = vld [vmem:[#allocation4 + $0x248] sm:$0xff]
    %v744 = vld [vmem:[#allocation4 + $0x250] sm:$0xff]
    %v745 = vld [vmem:[#allocation4 + $0x258] sm:$0xff]
    %v746 = vld [vmem:[#allocation4 + $0x260] sm:$0xff]
    %v747 = vld [vmem:[#allocation4 + $0x268] sm:$0xff]
    %v748 = vld [vmem:[#allocation4 + $0x270] sm:$0xff]
    %v749 = vld [vmem:[#allocation4 + $0x278] sm:$0xff]
    %v750 = vld [vmem:[#allocation4 + $0x280] sm:$0xff]
    %v751 = vld [vmem:[#allocation4 + $0x288] sm:$0xff]
    %v752 = vld [vmem:[#allocation4 + $0x290] sm:$0xff]
    %v753 = vld [vmem:[#allocation4 + $0x298] sm:$0xff]
    %v754 = vld [vmem:[#allocation4 + $0x2a0] sm:$0xff]
    %v755 = vld [vmem:[#allocation4 + $0x2a8] sm:$0xff]
    %v756 = vld [vmem:[#allocation4 + $0x2b0] sm:$0xff]
    %v757 = vld [vmem:[#allocation4 + $0x2b8] sm:$0xff]
    %v758 = vld [vmem:[#allocation4 + $0x2c0] sm:$0xff]
    %v759 = vld [vmem:[#allocation4 + $0x2c8] sm:$0xff]
    %v760 = vld [vmem:[#allocation4 + $0x2d0] sm:$0xff]
    %v761 = vld [vmem:[#allocation4 + $0x2d8] sm:$0xff]
    %v762 = vld [vmem:[#allocation4 + $0x2e0] sm:$0xff]
    %v763 = vld [vmem:[#allocation4 + $0x2e8] sm:$0xff]
    %v764 = vld [vmem:[#allocation4 + $0x2f0] sm:$0xff]
    %v765 = vld [vmem:[#allocation4 + $0x2f8] sm:$0xff]
    %v766 = vld [vmem:[#allocation4 + $0x300] sm:$0xff]
    %v767 = vld [vmem:[#allocation4 + $0x308] sm:$0xff]
    %v768 = vld [vmem:[#allocation4 + $0x310] sm:$0xff]
    %v769 = vld [vmem:[#allocation4 + $0x318] sm:$0xff]
    %v770 = vld [vmem:[#allocation4 + $0x320] sm:$0xff]
    %v771 = vld [vmem:[#allocation4 + $0x328] sm:$0xff]
    %v772 = vld [vmem:[#allocation4 + $0x330] sm:$0xff]
    %v773 = vld [vmem:[#allocation4 + $0x338] sm:$0xff]
    %v774 = vld [vmem:[#allocation4 + $0x340] sm:$0xff]
    %v775 = vld [vmem:[#allocation4 + $0x348] sm:$0xff]
    %v776 = vld [vmem:[#allocation4 + $0x350] sm:$0xff]
    %v777 = vld [vmem:[#allocation4 + $0x358] sm:$0xff]
    %v778 = vld [vmem:[#allocation4 + $0x360] sm:$0xff]
    %v779 = vld [vmem:[#allocation4 + $0x368] sm:$0xff]
    %v780 = vld [vmem:[#allocation4 + $0x370] sm:$0xff]
    %v781 = vld [vmem:[#allocation4 + $0x378] sm:$0xff]
    %v782 = vld [vmem:[#allocation4 + $0x380] sm:$0xff]
    %v783 = vld [vmem:[#allocation4 + $0x388] sm:$0xff]
    %v784 = vld [vmem:[#allocation4 + $0x390] sm:$0xff]
    %v785 = vld [vmem:[#allocation4 + $0x398] sm:$0xff]
    %v786 = vld [vmem:[#allocation4 + $0x3a0] sm:$0xff]
    %v787 = vld [vmem:[#allocation4 + $0x3a8] sm:$0xff]
    %v788 = vld [vmem:[#allocation4 + $0x3b0] sm:$0xff]
    %v789 = vld [vmem:[#allocation4 + $0x3b8] sm:$0xff]
    %v790 = vld [vmem:[#allocation4 + $0x3c0] sm:$0xff]
    %v791 = vld [vmem:[#allocation4 + $0x3c8] sm:$0xff]
    %v792 = vld [vmem:[#allocation4 + $0x3d0] sm:$0xff]
    %v793 = vld [vmem:[#allocation4 + $0x3d8] sm:$0xff]
    %v794 = vld [vmem:[#allocation4 + $0x3e0] sm:$0xff]
    %v795 = vld [vmem:[#allocation4 + $0x3e8] sm:$0xff]
    %v796 = vld [vmem:[#allocation4 + $0x3f0] sm:$0xff]
    %v797 = vld [vmem:[#allocation4 + $0x3f8] sm:$0xff]
    %v798 = vld [vmem:[#allocation4 + $0x400] sm:$0xff]
    %v799 = vld [vmem:[#allocation4 + $0x408] sm:$0xff]
    %v800 = vld [vmem:[#allocation4 + $0x410] sm:$0xff]
    %v801 = vld [vmem:[#allocation4 + $0x418] sm:$0xff]
    %v802 = vld [vmem:[#allocation4 + $0x420] sm:$0xff]
    %v803 = vld [vmem:[#allocation4 + $0x428] sm:$0xff]
    %v804 = vld [vmem:[#allocation4 + $0x430] sm:$0xff]
    %v805 = vld [vmem:[#allocation4 + $0x438] sm:$0xff]
    %v806 = vld [vmem:[#allocation4 + $0x440] sm:$0xff]
    %v807 = vld [vmem:[#allocation4 + $0x448] sm:$0xff]
    %v808 = vld [vmem:[#allocation4 + $0x450] sm:$0xff]
    %v809 = vld [vmem:[#allocation4 + $0x458] sm:$0xff]
    %v810 = vld [vmem:[#allocation4 + $0x460] sm:$0xff]
    %v811 = vld [vmem:[#allocation4 + $0x468] sm:$0xff]
    %v812 = vld [vmem:[#allocation4 + $0x470] sm:$0xff]
    %v813 = vld [vmem:[#allocation4 + $0x478] sm:$0xff]
    %v814 = vld [vmem:[#allocation4 + $0x480] sm:$0xff]
    %v815 = vld [vmem:[#allocation4 + $0x488] sm:$0xff]
    %v816 = vld [vmem:[#allocation4 + $0x490] sm:$0xff]
    %v817 = vld [vmem:[#allocation4 + $0x498] sm:$0xff]
    %v818 = vld [vmem:[#allocation4 + $0x4a0] sm:$0xff]
    %v819 = vld [vmem:[#allocation4 + $0x4a8] sm:$0xff]
    %v820 = vld [vmem:[#allocation4 + $0x4b0] sm:$0xff]
    %v821 = vld [vmem:[#allocation4 + $0x4b8] sm:$0xff]
    %v822 = vld [vmem:[#allocation4 + $0x4c0] sm:$0xff]
    %v823 = vld [vmem:[#allocation4 + $0x4c8] sm:$0xff]
    %v824 = vld [vmem:[#allocation4 + $0x4d0] sm:$0xff]
    %v825 = vld [vmem:[#allocation4 + $0x4d8] sm:$0xff]
    %v826 = vld [vmem:[#allocation4 + $0x4e0] sm:$0xff]
    %v827 = vld [vmem:[#allocation4 + $0x4e8] sm:$0xff]
    %v828 = vld [vmem:[#allocation4 + $0x4f0] sm:$0xff]
    %v829 = vld [vmem:[#allocation4 + $0x4f8] sm:$0xff]
    %v830 = vld [vmem:[#allocation4 + $0x500] sm:$0xff]
    %v831 = vld [vmem:[#allocation4 + $0x508] sm:$0xff]
    %v832 = vld [vmem:[#allocation4 + $0x510] sm:$0xff]
    %v833 = vld [vmem:[#allocation4 + $0x518] sm:$0xff]
    %v834 = vld [vmem:[#allocation4 + $0x520] sm:$0xff]
    %v835 = vld [vmem:[#allocation4 + $0x528] sm:$0xff]
    %v836 = vld [vmem:[#allocation4 + $0x530] sm:$0xff]
    %v837 = vld [vmem:[#allocation4 + $0x538] sm:$0xff]
    %v838 = vld [vmem:[#allocation4 + $0x540] sm:$0xff]
    %v839 = vld [vmem:[#allocation4 + $0x548] sm:$0xff]
    %v840 = vld [vmem:[#allocation4 + $0x550] sm:$0xff]
    %v841 = vld [vmem:[#allocation4 + $0x558] sm:$0xff]
    %v842 = vld [vmem:[#allocation4 + $0x560] sm:$0xff]
    %v843 = vld [vmem:[#allocation4 + $0x568] sm:$0xff]
    %v844 = vld [vmem:[#allocation4 + $0x570] sm:$0xff]
    %v845 = vld [vmem:[#allocation4 + $0x578] sm:$0xff]
    %v846 = vld [vmem:[#allocation4 + $0x580] sm:$0xff]
    %v847 = vld [vmem:[#allocation4 + $0x588] sm:$0xff]
    %v848 = vld [vmem:[#allocation4 + $0x590] sm:$0xff]
    %v849 = vld [vmem:[#allocation4 + $0x598] sm:$0xff]
    %v850 = vld [vmem:[#allocation4 + $0x5a0] sm:$0xff]
    %v851 = vld [vmem:[#allocation4 + $0x5a8] sm:$0xff]
    %v852 = vld [vmem:[#allocation4 + $0x5b0] sm:$0xff]
    %v853 = vld [vmem:[#allocation4 + $0x5b8] sm:$0xff]
    %v854 = vld [vmem:[#allocation4 + $0x5c0] sm:$0xff]
    %v855 = vld [vmem:[#allocation4 + $0x5c8] sm:$0xff]
    %v856 = vld [vmem:[#allocation4 + $0x5d0] sm:$0xff]
    %v857 = vld [vmem:[#allocation4 + $0x5d8] sm:$0xff]
    %v858 = vld [vmem:[#allocation4 + $0x5e0] sm:$0xff]
    %v859 = vld [vmem:[#allocation4 + $0x5e8] sm:$0xff]
    %v860 = vld [vmem:[#allocation4 + $0x5f0] sm:$0xff]
    %v861 = vld [vmem:[#allocation4 + $0x5f8] sm:$0xff]
    %v862 = vld [vmem:[#allocation4 + $0x600] sm:$0xff]
    %v863 = vld [vmem:[#allocation4 + $0x608] sm:$0xff]
    %v864 = vld [vmem:[#allocation4 + $0x610] sm:$0xff]
    %v865 = vld [vmem:[#allocation4 + $0x618] sm:$0xff]
    %v866 = vld [vmem:[#allocation4 + $0x620] sm:$0xff]
    %v867 = vld [vmem:[#allocation4 + $0x628] sm:$0xff]
    %v868 = vld [vmem:[#allocation4 + $0x630] sm:$0xff]
    %v869 = vld [vmem:[#allocation4 + $0x638] sm:$0xff]
    %v870 = vld [vmem:[#allocation4 + $0x640] sm:$0xff]
    %v871 = vld [vmem:[#allocation4 + $0x648] sm:$0xff]
    %v872 = vld [vmem:[#allocation4 + $0x650] sm:$0xff]
    %v873 = vld [vmem:[#allocation4 + $0x658] sm:$0xff]
    %v874 = vld [vmem:[#allocation4 + $0x660] sm:$0xff]
    %v875 = vld [vmem:[#allocation4 + $0x668] sm:$0xff]
    %v876 = vld [vmem:[#allocation4 + $0x670] sm:$0xff]
    %v877 = vld [vmem:[#allocation4 + $0x678] sm:$0xff]
    %v878 = vld [vmem:[#allocation4 + $0x680] sm:$0xff]
    %v879 = vld [vmem:[#allocation4 + $0x688] sm:$0xff]
    %v880 = vld [vmem:[#allocation4 + $0x690] sm:$0xff]
    %v881 = vld [vmem:[#allocation4 + $0x698] sm:$0xff]
    %v882 = vld [vmem:[#allocation4 + $0x6a0] sm:$0xff]
    %v883 = vld [vmem:[#allocation4 + $0x6a8] sm:$0xff]
    %v884 = vld [vmem:[#allocation4 + $0x6b0] sm:$0xff]
    %v885 = vld [vmem:[#allocation4 + $0x6b8] sm:$0xff]
    %v886 = vld [vmem:[#allocation4 + $0x6c0] sm:$0xff]
    %v887 = vld [vmem:[#allocation4 + $0x6c8] sm:$0xff]
    %v888 = vld [vmem:[#allocation4 + $0x6d0] sm:$0xff]
    %v889 = vld [vmem:[#allocation4 + $0x6d8] sm:$0xff]
    %v890 = vld [vmem:[#allocation4 + $0x6e0] sm:$0xff]
    %v891 = vld [vmem:[#allocation4 + $0x6e8] sm:$0xff]
    %v892 = vld [vmem:[#allocation4 + $0x6f0] sm:$0xff]
    %v893 = vld [vmem:[#allocation4 + $0x6f8] sm:$0xff]
    %v894 = vld [vmem:[#allocation4 + $0x700] sm:$0xff]
    %v895 = vld [vmem:[#allocation4 + $0x708] sm:$0xff]
    %v896 = vld [vmem:[#allocation4 + $0x710] sm:$0xff]
    %v897 = vld [vmem:[#allocation4 + $0x718] sm:$0xff]
    %v898 = vld [vmem:[#allocation4 + $0x720] sm:$0xff]
    %v899 = vld [vmem:[#allocation4 + $0x728] sm:$0xff]
    %v900 = vld [vmem:[#allocation4 + $0x730] sm:$0xff]
    %v901 = vld [vmem:[#allocation4 + $0x738] sm:$0xff]
    %v902 = vld [vmem:[#allocation4 + $0x740] sm:$0xff]
    %v903 = vld [vmem:[#allocation4 + $0x748] sm:$0xff]
    %v904 = vld [vmem:[#allocation4 + $0x750] sm:$0xff]
    %v905 = vld [vmem:[#allocation4 + $0x758] sm:$0xff]
    %v906 = vld [vmem:[#allocation4 + $0x760] sm:$0xff]
    %v907 = vld [vmem:[#allocation4 + $0x768] sm:$0xff]
    %v908 = vld [vmem:[#allocation4 + $0x770] sm:$0xff]
    %v909 = vld [vmem:[#allocation4 + $0x778] sm:$0xff]
    %v910 = vld [vmem:[#allocation4 + $0x780] sm:$0xff]
    %v911 = vld [vmem:[#allocation4 + $0x788] sm:$0xff]
    %v912 = vld [vmem:[#allocation4 + $0x790] sm:$0xff]
    %v913 = vld [vmem:[#allocation4 + $0x798] sm:$0xff]
    %v914 = vld [vmem:[#allocation4 + $0x7a0] sm:$0xff]
    %v915 = vld [vmem:[#allocation4 + $0x7a8] sm:$0xff]
    %v916 = vld [vmem:[#allocation4 + $0x7b0] sm:$0xff]
    %v917 = vld [vmem:[#allocation4 + $0x7b8] sm:$0xff]
    %v918 = vld [vmem:[#allocation4 + $0x7c0] sm:$0xff]
    %v919 = vld [vmem:[#allocation4 + $0x7c8] sm:$0xff]
    %v920 = vld [vmem:[#allocation4 + $0x7d0] sm:$0xff]
    %v921 = vld [vmem:[#allocation4 + $0x7d8] sm:$0xff]
    %v922 = vld [vmem:[#allocation4 + $0x7e0] sm:$0xff]
    %v923 = vld [vmem:[#allocation4 + $0x7e8] sm:$0xff]
    %v924 = vld [vmem:[#allocation4 + $0x7f0] sm:$0xff]
    %v925 = vld [vmem:[#allocation4 + $0x7f8] sm:$0xff]
    %v926 = vld [vmem:[%s4] sm:$0xf]
    %v928 = vlaneseq
    %v929 = vshrl.u32 %v928, 7
    %v930 = vsub.s32 0, %v929
    %v931 = vrot.slane %v926, %v930
    %v932 = vlaneseq
    %v933 = vshrl.u32 %v932, 7
    %v934 = vsub.s32 1, %v933
    %v935 = vrot.slane %v926, %v934
    %v936 = vlaneseq
    %v937 = vshrl.u32 %v936, 7
    %v938 = vsub.s32 2, %v937
    %v939 = vrot.slane %v926, %v938
    %v940 = vlaneseq
    %v941 = vshrl.u32 %v940, 7
    %v942 = vsub.s32 3, %v941
    %v943 = vrot.slane %v926, %v942
    %v1204 = vunpack.c.l.b16 %v670
    %v1205 = vunpack.c.h.b16 %v670
    %v1206 = vunpack.c.l.b16 %v671
    %v1207 = vunpack.c.h.b16 %v671
    %v1208 = vunpack.c.l.b16 %v672
    %v1209 = vunpack.c.h.b16 %v672
    %v1210 = vunpack.c.l.b16 %v673
    %v1211 = vunpack.c.h.b16 %v673
    %v1212 = vunpack.c.l.b16 %v674
    %v1213 = vunpack.c.h.b16 %v674
    %v1214 = vunpack.c.l.b16 %v675
    %v1215 = vunpack.c.h.b16 %v675
    %v1216 = vunpack.c.l.b16 %v676
    %v1217 = vunpack.c.h.b16 %v676
    %v1218 = vunpack.c.l.b16 %v677
    %v1219 = vunpack.c.h.b16 %v677
    %v1220 = vunpack.c.l.b16 %v678
    %v1221 = vunpack.c.h.b16 %v678
    %v1222 = vunpack.c.l.b16 %v679
    %v1223 = vunpack.c.h.b16 %v679
    %v1224 = vunpack.c.l.b16 %v680
    %v1225 = vunpack.c.h.b16 %v680
    %v1226 = vunpack.c.l.b16 %v681
    %v1227 = vunpack.c.h.b16 %v681
    %v1228 = vunpack.c.l.b16 %v682
    %v1229 = vunpack.c.h.b16 %v682
    %v1230 = vunpack.c.l.b16 %v683
    %v1231 = vunpack.c.h.b16 %v683
    %v1232 = vunpack.c.l.b16 %v684
    %v1233 = vunpack.c.h.b16 %v684
    %v1234 = vunpack.c.l.b16 %v685
    %v1235 = vunpack.c.h.b16 %v685
    %v1236 = vunpack.c.l.b16 %v686
    %v1237 = vunpack.c.h.b16 %v686
    %v1238 = vunpack.c.l.b16 %v687
    %v1239 = vunpack.c.h.b16 %v687
    %v1240 = vunpack.c.l.b16 %v688
    %v1241 = vunpack.c.h.b16 %v688
    %v1242 = vunpack.c.l.b16 %v689
    %v1243 = vunpack.c.h.b16 %v689
    %v1244 = vunpack.c.l.b16 %v690
    %v1245 = vunpack.c.h.b16 %v690
    %v1246 = vunpack.c.l.b16 %v691
    %v1247 = vunpack.c.h.b16 %v691
    %v1248 = vunpack.c.l.b16 %v692
    %v1249 = vunpack.c.h.b16 %v692
    %v1250 = vunpack.c.l.b16 %v693
    %v1251 = vunpack.c.h.b16 %v693
    %v1252 = vunpack.c.l.b16 %v694
    %v1253 = vunpack.c.h.b16 %v694
    %v1254 = vunpack.c.l.b16 %v695
    %v1255 = vunpack.c.h.b16 %v695
    %v1256 = vunpack.c.l.b16 %v696
    %v1257 = vunpack.c.h.b16 %v696
    %v1258 = vunpack.c.l.b16 %v697
    %v1259 = vunpack.c.h.b16 %v697
    %v1260 = vunpack.c.l.b16 %v698
    %v1261 = vunpack.c.h.b16 %v698
    %v1262 = vunpack.c.l.b16 %v699
    %v1263 = vunpack.c.h.b16 %v699
    %v1264 = vunpack.c.l.b16 %v700
    %v1265 = vunpack.c.h.b16 %v700
    %v1266 = vunpack.c.l.b16 %v701
    %v1267 = vunpack.c.h.b16 %v701
    %v1268 = vunpack.c.l.b16 %v702
    %v1269 = vunpack.c.h.b16 %v702
    %v1270 = vunpack.c.l.b16 %v703
    %v1271 = vunpack.c.h.b16 %v703
    %v1272 = vunpack.c.l.b16 %v704
    %v1273 = vunpack.c.h.b16 %v704
    %v1274 = vunpack.c.l.b16 %v705
    %v1275 = vunpack.c.h.b16 %v705
    %v1276 = vunpack.c.l.b16 %v706
    %v1277 = vunpack.c.h.b16 %v706
    %v1278 = vunpack.c.l.b16 %v707
    %v1279 = vunpack.c.h.b16 %v707
    %v1280 = vunpack.c.l.b16 %v708
    %v1281 = vunpack.c.h.b16 %v708
    %v1282 = vunpack.c.l.b16 %v709
    %v1283 = vunpack.c.h.b16 %v709
    %v1284 = vunpack.c.l.b16 %v710
    %v1285 = vunpack.c.h.b16 %v710
    %v1286 = vunpack.c.l.b16 %v711
    %v1287 = vunpack.c.h.b16 %v711
    %v1288 = vunpack.c.l.b16 %v712
    %v1289 = vunpack.c.h.b16 %v712
    %v1290 = vunpack.c.l.b16 %v713
    %v1291 = vunpack.c.h.b16 %v713
    %v1292 = vunpack.c.l.b16 %v714
    %v1293 = vunpack.c.h.b16 %v714
    %v1294 = vunpack.c.l.b16 %v715
    %v1295 = vunpack.c.h.b16 %v715
    %v1296 = vunpack.c.l.b16 %v716
    %v1297 = vunpack.c.h.b16 %v716
    %v1298 = vunpack.c.l.b16 %v717
    %v1299 = vunpack.c.h.b16 %v717
    %v1300 = vunpack.c.l.b16 %v718
    %v1301 = vunpack.c.h.b16 %v718
    %v1302 = vunpack.c.l.b16 %v719
    %v1303 = vunpack.c.h.b16 %v719
    %v1304 = vunpack.c.l.b16 %v720
    %v1305 = vunpack.c.h.b16 %v720
    %v1306 = vunpack.c.l.b16 %v721
    %v1307 = vunpack.c.h.b16 %v721
    %v1308 = vunpack.c.l.b16 %v722
    %v1309 = vunpack.c.h.b16 %v722
    %v1310 = vunpack.c.l.b16 %v723
    %v1311 = vunpack.c.h.b16 %v723
    %v1312 = vunpack.c.l.b16 %v724
    %v1313 = vunpack.c.h.b16 %v724
    %v1314 = vunpack.c.l.b16 %v725
    %v1315 = vunpack.c.h.b16 %v725
    %v1316 = vunpack.c.l.b16 %v726
    %v1317 = vunpack.c.h.b16 %v726
    %v1318 = vunpack.c.l.b16 %v727
    %v1319 = vunpack.c.h.b16 %v727
    %v1320 = vunpack.c.l.b16 %v728
    %v1321 = vunpack.c.h.b16 %v728
    %v1322 = vunpack.c.l.b16 %v729
    %v1323 = vunpack.c.h.b16 %v729
    %v1324 = vunpack.c.l.b16 %v730
    %v1325 = vunpack.c.h.b16 %v730
    %v1326 = vunpack.c.l.b16 %v731
    %v1327 = vunpack.c.h.b16 %v731
    %v1328 = vunpack.c.l.b16 %v732
    %v1329 = vunpack.c.h.b16 %v732
    %v1330 = vunpack.c.l.b16 %v733
    %v1331 = vunpack.c.h.b16 %v733
    %v1332 = vunpack.c.l.b16 %v734
    %v1333 = vunpack.c.h.b16 %v734
    %v1334 = vunpack.c.l.b16 %v735
    %v1335 = vunpack.c.h.b16 %v735
    %v1336 = vunpack.c.l.b16 %v736
    %v1337 = vunpack.c.h.b16 %v736
    %v1338 = vunpack.c.l.b16 %v737
    %v1339 = vunpack.c.h.b16 %v737
    %v1340 = vunpack.c.l.b16 %v738
    %v1341 = vunpack.c.h.b16 %v738
    %v1342 = vunpack.c.l.b16 %v739
    %v1343 = vunpack.c.h.b16 %v739
    %v1344 = vunpack.c.l.b16 %v740
    %v1345 = vunpack.c.h.b16 %v740
    %v1346 = vunpack.c.l.b16 %v741
    %v1347 = vunpack.c.h.b16 %v741
    %v1348 = vunpack.c.l.b16 %v742
    %v1349 = vunpack.c.h.b16 %v742
    %v1350 = vunpack.c.l.b16 %v743
    %v1351 = vunpack.c.h.b16 %v743
    %v1352 = vunpack.c.l.b16 %v744
    %v1353 = vunpack.c.h.b16 %v744
    %v1354 = vunpack.c.l.b16 %v745
    %v1355 = vunpack.c.h.b16 %v745
    %v1356 = vunpack.c.l.b16 %v746
    %v1357 = vunpack.c.h.b16 %v746
    %v1358 = vunpack.c.l.b16 %v747
    %v1359 = vunpack.c.h.b16 %v747
    %v1360 = vunpack.c.l.b16 %v748
    %v1361 = vunpack.c.h.b16 %v748
    %v1362 = vunpack.c.l.b16 %v749
    %v1363 = vunpack.c.h.b16 %v749
    %v1364 = vunpack.c.l.b16 %v750
    %v1365 = vunpack.c.h.b16 %v750
    %v1366 = vunpack.c.l.b16 %v751
    %v1367 = vunpack.c.h.b16 %v751
    %v1368 = vunpack.c.l.b16 %v752
    %v1369 = vunpack.c.h.b16 %v752
    %v1370 = vunpack.c.l.b16 %v753
    %v1371 = vunpack.c.h.b16 %v753
    %v1372 = vunpack.c.l.b16 %v754
    %v1373 = vunpack.c.h.b16 %v754
    %v1374 = vunpack.c.l.b16 %v755
    %v1375 = vunpack.c.h.b16 %v755
    %v1376 = vunpack.c.l.b16 %v756
    %v1377 = vunpack.c.h.b16 %v756
    %v1378 = vunpack.c.l.b16 %v757
    %v1379 = vunpack.c.h.b16 %v757
    %v1380 = vunpack.c.l.b16 %v758
    %v1381 = vunpack.c.h.b16 %v758
    %v1382 = vunpack.c.l.b16 %v759
    %v1383 = vunpack.c.h.b16 %v759
    %v1384 = vunpack.c.l.b16 %v760
    %v1385 = vunpack.c.h.b16 %v760
    %v1386 = vunpack.c.l.b16 %v761
    %v1387 = vunpack.c.h.b16 %v761
    %v1388 = vunpack.c.l.b16 %v762
    %v1389 = vunpack.c.h.b16 %v762
    %v1390 = vunpack.c.l.b16 %v763
    %v1391 = vunpack.c.h.b16 %v763
    %v1392 = vunpack.c.l.b16 %v764
    %v1393 = vunpack.c.h.b16 %v764
    %v1394 = vunpack.c.l.b16 %v765
    %v1395 = vunpack.c.h.b16 %v765
    %v1396 = vunpack.c.l.b16 %v766
    %v1397 = vunpack.c.h.b16 %v766
    %v1398 = vunpack.c.l.b16 %v767
    %v1399 = vunpack.c.h.b16 %v767
    %v1400 = vunpack.c.l.b16 %v768
    %v1401 = vunpack.c.h.b16 %v768
    %v1402 = vunpack.c.l.b16 %v769
    %v1403 = vunpack.c.h.b16 %v769
    %v1404 = vunpack.c.l.b16 %v770
    %v1405 = vunpack.c.h.b16 %v770
    %v1406 = vunpack.c.l.b16 %v771
    %v1407 = vunpack.c.h.b16 %v771
    %v1408 = vunpack.c.l.b16 %v772
    %v1409 = vunpack.c.h.b16 %v772
    %v1410 = vunpack.c.l.b16 %v773
    %v1411 = vunpack.c.h.b16 %v773
    %v1412 = vunpack.c.l.b16 %v774
    %v1413 = vunpack.c.h.b16 %v774
    %v1414 = vunpack.c.l.b16 %v775
    %v1415 = vunpack.c.h.b16 %v775
    %v1416 = vunpack.c.l.b16 %v776
    %v1417 = vunpack.c.h.b16 %v776
    %v1418 = vunpack.c.l.b16 %v777
    %v1419 = vunpack.c.h.b16 %v777
    %v1420 = vunpack.c.l.b16 %v778
    %v1421 = vunpack.c.h.b16 %v778
    %v1422 = vunpack.c.l.b16 %v779
    %v1423 = vunpack.c.h.b16 %v779
    %v1424 = vunpack.c.l.b16 %v780
    %v1425 = vunpack.c.h.b16 %v780
    %v1426 = vunpack.c.l.b16 %v781
    %v1427 = vunpack.c.h.b16 %v781
    %v1428 = vunpack.c.l.b16 %v782
    %v1429 = vunpack.c.h.b16 %v782
    %v1430 = vunpack.c.l.b16 %v783
    %v1431 = vunpack.c.h.b16 %v783
    %v1432 = vunpack.c.l.b16 %v784
    %v1433 = vunpack.c.h.b16 %v784
    %v1434 = vunpack.c.l.b16 %v785
    %v1435 = vunpack.c.h.b16 %v785
    %v1436 = vunpack.c.l.b16 %v786
    %v1437 = vunpack.c.h.b16 %v786
    %v1438 = vunpack.c.l.b16 %v787
    %v1439 = vunpack.c.h.b16 %v787
    %v1440 = vunpack.c.l.b16 %v788
    %v1441 = vunpack.c.h.b16 %v788
    %v1442 = vunpack.c.l.b16 %v789
    %v1443 = vunpack.c.h.b16 %v789
    %v1444 = vunpack.c.l.b16 %v790
    %v1445 = vunpack.c.h.b16 %v790
    %v1446 = vunpack.c.l.b16 %v791
    %v1447 = vunpack.c.h.b16 %v791
    %v1448 = vunpack.c.l.b16 %v792
    %v1449 = vunpack.c.h.b16 %v792
    %v1450 = vunpack.c.l.b16 %v793
    %v1451 = vunpack.c.h.b16 %v793
    %v1452 = vunpack.c.l.b16 %v794
    %v1453 = vunpack.c.h.b16 %v794
    %v1454 = vunpack.c.l.b16 %v795
    %v1455 = vunpack.c.h.b16 %v795
    %v1456 = vunpack.c.l.b16 %v796
    %v1457 = vunpack.c.h.b16 %v796
    %v1458 = vunpack.c.l.b16 %v797
    %v1459 = vunpack.c.h.b16 %v797
    %v1460 = vunpack.c.l.b16 %v798
    %v1461 = vunpack.c.h.b16 %v798
    %v1462 = vunpack.c.l.b16 %v799
    %v1463 = vunpack.c.h.b16 %v799
    %v1464 = vunpack.c.l.b16 %v800
    %v1465 = vunpack.c.h.b16 %v800
    %v1466 = vunpack.c.l.b16 %v801
    %v1467 = vunpack.c.h.b16 %v801
    %v1468 = vunpack.c.l.b16 %v802
    %v1469 = vunpack.c.h.b16 %v802
    %v1470 = vunpack.c.l.b16 %v803
    %v1471 = vunpack.c.h.b16 %v803
    %v1472 = vunpack.c.l.b16 %v804
    %v1473 = vunpack.c.h.b16 %v804
    %v1474 = vunpack.c.l.b16 %v805
    %v1475 = vunpack.c.h.b16 %v805
    %v1476 = vunpack.c.l.b16 %v806
    %v1477 = vunpack.c.h.b16 %v806
    %v1478 = vunpack.c.l.b16 %v807
    %v1479 = vunpack.c.h.b16 %v807
    %v1480 = vunpack.c.l.b16 %v808
    %v1481 = vunpack.c.h.b16 %v808
    %v1482 = vunpack.c.l.b16 %v809
    %v1483 = vunpack.c.h.b16 %v809
    %v1484 = vunpack.c.l.b16 %v810
    %v1485 = vunpack.c.h.b16 %v810
    %v1486 = vunpack.c.l.b16 %v811
    %v1487 = vunpack.c.h.b16 %v811
    %v1488 = vunpack.c.l.b16 %v812
    %v1489 = vunpack.c.h.b16 %v812
    %v1490 = vunpack.c.l.b16 %v813
    %v1491 = vunpack.c.h.b16 %v813
    %v1492 = vunpack.c.l.b16 %v814
    %v1493 = vunpack.c.h.b16 %v814
    %v1494 = vunpack.c.l.b16 %v815
    %v1495 = vunpack.c.h.b16 %v815
    %v1496 = vunpack.c.l.b16 %v816
    %v1497 = vunpack.c.h.b16 %v816
    %v1498 = vunpack.c.l.b16 %v817
    %v1499 = vunpack.c.h.b16 %v817
    %v1500 = vunpack.c.l.b16 %v818
    %v1501 = vunpack.c.h.b16 %v818
    %v1502 = vunpack.c.l.b16 %v819
    %v1503 = vunpack.c.h.b16 %v819
    %v1504 = vunpack.c.l.b16 %v820
    %v1505 = vunpack.c.h.b16 %v820
    %v1506 = vunpack.c.l.b16 %v821
    %v1507 = vunpack.c.h.b16 %v821
    %v1508 = vunpack.c.l.b16 %v822
    %v1509 = vunpack.c.h.b16 %v822
    %v1510 = vunpack.c.l.b16 %v823
    %v1511 = vunpack.c.h.b16 %v823
    %v1512 = vunpack.c.l.b16 %v824
    %v1513 = vunpack.c.h.b16 %v824
    %v1514 = vunpack.c.l.b16 %v825
    %v1515 = vunpack.c.h.b16 %v825
    %v1516 = vunpack.c.l.b16 %v826
    %v1517 = vunpack.c.h.b16 %v826
    %v1518 = vunpack.c.l.b16 %v827
    %v1519 = vunpack.c.h.b16 %v827
    %v1520 = vunpack.c.l.b16 %v828
    %v1521 = vunpack.c.h.b16 %v828
    %v1522 = vunpack.c.l.b16 %v829
    %v1523 = vunpack.c.h.b16 %v829
    %v1524 = vunpack.c.l.b16 %v830
    %v1525 = vunpack.c.h.b16 %v830
    %v1526 = vunpack.c.l.b16 %v831
    %v1527 = vunpack.c.h.b16 %v831
    %v1528 = vunpack.c.l.b16 %v832
    %v1529 = vunpack.c.h.b16 %v832
    %v1530 = vunpack.c.l.b16 %v833
    %v1531 = vunpack.c.h.b16 %v833
    %v1532 = vunpack.c.l.b16 %v834
    %v1533 = vunpack.c.h.b16 %v834
    %v1534 = vunpack.c.l.b16 %v835
    %v1535 = vunpack.c.h.b16 %v835
    %v1536 = vunpack.c.l.b16 %v836
    %v1537 = vunpack.c.h.b16 %v836
    %v1538 = vunpack.c.l.b16 %v837
    %v1539 = vunpack.c.h.b16 %v837
    %v1540 = vunpack.c.l.b16 %v838
    %v1541 = vunpack.c.h.b16 %v838
    %v1542 = vunpack.c.l.b16 %v839
    %v1543 = vunpack.c.h.b16 %v839
    %v1544 = vunpack.c.l.b16 %v840
    %v1545 = vunpack.c.h.b16 %v840
    %v1546 = vunpack.c.l.b16 %v841
    %v1547 = vunpack.c.h.b16 %v841
    %v1548 = vunpack.c.l.b16 %v842
    %v1549 = vunpack.c.h.b16 %v842
    %v1550 = vunpack.c.l.b16 %v843
    %v1551 = vunpack.c.h.b16 %v843
    %v1552 = vunpack.c.l.b16 %v844
    %v1553 = vunpack.c.h.b16 %v844
    %v1554 = vunpack.c.l.b16 %v845
    %v1555 = vunpack.c.h.b16 %v845
    %v1556 = vunpack.c.l.b16 %v846
    %v1557 = vunpack.c.h.b16 %v846
    %v1558 = vunpack.c.l.b16 %v847
    %v1559 = vunpack.c.h.b16 %v847
    %v1560 = vunpack.c.l.b16 %v848
    %v1561 = vunpack.c.h.b16 %v848
    %v1562 = vunpack.c.l.b16 %v849
    %v1563 = vunpack.c.h.b16 %v849
    %v1564 = vunpack.c.l.b16 %v850
    %v1565 = vunpack.c.h.b16 %v850
    %v1566 = vunpack.c.l.b16 %v851
    %v1567 = vunpack.c.h.b16 %v851
    %v1568 = vunpack.c.l.b16 %v852
    %v1569 = vunpack.c.h.b16 %v852
    %v1570 = vunpack.c.l.b16 %v853
    %v1571 = vunpack.c.h.b16 %v853
    %v1572 = vunpack.c.l.b16 %v854
    %v1573 = vunpack.c.h.b16 %v854
    %v1574 = vunpack.c.l.b16 %v855
    %v1575 = vunpack.c.h.b16 %v855
    %v1576 = vunpack.c.l.b16 %v856
    %v1577 = vunpack.c.h.b16 %v856
    %v1578 = vunpack.c.l.b16 %v857
    %v1579 = vunpack.c.h.b16 %v857
    %v1580 = vunpack.c.l.b16 %v858
    %v1581 = vunpack.c.h.b16 %v858
    %v1582 = vunpack.c.l.b16 %v859
    %v1583 = vunpack.c.h.b16 %v859
    %v1584 = vunpack.c.l.b16 %v860
    %v1585 = vunpack.c.h.b16 %v860
    %v1586 = vunpack.c.l.b16 %v861
    %v1587 = vunpack.c.h.b16 %v861
    %v1588 = vunpack.c.l.b16 %v862
    %v1589 = vunpack.c.h.b16 %v862
    %v1590 = vunpack.c.l.b16 %v863
    %v1591 = vunpack.c.h.b16 %v863
    %v1592 = vunpack.c.l.b16 %v864
    %v1593 = vunpack.c.h.b16 %v864
    %v1594 = vunpack.c.l.b16 %v865
    %v1595 = vunpack.c.h.b16 %v865
    %v1596 = vunpack.c.l.b16 %v866
    %v1597 = vunpack.c.h.b16 %v866
    %v1598 = vunpack.c.l.b16 %v867
    %v1599 = vunpack.c.h.b16 %v867
    %v1600 = vunpack.c.l.b16 %v868
    %v1601 = vunpack.c.h.b16 %v868
    %v1602 = vunpack.c.l.b16 %v869
    %v1603 = vunpack.c.h.b16 %v869
    %v1604 = vunpack.c.l.b16 %v870
    %v1605 = vunpack.c.h.b16 %v870
    %v1606 = vunpack.c.l.b16 %v871
    %v1607 = vunpack.c.h.b16 %v871
    %v1608 = vunpack.c.l.b16 %v872
    %v1609 = vunpack.c.h.b16 %v872
    %v1610 = vunpack.c.l.b16 %v873
    %v1611 = vunpack.c.h.b16 %v873
    %v1612 = vunpack.c.l.b16 %v874
    %v1613 = vunpack.c.h.b16 %v874
    %v1614 = vunpack.c.l.b16 %v875
    %v1615 = vunpack.c.h.b16 %v875
    %v1616 = vunpack.c.l.b16 %v876
    %v1617 = vunpack.c.h.b16 %v876
    %v1618 = vunpack.c.l.b16 %v877
    %v1619 = vunpack.c.h.b16 %v877
    %v1620 = vunpack.c.l.b16 %v878
    %v1621 = vunpack.c.h.b16 %v878
    %v1622 = vunpack.c.l.b16 %v879
    %v1623 = vunpack.c.h.b16 %v879
    %v1624 = vunpack.c.l.b16 %v880
    %v1625 = vunpack.c.h.b16 %v880
    %v1626 = vunpack.c.l.b16 %v881
    %v1627 = vunpack.c.h.b16 %v881
    %v1628 = vunpack.c.l.b16 %v882
    %v1629 = vunpack.c.h.b16 %v882
    %v1630 = vunpack.c.l.b16 %v883
    %v1631 = vunpack.c.h.b16 %v883
    %v1632 = vunpack.c.l.b16 %v884
    %v1633 = vunpack.c.h.b16 %v884
    %v1634 = vunpack.c.l.b16 %v885
    %v1635 = vunpack.c.h.b16 %v885
    %v1636 = vunpack.c.l.b16 %v886
    %v1637 = vunpack.c.h.b16 %v886
    %v1638 = vunpack.c.l.b16 %v887
    %v1639 = vunpack.c.h.b16 %v887
    %v1640 = vunpack.c.l.b16 %v888
    %v1641 = vunpack.c.h.b16 %v888
    %v1642 = vunpack.c.l.b16 %v889
    %v1643 = vunpack.c.h.b16 %v889
    %v1644 = vunpack.c.l.b16 %v890
    %v1645 = vunpack.c.h.b16 %v890
    %v1646 = vunpack.c.l.b16 %v891
    %v1647 = vunpack.c.h.b16 %v891
    %v1648 = vunpack.c.l.b16 %v892
    %v1649 = vunpack.c.h.b16 %v892
    %v1650 = vunpack.c.l.b16 %v893
    %v1651 = vunpack.c.h.b16 %v893
    %v1652 = vunpack.c.l.b16 %v894
    %v1653 = vunpack.c.h.b16 %v894
    %v1654 = vunpack.c.l.b16 %v895
    %v1655 = vunpack.c.h.b16 %v895
    %v1656 = vunpack.c.l.b16 %v896
    %v1657 = vunpack.c.h.b16 %v896
    %v1658 = vunpack.c.l.b16 %v897
    %v1659 = vunpack.c.h.b16 %v897
    %v1660 = vunpack.c.l.b16 %v898
    %v1661 = vunpack.c.h.b16 %v898
    %v1662 = vunpack.c.l.b16 %v899
    %v1663 = vunpack.c.h.b16 %v899
    %v1664 = vunpack.c.l.b16 %v900
    %v1665 = vunpack.c.h.b16 %v900
    %v1666 = vunpack.c.l.b16 %v901
    %v1667 = vunpack.c.h.b16 %v901
    %v1668 = vunpack.c.l.b16 %v902
    %v1669 = vunpack.c.h.b16 %v902
    %v1670 = vunpack.c.l.b16 %v903
    %v1671 = vunpack.c.h.b16 %v903
    %v1672 = vunpack.c.l.b16 %v904
    %v1673 = vunpack.c.h.b16 %v904
    %v1674 = vunpack.c.l.b16 %v905
    %v1675 = vunpack.c.h.b16 %v905
    %v1676 = vunpack.c.l.b16 %v906
    %v1677 = vunpack.c.h.b16 %v906
    %v1678 = vunpack.c.l.b16 %v907
    %v1679 = vunpack.c.h.b16 %v907
    %v1680 = vunpack.c.l.b16 %v908
    %v1681 = vunpack.c.h.b16 %v908
    %v1682 = vunpack.c.l.b16 %v909
    %v1683 = vunpack.c.h.b16 %v909
    %v1684 = vunpack.c.l.b16 %v910
    %v1685 = vunpack.c.h.b16 %v910
    %v1686 = vunpack.c.l.b16 %v911
    %v1687 = vunpack.c.h.b16 %v911
    %v1688 = vunpack.c.l.b16 %v912
    %v1689 = vunpack.c.h.b16 %v912
    %v1690 = vunpack.c.l.b16 %v913
    %v1691 = vunpack.c.h.b16 %v913
    %v1692 = vunpack.c.l.b16 %v914
    %v1693 = vunpack.c.h.b16 %v914
    %v1694 = vunpack.c.l.b16 %v915
    %v1695 = vunpack.c.h.b16 %v915
    %v1696 = vunpack.c.l.b16 %v916
    %v1697 = vunpack.c.h.b16 %v916
    %v1698 = vunpack.c.l.b16 %v917
    %v1699 = vunpack.c.h.b16 %v917
    %v1700 = vunpack.c.l.b16 %v918
    %v1701 = vunpack.c.h.b16 %v918
    %v1702 = vunpack.c.l.b16 %v919
    %v1703 = vunpack.c.h.b16 %v919
    %v1704 = vunpack.c.l.b16 %v920
    %v1705 = vunpack.c.h.b16 %v920
    %v1706 = vunpack.c.l.b16 %v921
    %v1707 = vunpack.c.h.b16 %v921
    %v1708 = vunpack.c.l.b16 %v922
    %v1709 = vunpack.c.h.b16 %v922
    %v1710 = vunpack.c.l.b16 %v923
    %v1711 = vunpack.c.h.b16 %v923
    %v1712 = vunpack.c.l.b16 %v924
    %v1713 = vunpack.c.h.b16 %v924
    %v1714 = vunpack.c.l.b16 %v925
    %v1715 = vunpack.c.h.b16 %v925
    %v1716 = vpack.c.b16 %v1208, %v1204
    %v1717 = vpack.c.b16 %v1209, %v1205
    %v1718 = vpack.c.b16 %v1210, %v1206
    %v1719 = vpack.c.b16 %v1211, %v1207
    %v1720 = vpack.c.b16 %v1216, %v1212
    %v1721 = vpack.c.b16 %v1217, %v1213
    %v1722 = vpack.c.b16 %v1218, %v1214
    %v1723 = vpack.c.b16 %v1219, %v1215
    %v1724 = vpack.c.b16 %v1224, %v1220
    %v1725 = vpack.c.b16 %v1225, %v1221
    %v1726 = vpack.c.b16 %v1226, %v1222
    %v1727 = vpack.c.b16 %v1227, %v1223
    %v1728 = vpack.c.b16 %v1232, %v1228
    %v1729 = vpack.c.b16 %v1233, %v1229
    %v1730 = vpack.c.b16 %v1234, %v1230
    %v1731 = vpack.c.b16 %v1235, %v1231
    %v1732 = vpack.c.b16 %v1240, %v1236
    %v1733 = vpack.c.b16 %v1241, %v1237
    %v1734 = vpack.c.b16 %v1242, %v1238
    %v1735 = vpack.c.b16 %v1243, %v1239
    %v1736 = vpack.c.b16 %v1248, %v1244
    %v1737 = vpack.c.b16 %v1249, %v1245
    %v1738 = vpack.c.b16 %v1250, %v1246
    %v1739 = vpack.c.b16 %v1251, %v1247
    %v1740 = vpack.c.b16 %v1256, %v1252
    %v1741 = vpack.c.b16 %v1257, %v1253
    %v1742 = vpack.c.b16 %v1258, %v1254
    %v1743 = vpack.c.b16 %v1259, %v1255
    %v1744 = vpack.c.b16 %v1264, %v1260
    %v1745 = vpack.c.b16 %v1265, %v1261
    %v1746 = vpack.c.b16 %v1266, %v1262
    %v1747 = vpack.c.b16 %v1267, %v1263
    %v1748 = vpack.c.b16 %v1272, %v1268
    %v1749 = vpack.c.b16 %v1273, %v1269
    %v1750 = vpack.c.b16 %v1274, %v1270
    %v1751 = vpack.c.b16 %v1275, %v1271
    %v1752 = vpack.c.b16 %v1280, %v1276
    %v1753 = vpack.c.b16 %v1281, %v1277
    %v1754 = vpack.c.b16 %v1282, %v1278
    %v1755 = vpack.c.b16 %v1283, %v1279
    %v1756 = vpack.c.b16 %v1288, %v1284
    %v1757 = vpack.c.b16 %v1289, %v1285
    %v1758 = vpack.c.b16 %v1290, %v1286
    %v1759 = vpack.c.b16 %v1291, %v1287
    %v1760 = vpack.c.b16 %v1296, %v1292
    %v1761 = vpack.c.b16 %v1297, %v1293
    %v1762 = vpack.c.b16 %v1298, %v1294
    %v1763 = vpack.c.b16 %v1299, %v1295
    %v1764 = vpack.c.b16 %v1304, %v1300
    %v1765 = vpack.c.b16 %v1305, %v1301
    %v1766 = vpack.c.b16 %v1306, %v1302
    %v1767 = vpack.c.b16 %v1307, %v1303
    %v1768 = vpack.c.b16 %v1312, %v1308
    %v1769 = vpack.c.b16 %v1313, %v1309
    %v1770 = vpack.c.b16 %v1314, %v1310
    %v1771 = vpack.c.b16 %v1315, %v1311
    %v1772 = vpack.c.b16 %v1320, %v1316
    %v1773 = vpack.c.b16 %v1321, %v1317
    %v1774 = vpack.c.b16 %v1322, %v1318
    %v1775 = vpack.c.b16 %v1323, %v1319
    %v1776 = vpack.c.b16 %v1328, %v1324
    %v1777 = vpack.c.b16 %v1329, %v1325
    %v1778 = vpack.c.b16 %v1330, %v1326
    %v1779 = vpack.c.b16 %v1331, %v1327
    %v1780 = vpack.c.b16 %v1336, %v1332
    %v1781 = vpack.c.b16 %v1337, %v1333
    %v1782 = vpack.c.b16 %v1338, %v1334
    %v1783 = vpack.c.b16 %v1339, %v1335
    %v1784 = vpack.c.b16 %v1344, %v1340
    %v1785 = vpack.c.b16 %v1345, %v1341
    %v1786 = vpack.c.b16 %v1346, %v1342
    %v1787 = vpack.c.b16 %v1347, %v1343
    %v1788 = vpack.c.b16 %v1352, %v1348
    %v1789 = vpack.c.b16 %v1353, %v1349
    %v1790 = vpack.c.b16 %v1354, %v1350
    %v1791 = vpack.c.b16 %v1355, %v1351
    %v1792 = vpack.c.b16 %v1360, %v1356
    %v1793 = vpack.c.b16 %v1361, %v1357
    %v1794 = vpack.c.b16 %v1362, %v1358
    %v1795 = vpack.c.b16 %v1363, %v1359
    %v1796 = vpack.c.b16 %v1368, %v1364
    %v1797 = vpack.c.b16 %v1369, %v1365
    %v1798 = vpack.c.b16 %v1370, %v1366
    %v1799 = vpack.c.b16 %v1371, %v1367
    %v1800 = vpack.c.b16 %v1376, %v1372
    %v1801 = vpack.c.b16 %v1377, %v1373
    %v1802 = vpack.c.b16 %v1378, %v1374
    %v1803 = vpack.c.b16 %v1379, %v1375
    %v1804 = vpack.c.b16 %v1384, %v1380
    %v1805 = vpack.c.b16 %v1385, %v1381
    %v1806 = vpack.c.b16 %v1386, %v1382
    %v1807 = vpack.c.b16 %v1387, %v1383
    %v1808 = vpack.c.b16 %v1392, %v1388
    %v1809 = vpack.c.b16 %v1393, %v1389
    %v1810 = vpack.c.b16 %v1394, %v1390
    %v1811 = vpack.c.b16 %v1395, %v1391
    %v1812 = vpack.c.b16 %v1400, %v1396
    %v1813 = vpack.c.b16 %v1401, %v1397
    %v1814 = vpack.c.b16 %v1402, %v1398
    %v1815 = vpack.c.b16 %v1403, %v1399
    %v1816 = vpack.c.b16 %v1408, %v1404
    %v1817 = vpack.c.b16 %v1409, %v1405
    %v1818 = vpack.c.b16 %v1410, %v1406
    %v1819 = vpack.c.b16 %v1411, %v1407
    %v1820 = vpack.c.b16 %v1416, %v1412
    %v1821 = vpack.c.b16 %v1417, %v1413
    %v1822 = vpack.c.b16 %v1418, %v1414
    %v1823 = vpack.c.b16 %v1419, %v1415
    %v1824 = vpack.c.b16 %v1424, %v1420
    %v1825 = vpack.c.b16 %v1425, %v1421
    %v1826 = vpack.c.b16 %v1426, %v1422
    %v1827 = vpack.c.b16 %v1427, %v1423
    %v1828 = vpack.c.b16 %v1432, %v1428
    %v1829 = vpack.c.b16 %v1433, %v1429
    %v1830 = vpack.c.b16 %v1434, %v1430
    %v1831 = vpack.c.b16 %v1435, %v1431
    %v1832 = vpack.c.b16 %v1440, %v1436
    %v1833 = vpack.c.b16 %v1441, %v1437
    %v1834 = vpack.c.b16 %v1442, %v1438
    %v1835 = vpack.c.b16 %v1443, %v1439
    %v1836 = vpack.c.b16 %v1448, %v1444
    %v1837 = vpack.c.b16 %v1449, %v1445
    %v1838 = vpack.c.b16 %v1450, %v1446
    %v1839 = vpack.c.b16 %v1451, %v1447
    %v1840 = vpack.c.b16 %v1456, %v1452
    %v1841 = vpack.c.b16 %v1457, %v1453
    %v1842 = vpack.c.b16 %v1458, %v1454
    %v1843 = vpack.c.b16 %v1459, %v1455
    %v1844 = vpack.c.b16 %v1464, %v1460
    %v1845 = vpack.c.b16 %v1465, %v1461
    %v1846 = vpack.c.b16 %v1466, %v1462
    %v1847 = vpack.c.b16 %v1467, %v1463
    %v1848 = vpack.c.b16 %v1472, %v1468
    %v1849 = vpack.c.b16 %v1473, %v1469
    %v1850 = vpack.c.b16 %v1474, %v1470
    %v1851 = vpack.c.b16 %v1475, %v1471
    %v1852 = vpack.c.b16 %v1480, %v1476
    %v1853 = vpack.c.b16 %v1481, %v1477
    %v1854 = vpack.c.b16 %v1482, %v1478
    %v1855 = vpack.c.b16 %v1483, %v1479
    %v1856 = vpack.c.b16 %v1488, %v1484
    %v1857 = vpack.c.b16 %v1489, %v1485
    %v1858 = vpack.c.b16 %v1490, %v1486
    %v1859 = vpack.c.b16 %v1491, %v1487
    %v1860 = vpack.c.b16 %v1496, %v1492
    %v1861 = vpack.c.b16 %v1497, %v1493
    %v1862 = vpack.c.b16 %v1498, %v1494
    %v1863 = vpack.c.b16 %v1499, %v1495
    %v1864 = vpack.c.b16 %v1504, %v1500
    %v1865 = vpack.c.b16 %v1505, %v1501
    %v1866 = vpack.c.b16 %v1506, %v1502
    %v1867 = vpack.c.b16 %v1507, %v1503
    %v1868 = vpack.c.b16 %v1512, %v1508
    %v1869 = vpack.c.b16 %v1513, %v1509
    %v1870 = vpack.c.b16 %v1514, %v1510
    %v1871 = vpack.c.b16 %v1515, %v1511
    %v1872 = vpack.c.b16 %v1520, %v1516
    %v1873 = vpack.c.b16 %v1521, %v1517
    %v1874 = vpack.c.b16 %v1522, %v1518
    %v1875 = vpack.c.b16 %v1523, %v1519
    %v1876 = vpack.c.b16 %v1528, %v1524
    %v1877 = vpack.c.b16 %v1529, %v1525
    %v1878 = vpack.c.b16 %v1530, %v1526
    %v1879 = vpack.c.b16 %v1531, %v1527
    %v1880 = vpack.c.b16 %v1536, %v1532
    %v1881 = vpack.c.b16 %v1537, %v1533
    %v1882 = vpack.c.b16 %v1538, %v1534
    %v1883 = vpack.c.b16 %v1539, %v1535
    %v1884 = vpack.c.b16 %v1544, %v1540
    %v1885 = vpack.c.b16 %v1545, %v1541
    %v1886 = vpack.c.b16 %v1546, %v1542
    %v1887 = vpack.c.b16 %v1547, %v1543
    %v1888 = vpack.c.b16 %v1552, %v1548
    %v1889 = vpack.c.b16 %v1553, %v1549
    %v1890 = vpack.c.b16 %v1554, %v1550
    %v1891 = vpack.c.b16 %v1555, %v1551
    %v1892 = vpack.c.b16 %v1560, %v1556
    %v1893 = vpack.c.b16 %v1561, %v1557
    %v1894 = vpack.c.b16 %v1562, %v1558
    %v1895 = vpack.c.b16 %v1563, %v1559
    %v1896 = vpack.c.b16 %v1568, %v1564
    %v1897 = vpack.c.b16 %v1569, %v1565
    %v1898 = vpack.c.b16 %v1570, %v1566
    %v1899 = vpack.c.b16 %v1571, %v1567
    %v1900 = vpack.c.b16 %v1576, %v1572
    %v1901 = vpack.c.b16 %v1577, %v1573
    %v1902 = vpack.c.b16 %v1578, %v1574
    %v1903 = vpack.c.b16 %v1579, %v1575
    %v1904 = vpack.c.b16 %v1584, %v1580
    %v1905 = vpack.c.b16 %v1585, %v1581
    %v1906 = vpack.c.b16 %v1586, %v1582
    %v1907 = vpack.c.b16 %v1587, %v1583
    %v1908 = vpack.c.b16 %v1592, %v1588
    %v1909 = vpack.c.b16 %v1593, %v1589
    %v1910 = vpack.c.b16 %v1594, %v1590
    %v1911 = vpack.c.b16 %v1595, %v1591
    %v1912 = vpack.c.b16 %v1600, %v1596
    %v1913 = vpack.c.b16 %v1601, %v1597
    %v1914 = vpack.c.b16 %v1602, %v1598
    %v1915 = vpack.c.b16 %v1603, %v1599
    %v1916 = vpack.c.b16 %v1608, %v1604
    %v1917 = vpack.c.b16 %v1609, %v1605
    %v1918 = vpack.c.b16 %v1610, %v1606
    %v1919 = vpack.c.b16 %v1611, %v1607
    %v1920 = vpack.c.b16 %v1616, %v1612
    %v1921 = vpack.c.b16 %v1617, %v1613
    %v1922 = vpack.c.b16 %v1618, %v1614
    %v1923 = vpack.c.b16 %v1619, %v1615
    %v1924 = vpack.c.b16 %v1624, %v1620
    %v1925 = vpack.c.b16 %v1625, %v1621
    %v1926 = vpack.c.b16 %v1626, %v1622
    %v1927 = vpack.c.b16 %v1627, %v1623
    %v1928 = vpack.c.b16 %v1632, %v1628
    %v1929 = vpack.c.b16 %v1633, %v1629
    %v1930 = vpack.c.b16 %v1634, %v1630
    %v1931 = vpack.c.b16 %v1635, %v1631
    %v1932 = vpack.c.b16 %v1640, %v1636
    %v1933 = vpack.c.b16 %v1641, %v1637
    %v1934 = vpack.c.b16 %v1642, %v1638
    %v1935 = vpack.c.b16 %v1643, %v1639
    %v1936 = vpack.c.b16 %v1648, %v1644
    %v1937 = vpack.c.b16 %v1649, %v1645
    %v1938 = vpack.c.b16 %v1650, %v1646
    %v1939 = vpack.c.b16 %v1651, %v1647
    %v1940 = vpack.c.b16 %v1656, %v1652
    %v1941 = vpack.c.b16 %v1657, %v1653
    %v1942 = vpack.c.b16 %v1658, %v1654
    %v1943 = vpack.c.b16 %v1659, %v1655
    %v1944 = vpack.c.b16 %v1664, %v1660
    %v1945 = vpack.c.b16 %v1665, %v1661
    %v1946 = vpack.c.b16 %v1666, %v1662
    %v1947 = vpack.c.b16 %v1667, %v1663
    %v1948 = vpack.c.b16 %v1672, %v1668
    %v1949 = vpack.c.b16 %v1673, %v1669
    %v1950 = vpack.c.b16 %v1674, %v1670
    %v1951 = vpack.c.b16 %v1675, %v1671
    %v1952 = vpack.c.b16 %v1680, %v1676
    %v1953 = vpack.c.b16 %v1681, %v1677
    %v1954 = vpack.c.b16 %v1682, %v1678
    %v1955 = vpack.c.b16 %v1683, %v1679
    %v1956 = vpack.c.b16 %v1688, %v1684
    %v1957 = vpack.c.b16 %v1689, %v1685
    %v1958 = vpack.c.b16 %v1690, %v1686
    %v1959 = vpack.c.b16 %v1691, %v1687
    %v1960 = vpack.c.b16 %v1696, %v1692
    %v1961 = vpack.c.b16 %v1697, %v1693
    %v1962 = vpack.c.b16 %v1698, %v1694
    %v1963 = vpack.c.b16 %v1699, %v1695
    %v1964 = vpack.c.b16 %v1704, %v1700
    %v1965 = vpack.c.b16 %v1705, %v1701
    %v1966 = vpack.c.b16 %v1706, %v1702
    %v1967 = vpack.c.b16 %v1707, %v1703
    %v1968 = vpack.c.b16 %v1712, %v1708
    %v1969 = vpack.c.b16 %v1713, %v1709
    %v1970 = vpack.c.b16 %v1714, %v1710
    %v1971 = vpack.c.b16 %v1715, %v1711
    %2228 = vmatprep.subr.bf16.mxu0 %v1717
    %2229 = vmatpush1.bf16.msra.mxu0 %v1716
    %2230 = vmatprep.subr.bf16.mxu0 %v1721
    %2231 = vmatpush1.bf16.msra.mxu0 %v1720
    %2232 = vmatprep.subr.bf16.mxu0 %v1725
    %2233 = vmatpush1.bf16.msra.mxu0 %v1724
    %2234 = vmatprep.subr.bf16.mxu0 %v1729
    %2235 = vmatpush1.bf16.msra.mxu0 %v1728
    %2236 = vmatprep.subr.bf16.mxu0 %v1733
    %2237 = vmatpush1.bf16.msra.mxu0 %v1732
    %2238 = vmatprep.subr.bf16.mxu0 %v1737
    %2239 = vmatpush1.bf16.msra.mxu0 %v1736
    %2240 = vmatprep.subr.bf16.mxu0 %v1741
    %2241 = vmatpush1.bf16.msra.mxu0 %v1740
    %2242 = vmatprep.subr.bf16.mxu0 %v1745
    %2243 = vmatpush1.bf16.msra.mxu0 %v1744
    %2244 = vmatprep.subr.bf16.mxu0 %v1749
    %2245 = vmatpush1.bf16.msra.mxu0 %v1748
    %2246 = vmatprep.subr.bf16.mxu0 %v1753
    %2247 = vmatpush1.bf16.msra.mxu0 %v1752
    %2248 = vmatprep.subr.bf16.mxu0 %v1757
    %2249 = vmatpush1.bf16.msra.mxu0 %v1756
    %2250 = vmatprep.subr.bf16.mxu0 %v1761
    %2251 = vmatpush1.bf16.msra.mxu0 %v1760
    %2252 = vmatprep.subr.bf16.mxu0 %v1765
    %2253 = vmatpush1.bf16.msra.mxu0 %v1764
    %2254 = vmatprep.subr.bf16.mxu0 %v1769
    %2255 = vmatpush1.bf16.msra.mxu0 %v1768
    %2256 = vmatprep.subr.bf16.mxu0 %v1773
    %2257 = vmatpush1.bf16.msra.mxu0 %v1772
    %2258 = vmatprep.subr.bf16.mxu0 %v1777
    %2259 = vmatpush1.bf16.msra.mxu0 %v1776
    %2260 = vmatprep.mubr.bf16.mxu0 %v663
    %2261 = vmatmul.mubr.bf16.gmra.mrb[0].mxu0 %v662
    %v2262 = vpop.f32.mrb[0].mxu0
    %v2263 = vadd.f32 %v931, %v2262
    %v2264 = vpop.f32.mrb[0].mxu0
    %v2265 = vadd.f32 %v935, %v2264
    %v2266 = vpop.f32.mrb[0].mxu0
    %v2267 = vadd.f32 %v931, %v2266
    %v2268 = vpop.f32.mrb[0].mxu0
    %v2269 = vadd.f32 %v935, %v2268
    %2270 = vdwg.mxu0
    %2271 = vmatprep.subr.bf16.mxu0 %v1781
    %2272 = vmatpush1.bf16.msra.mxu0 %v1780
    %2273 = vmatprep.subr.bf16.mxu0 %v1785
    %2274 = vmatpush1.bf16.msra.mxu0 %v1784
    %2275 = vmatprep.subr.bf16.mxu0 %v1789
    %2276 = vmatpush1.bf16.msra.mxu0 %v1788
    %2277 = vmatprep.subr.bf16.mxu0 %v1793
    %2278 = vmatpush1.bf16.msra.mxu0 %v1792
    %2279 = vmatprep.subr.bf16.mxu0 %v1797
    %2280 = vmatpush1.bf16.msra.mxu0 %v1796
    %2281 = vmatprep.subr.bf16.mxu0 %v1801
    %2282 = vmatpush1.bf16.msra.mxu0 %v1800
    %2283 = vmatprep.subr.bf16.mxu0 %v1805
    %2284 = vmatpush1.bf16.msra.mxu0 %v1804
    %2285 = vmatprep.subr.bf16.mxu0 %v1809
    %2286 = vmatpush1.bf16.msra.mxu0 %v1808
    %2287 = vmatprep.subr.bf16.mxu0 %v1813
    %2288 = vmatpush1.bf16.msra.mxu0 %v1812
    %2289 = vmatprep.subr.bf16.mxu0 %v1817
    %2290 = vmatpush1.bf16.msra.mxu0 %v1816
    %2291 = vmatprep.subr.bf16.mxu0 %v1821
    %2292 = vmatpush1.bf16.msra.mxu0 %v1820
    %2293 = vmatprep.subr.bf16.mxu0 %v1825
    %2294 = vmatpush1.bf16.msra.mxu0 %v1824
    %2295 = vmatprep.subr.bf16.mxu0 %v1829
    %2296 = vmatpush1.bf16.msra.mxu0 %v1828
    %2297 = vmatprep.subr.bf16.mxu0 %v1833
    %2298 = vmatpush1.bf16.msra.mxu0 %v1832
    %2299 = vmatprep.subr.bf16.mxu0 %v1837
    %2300 = vmatpush1.bf16.msra.mxu0 %v1836
    %2301 = vmatprep.subr.bf16.mxu0 %v1841
    %2302 = vmatpush1.bf16.msra.mxu0 %v1840
    %2303 = vmatprep.mubr.bf16.mxu0 %v665
    %2304 = vmatmul.mubr.bf16.gmra.mrb[0].mxu0 %v664
    %v2305 = vpop.f32.mrb[0].mxu0
    %v2306 = vadd.f32 %v2263, %v2305
    %v2307 = vpop.f32.mrb[0].mxu0
    %v2308 = vadd.f32 %v2265, %v2307
    %v2309 = vpop.f32.mrb[0].mxu0
    %v2310 = vadd.f32 %v2267, %v2309
    %v2311 = vpop.f32.mrb[0].mxu0
    %v2312 = vadd.f32 %v2269, %v2311
    %2313 = vdwg.mxu0
    %2314 = vmatprep.subr.bf16.mxu0 %v1845
    %2315 = vmatpush1.bf16.msra.mxu0 %v1844
    %2316 = vmatprep.subr.bf16.mxu0 %v1849
    %2317 = vmatpush1.bf16.msra.mxu0 %v1848
    %2318 = vmatprep.subr.bf16.mxu0 %v1853
    %2319 = vmatpush1.bf16.msra.mxu0 %v1852
    %2320 = vmatprep.subr.bf16.mxu0 %v1857
    %2321 = vmatpush1.bf16.msra.mxu0 %v1856
    %2322 = vmatprep.subr.bf16.mxu0 %v1861
    %2323 = vmatpush1.bf16.msra.mxu0 %v1860
    %2324 = vmatprep.subr.bf16.mxu0 %v1865
    %2325 = vmatpush1.bf16.msra.mxu0 %v1864
    %2326 = vmatprep.subr.bf16.mxu0 %v1869
    %2327 = vmatpush1.bf16.msra.mxu0 %v1868
    %2328 = vmatprep.subr.bf16.mxu0 %v1873
    %2329 = vmatpush1.bf16.msra.mxu0 %v1872
    %2330 = vmatprep.subr.bf16.mxu0 %v1877
    %2331 = vmatpush1.bf16.msra.mxu0 %v1876
    %2332 = vmatprep.subr.bf16.mxu0 %v1881
    %2333 = vmatpush1.bf16.msra.mxu0 %v1880
    %2334 = vmatprep.subr.bf16.mxu0 %v1885
    %2335 = vmatpush1.bf16.msra.mxu0 %v1884
    %2336 = vmatprep.subr.bf16.mxu0 %v1889
    %2337 = vmatpush1.bf16.msra.mxu0 %v1888
    %2338 = vmatprep.subr.bf16.mxu0 %v1893
    %2339 = vmatpush1.bf16.msra.mxu0 %v1892
    %2340 = vmatprep.subr.bf16.mxu0 %v1897
    %2341 = vmatpush1.bf16.msra.mxu0 %v1896
    %2342 = vmatprep.subr.bf16.mxu0 %v1901
    %2343 = vmatpush1.bf16.msra.mxu0 %v1900
    %2344 = vmatprep.subr.bf16.mxu0 %v1905
    %2345 = vmatpush1.bf16.msra.mxu0 %v1904
    %2346 = vmatprep.mubr.bf16.mxu0 %v667
    %2347 = vmatmul.mubr.bf16.gmra.mrb[0].mxu0 %v666
    %v2348 = vpop.f32.mrb[0].mxu0
    %v2349 = vadd.f32 %v2306, %v2348
    %v2350 = vpop.f32.mrb[0].mxu0
    %v2351 = vadd.f32 %v2308, %v2350
    %v2352 = vpop.f32.mrb[0].mxu0
    %v2353 = vadd.f32 %v2310, %v2352
    %v2354 = vpop.f32.mrb[0].mxu0
    %v2355 = vadd.f32 %v2312, %v2354
    %2356 = vdwg.mxu0
    %2357 = vmatprep.subr.bf16.mxu0 %v1909
    %2358 = vmatpush1.bf16.msra.mxu0 %v1908
    %2359 = vmatprep.subr.bf16.mxu0 %v1913
    %2360 = vmatpush1.bf16.msra.mxu0 %v1912
    %2361 = vmatprep.subr.bf16.mxu0 %v1917
    %2362 = vmatpush1.bf16.msra.mxu0 %v1916
    %2363 = vmatprep.subr.bf16.mxu0 %v1921
    %2364 = vmatpush1.bf16.msra.mxu0 %v1920
    %2365 = vmatprep.subr.bf16.mxu0 %v1925
    %2366 = vmatpush1.bf16.msra.mxu0 %v1924
    %2367 = vmatprep.subr.bf16.mxu0 %v1929
    %2368 = vmatpush1.bf16.msra.mxu0 %v1928
    %2369 = vmatprep.subr.bf16.mxu0 %v1933
    %2370 = vmatpush1.bf16.msra.mxu0 %v1932
    %2371 = vmatprep.subr.bf16.mxu0 %v1937
    %2372 = vmatpush1.bf16.msra.mxu0 %v1936
    %2373 = vmatprep.subr.bf16.mxu0 %v1941
    %2374 = vmatpush1.bf16.msra.mxu0 %v1940
    %2375 = vmatprep.subr.bf16.mxu0 %v1945
    %2376 = vmatpush1.bf16.msra.mxu0 %v1944
    %2377 = vmatprep.subr.bf16.mxu0 %v1949
    %2378 = vmatpush1.bf16.msra.mxu0 %v1948
    %2379 = vmatprep.subr.bf16.mxu0 %v1953
    %2380 = vmatpush1.bf16.msra.mxu0 %v1952
    %2381 = vmatprep.subr.bf16.mxu0 %v1957
    %2382 = vmatpush1.bf16.msra.mxu0 %v1956
    %2383 = vmatprep.subr.bf16.mxu0 %v1961
    %2384 = vmatpush1.bf16.msra.mxu0 %v1960
    %2385 = vmatprep.subr.bf16.mxu0 %v1965
    %2386 = vmatpush1.bf16.msra.mxu0 %v1964
    %2387 = vmatprep.subr.bf16.mxu0 %v1969
    %2388 = vmatpush1.bf16.msra.mxu0 %v1968
    %2389 = vmatprep.mubr.bf16.mxu0 %v669
    %2390 = vmatmul.mubr.bf16.gmra.mrb[0].mxu0 %v668
    %v2391 = vpop.f32.mrb[0].mxu0
    %v2392 = vadd.f32 %v2349, %v2391
    %v2393 = vpop.f32.mrb[0].mxu0
    %v2394 = vadd.f32 %v2351, %v2393
    %v2395 = vpop.f32.mrb[0].mxu0
    %v2396 = vadd.f32 %v2353, %v2395
    %v2397 = vpop.f32.mrb[0].mxu0
    %v2398 = vadd.f32 %v2355, %v2397
    %2399 = vdwg.mxu0
    %2400 = vmatprep.subr.bf16.mxu0 %v1719
    %2401 = vmatpush1.bf16.msra.mxu0 %v1718
    %2402 = vmatprep.subr.bf16.mxu0 %v1723
    %2403 = vmatpush1.bf16.msra.mxu0 %v1722
    %2404 = vmatprep.subr.bf16.mxu0 %v1727
    %2405 = vmatpush1.bf16.msra.mxu0 %v1726
    %2406 = vmatprep.subr.bf16.mxu0 %v1731
    %2407 = vmatpush1.bf16.msra.mxu0 %v1730
    %2408 = vmatprep.subr.bf16.mxu0 %v1735
    %2409 = vmatpush1.bf16.msra.mxu0 %v1734
    %2410 = vmatprep.subr.bf16.mxu0 %v1739
    %2411 = vmatpush1.bf16.msra.mxu0 %v1738
    %2412 = vmatprep.subr.bf16.mxu0 %v1743
    %2413 = vmatpush1.bf16.msra.mxu0 %v1742
    %2414 = vmatprep.subr.bf16.mxu0 %v1747
    %2415 = vmatpush1.bf16.msra.mxu0 %v1746
    %2416 = vmatprep.subr.bf16.mxu0 %v1751
    %2417 = vmatpush1.bf16.msra.mxu0 %v1750
    %2418 = vmatprep.subr.bf16.mxu0 %v1755
    %2419 = vmatpush1.bf16.msra.mxu0 %v1754
    %2420 = vmatprep.subr.bf16.mxu0 %v1759
    %2421 = vmatpush1.bf16.msra.mxu0 %v1758
    %2422 = vmatprep.subr.bf16.mxu0 %v1763
    %2423 = vmatpush1.bf16.msra.mxu0 %v1762
    %2424 = vmatprep.subr.bf16.mxu0 %v1767
    %2425 = vmatpush1.bf16.msra.mxu0 %v1766
    %2426 = vmatprep.subr.bf16.mxu0 %v1771
    %2427 = vmatpush1.bf16.msra.mxu0 %v1770
    %2428 = vmatprep.subr.bf16.mxu0 %v1775
    %2429 = vmatpush1.bf16.msra.mxu0 %v1774
    %2430 = vmatprep.subr.bf16.mxu0 %v1779
    %2431 = vmatpush1.bf16.msra.mxu0 %v1778
    %2432 = vmatprep.mubr.bf16.mxu0 %v663
    %2433 = vmatmul.mubr.bf16.gmra.mrb[0].mxu0 %v662
    %v2434 = vpop.f32.mrb[0].mxu0
    %v2435 = vadd.f32 %v939, %v2434
    %v2436 = vpop.f32.mrb[0].mxu0
    %v2437 = vadd.f32 %v943, %v2436
    %v2438 = vpop.f32.mrb[0].mxu0
    %v2439 = vadd.f32 %v939, %v2438
    %v2440 = vpop.f32.mrb[0].mxu0
    %v2441 = vadd.f32 %v943, %v2440
    %2442 = vdwg.mxu0
    %2443 = vmatprep.subr.bf16.mxu0 %v1783
    %2444 = vmatpush1.bf16.msra.mxu0 %v1782
    %2445 = vmatprep.subr.bf16.mxu0 %v1787
    %2446 = vmatpush1.bf16.msra.mxu0 %v1786
    %2447 = vmatprep.subr.bf16.mxu0 %v1791
    %2448 = vmatpush1.bf16.msra.mxu0 %v1790
    %2449 = vmatprep.subr.bf16.mxu0 %v1795
    %2450 = vmatpush1.bf16.msra.mxu0 %v1794
    %2451 = vmatprep.subr.bf16.mxu0 %v1799
    %2452 = vmatpush1.bf16.msra.mxu0 %v1798
    %2453 = vmatprep.subr.bf16.mxu0 %v1803
    %2454 = vmatpush1.bf16.msra.mxu0 %v1802
    %2455 = vmatprep.subr.bf16.mxu0 %v1807
    %2456 = vmatpush1.bf16.msra.mxu0 %v1806
    %2457 = vmatprep.subr.bf16.mxu0 %v1811
    %2458 = vmatpush1.bf16.msra.mxu0 %v1810
    %2459 = vmatprep.subr.bf16.mxu0 %v1815
    %2460 = vmatpush1.bf16.msra.mxu0 %v1814
    %2461 = vmatprep.subr.bf16.mxu0 %v1819
    %2462 = vmatpush1.bf16.msra.mxu0 %v1818
    %2463 = vmatprep.subr.bf16.mxu0 %v1823
    %2464 = vmatpush1.bf16.msra.mxu0 %v1822
    %2465 = vmatprep.subr.bf16.mxu0 %v1827
    %2466 = vmatpush1.bf16.msra.mxu0 %v1826
    %2467 = vmatprep.subr.bf16.mxu0 %v1831
    %2468 = vmatpush1.bf16.msra.mxu0 %v1830
    %2469 = vmatprep.subr.bf16.mxu0 %v1835
    %2470 = vmatpush1.bf16.msra.mxu0 %v1834
    %2471 = vmatprep.subr.bf16.mxu0 %v1839
    %2472 = vmatpush1.bf16.msra.mxu0 %v1838
    %2473 = vmatprep.subr.bf16.mxu0 %v1843
    %2474 = vmatpush1.bf16.msra.mxu0 %v1842
    %2475 = vmatprep.mubr.bf16.mxu0 %v665
    %2476 = vmatmul.mubr.bf16.gmra.mrb[0].mxu0 %v664
    %v2477 = vpop.f32.mrb[0].mxu0
    %v2478 = vadd.f32 %v2435, %v2477
    %v2479 = vpop.f32.mrb[0].mxu0
    %v2480 = vadd.f32 %v2437, %v2479
    %v2481 = vpop.f32.mrb[0].mxu0
    %v2482 = vadd.f32 %v2439, %v2481
    %v2483 = vpop.f32.mrb[0].mxu0
    %v2484 = vadd.f32 %v2441, %v2483
    %2485 = vdwg.mxu0
    %2486 = vmatprep.subr.bf16.mxu0 %v1847
    %2487 = vmatpush1.bf16.msra.mxu0 %v1846
    %2488 = vmatprep.subr.bf16.mxu0 %v1851
    %2489 = vmatpush1.bf16.msra.mxu0 %v1850
    %2490 = vmatprep.subr.bf16.mxu0 %v1855
    %2491 = vmatpush1.bf16.msra.mxu0 %v1854
    %2492 = vmatprep.subr.bf16.mxu0 %v1859
    %2493 = vmatpush1.bf16.msra.mxu0 %v1858
    %2494 = vmatprep.subr.bf16.mxu0 %v1863
    %2495 = vmatpush1.bf16.msra.mxu0 %v1862
    %2496 = vmatprep.subr.bf16.mxu0 %v1867
    %2497 = vmatpush1.bf16.msra.mxu0 %v1866
    %2498 = vmatprep.subr.bf16.mxu0 %v1871
    %2499 = vmatpush1.bf16.msra.mxu0 %v1870
    %2500 = vmatprep.subr.bf16.mxu0 %v1875
    %2501 = vmatpush1.bf16.msra.mxu0 %v1874
    %2502 = vmatprep.subr.bf16.mxu0 %v1879
    %2503 = vmatpush1.bf16.msra.mxu0 %v1878
    %2504 = vmatprep.subr.bf16.mxu0 %v1883
    %2505 = vmatpush1.bf16.msra.mxu0 %v1882
    %2506 = vmatprep.subr.bf16.mxu0 %v1887
    %2507 = vmatpush1.bf16.msra.mxu0 %v1886
    %2508 = vmatprep.subr.bf16.mxu0 %v1891
    %2509 = vmatpush1.bf16.msra.mxu0 %v1890
    %2510 = vmatprep.subr.bf16.mxu0 %v1895
    %2511 = vmatpush1.bf16.msra.mxu0 %v1894
    %2512 = vmatprep.subr.bf16.mxu0 %v1899
    %2513 = vmatpush1.bf16.msra.mxu0 %v1898
    %2514 = vmatprep.subr.bf16.mxu0 %v1903
    %2515 = vmatpush1.bf16.msra.mxu0 %v1902
    %2516 = vmatprep.subr.bf16.mxu0 %v1907
    %2517 = vmatpush1.bf16.msra.mxu0 %v1906
    %2518 = vmatprep.mubr.bf16.mxu0 %v667
    %2519 = vmatmul.mubr.bf16.gmra.mrb[0].mxu0 %v666
    %v2520 = vpop.f32.mrb[0].mxu0
    %v2521 = vadd.f32 %v2478, %v2520
    %v2522 = vpop.f32.mrb[0].mxu0
    %v2523 = vadd.f32 %v2480, %v2522
    %v2524 = vpop.f32.mrb[0].mxu0
    %v2525 = vadd.f32 %v2482, %v2524
    %v2526 = vpop.f32.mrb[0].mxu0
    %v2527 = vadd.f32 %v2484, %v2526
    %2528 = vdwg.mxu0
    %2529 = vmatprep.subr.bf16.mxu0 %v1911
    %2530 = vmatpush1.bf16.msra.mxu0 %v1910
    %2531 = vmatprep.subr.bf16.mxu0 %v1915
    %2532 = vmatpush1.bf16.msra.mxu0 %v1914
    %2533 = vmatprep.subr.bf16.mxu0 %v1919
    %2534 = vmatpush1.bf16.msra.mxu0 %v1918
    %2535 = vmatprep.subr.bf16.mxu0 %v1923
    %2536 = vmatpush1.bf16.msra.mxu0 %v1922
    %2537 = vmatprep.subr.bf16.mxu0 %v1927
    %2538 = vmatpush1.bf16.msra.mxu0 %v1926
    %2539 = vmatprep.subr.bf16.mxu0 %v1931
    %2540 = vmatpush1.bf16.msra.mxu0 %v1930
    %2541 = vmatprep.subr.bf16.mxu0 %v1935
    %2542 = vmatpush1.bf16.msra.mxu0 %v1934
    %2543 = vmatprep.subr.bf16.mxu0 %v1939
    %2544 = vmatpush1.bf16.msra.mxu0 %v1938
    %2545 = vmatprep.subr.bf16.mxu0 %v1943
    %2546 = vmatpush1.bf16.msra.mxu0 %v1942
    %2547 = vmatprep.subr.bf16.mxu0 %v1947
    %2548 = vmatpush1.bf16.msra.mxu0 %v1946
    %2549 = vmatprep.subr.bf16.mxu0 %v1951
    %2550 = vmatpush1.bf16.msra.mxu0 %v1950
    %2551 = vmatprep.subr.bf16.mxu0 %v1955
    %2552 = vmatpush1.bf16.msra.mxu0 %v1954
    %2553 = vmatprep.subr.bf16.mxu0 %v1959
    %2554 = vmatpush1.bf16.msra.mxu0 %v1958
    %2555 = vmatprep.subr.bf16.mxu0 %v1963
    %2556 = vmatpush1.bf16.msra.mxu0 %v1962
    %2557 = vmatprep.subr.bf16.mxu0 %v1967
    %2558 = vmatpush1.bf16.msra.mxu0 %v1966
    %2559 = vmatprep.subr.bf16.mxu0 %v1971
    %2560 = vmatpush1.bf16.msra.mxu0 %v1970
    %2561 = vmatprep.mubr.bf16.mxu0 %v669
    %2562 = vmatmul.mubr.bf16.gmra.mrb[0].mxu0 %v668
    %v2563 = vpop.f32.mrb[0].mxu0
    %v2564 = vadd.f32 %v2521, %v2563
    %v2565 = vpop.f32.mrb[0].mxu0
    %v2566 = vadd.f32 %v2523, %v2565
    %v2567 = vpop.f32.mrb[0].mxu0
    %v2568 = vadd.f32 %v2525, %v2567
    %v2569 = vpop.f32.mrb[0].mxu0
    %v2570 = vadd.f32 %v2527, %v2569
    %2571 = vdwg.mxu0
    %v2572 = vmax.f32 %v2392, 0.0
    %v2573 = vmax.f32 %v2394, 0.0
    %v2574 = vmax.f32 %v2564, 0.0
    %v2575 = vmax.f32 %v2566, 0.0
    %v2576 = vmax.f32 %v2396, 0.0
    %v2577 = vmax.f32 %v2398, 0.0
    %v2578 = vmax.f32 %v2568, 0.0
    %v2579 = vmax.f32 %v2570, 0.0
    %v2580 = vpack.c.bf16 %v2576, %v2572
    %v2581 = vpack.c.bf16 %v2577, %v2573
    %v2582 = vpack.c.bf16 %v2578, %v2574
    %v2583 = vpack.c.bf16 %v2579, %v2575
    %v2584 = vld [vmem:[#allocation6] sm:$0xff]
    %v2585 = vld [vmem:[#allocation6 + $0x8] sm:$0xff]
    %v2586 = vld [vmem:[#allocation6 + $0x10] sm:$0xff]
    %v2587 = vld [vmem:[#allocation6 + $0x18] sm:$0xff]
    %v2588 = vld [vmem:[#allocation6 + $0x20] sm:$0xff]
    %v2589 = vld [vmem:[#allocation6 + $0x28] sm:$0xff]
    %v2590 = vld [vmem:[#allocation6 + $0x30] sm:$0xff]
    %v2591 = vld [vmem:[#allocation6 + $0x38] sm:$0xff]
    %v2592 = vld [vmem:[#allocation6 + $0x40] sm:$0xff]
    %v2593 = vld [vmem:[#allocation6 + $0x48] sm:$0xff]
    %v2594 = vld [vmem:[#allocation6 + $0x50] sm:$0xff]
    %v2595 = vld [vmem:[#allocation6 + $0x58] sm:$0xff]
    %v2596 = vld [vmem:[#allocation6 + $0x60] sm:$0xff]
    %v2597 = vld [vmem:[#allocation6 + $0x68] sm:$0xff]
    %v2598 = vld [vmem:[#allocation6 + $0x70] sm:$0xff]
    %v2599 = vld [vmem:[#allocation6 + $0x78] sm:$0xff]
    %v2600 = vld [vmem:[#allocation6 + $0x80] sm:$0xff]
    %v2601 = vld [vmem:[#allocation6 + $0x88] sm:$0xff]
    %v2602 = vld [vmem:[#allocation6 + $0x90] sm:$0xff]
    %v2603 = vld [vmem:[#allocation6 + $0x98] sm:$0xff]
    %v2604 = vld [vmem:[#allocation6 + $0xa0] sm:$0xff]
    %v2605 = vld [vmem:[#allocation6 + $0xa8] sm:$0xff]
    %v2606 = vld [vmem:[#allocation6 + $0xb0] sm:$0xff]
    %v2607 = vld [vmem:[#allocation6 + $0xb8] sm:$0xff]
    %v2608 = vld [vmem:[#allocation6 + $0xc0] sm:$0xff]
    %v2609 = vld [vmem:[#allocation6 + $0xc8] sm:$0xff]
    %v2610 = vld [vmem:[#allocation6 + $0xd0] sm:$0xff]
    %v2611 = vld [vmem:[#allocation6 + $0xd8] sm:$0xff]
    %v2612 = vld [vmem:[#allocation6 + $0xe0] sm:$0xff]
    %v2613 = vld [vmem:[#allocation6 + $0xe8] sm:$0xff]
    %v2614 = vld [vmem:[#allocation6 + $0xf0] sm:$0xff]
    %v2615 = vld [vmem:[#allocation6 + $0xf8] sm:$0xff]
    %v2616 = vld [vmem:[#allocation6 + $0x100] sm:$0xff]
    %v2617 = vld [vmem:[#allocation6 + $0x108] sm:$0xff]
    %v2618 = vld [vmem:[#allocation6 + $0x110] sm:$0xff]
    %v2619 = vld [vmem:[#allocation6 + $0x118] sm:$0xff]
    %v2620 = vld [vmem:[#allocation6 + $0x120] sm:$0xff]
    %v2621 = vld [vmem:[#allocation6 + $0x128] sm:$0xff]
    %v2622 = vld [vmem:[#allocation6 + $0x130] sm:$0xff]
    %v2623 = vld [vmem:[#allocation6 + $0x138] sm:$0xff]
    %v2624 = vld [vmem:[#allocation6 + $0x140] sm:$0xff]
    %v2625 = vld [vmem:[#allocation6 + $0x148] sm:$0xff]
    %v2626 = vld [vmem:[#allocation6 + $0x150] sm:$0xff]
    %v2627 = vld [vmem:[#allocation6 + $0x158] sm:$0xff]
    %v2628 = vld [vmem:[#allocation6 + $0x160] sm:$0xff]
    %v2629 = vld [vmem:[#allocation6 + $0x168] sm:$0xff]
    %v2630 = vld [vmem:[#allocation6 + $0x170] sm:$0xff]
    %v2631 = vld [vmem:[#allocation6 + $0x178] sm:$0xff]
    %v2632 = vld [vmem:[#allocation6 + $0x180] sm:$0xff]
    %v2633 = vld [vmem:[#allocation6 + $0x188] sm:$0xff]
    %v2634 = vld [vmem:[#allocation6 + $0x190] sm:$0xff]
    %v2635 = vld [vmem:[#allocation6 + $0x198] sm:$0xff]
    %v2636 = vld [vmem:[#allocation6 + $0x1a0] sm:$0xff]
    %v2637 = vld [vmem:[#allocation6 + $0x1a8] sm:$0xff]
    %v2638 = vld [vmem:[#allocation6 + $0x1b0] sm:$0xff]
    %v2639 = vld [vmem:[#allocation6 + $0x1b8] sm:$0xff]
    %v2640 = vld [vmem:[#allocation6 + $0x1c0] sm:$0xff]
    %v2641 = vld [vmem:[#allocation6 + $0x1c8] sm:$0xff]
    %v2642 = vld [vmem:[#allocation6 + $0x1d0] sm:$0xff]
    %v2643 = vld [vmem:[#allocation6 + $0x1d8] sm:$0xff]
    %v2644 = vld [vmem:[#allocation6 + $0x1e0] sm:$0xff]
    %v2645 = vld [vmem:[#allocation6 + $0x1e8] sm:$0xff]
    %v2646 = vld [vmem:[#allocation6 + $0x1f0] sm:$0xff]
    %v2647 = vld [vmem:[#allocation6 + $0x1f8] sm:$0xff]
    %v2648 = vld [vmem:[#allocation6 + $0x200] sm:$0xff]
    %v2649 = vld [vmem:[#allocation6 + $0x208] sm:$0xff]
    %v2650 = vld [vmem:[#allocation6 + $0x210] sm:$0xff]
    %v2651 = vld [vmem:[#allocation6 + $0x218] sm:$0xff]
    %v2652 = vld [vmem:[#allocation6 + $0x220] sm:$0xff]
    %v2653 = vld [vmem:[#allocation6 + $0x228] sm:$0xff]
    %v2654 = vld [vmem:[#allocation6 + $0x230] sm:$0xff]
    %v2655 = vld [vmem:[#allocation6 + $0x238] sm:$0xff]
    %v2656 = vld [vmem:[#allocation6 + $0x240] sm:$0xff]
    %v2657 = vld [vmem:[#allocation6 + $0x248] sm:$0xff]
    %v2658 = vld [vmem:[#allocation6 + $0x250] sm:$0xff]
    %v2659 = vld [vmem:[#allocation6 + $0x258] sm:$0xff]
    %v2660 = vld [vmem:[#allocation6 + $0x260] sm:$0xff]
    %v2661 = vld [vmem:[#allocation6 + $0x268] sm:$0xff]
    %v2662 = vld [vmem:[#allocation6 + $0x270] sm:$0xff]
    %v2663 = vld [vmem:[#allocation6 + $0x278] sm:$0xff]
    %v2664 = vld [vmem:[#allocation6 + $0x280] sm:$0xff]
    %v2665 = vld [vmem:[#allocation6 + $0x288] sm:$0xff]
    %v2666 = vld [vmem:[#allocation6 + $0x290] sm:$0xff]
    %v2667 = vld [vmem:[#allocation6 + $0x298] sm:$0xff]
    %v2668 = vld [vmem:[#allocation6 + $0x2a0] sm:$0xff]
    %v2669 = vld [vmem:[#allocation6 + $0x2a8] sm:$0xff]
    %v2670 = vld [vmem:[#allocation6 + $0x2b0] sm:$0xff]
    %v2671 = vld [vmem:[#allocation6 + $0x2b8] sm:$0xff]
    %v2672 = vld [vmem:[#allocation6 + $0x2c0] sm:$0xff]
    %v2673 = vld [vmem:[#allocation6 + $0x2c8] sm:$0xff]
    %v2674 = vld [vmem:[#allocation6 + $0x2d0] sm:$0xff]
    %v2675 = vld [vmem:[#allocation6 + $0x2d8] sm:$0xff]
    %v2676 = vld [vmem:[#allocation6 + $0x2e0] sm:$0xff]
    %v2677 = vld [vmem:[#allocation6 + $0x2e8] sm:$0xff]
    %v2678 = vld [vmem:[#allocation6 + $0x2f0] sm:$0xff]
    %v2679 = vld [vmem:[#allocation6 + $0x2f8] sm:$0xff]
    %v2680 = vld [vmem:[#allocation6 + $0x300] sm:$0xff]
    %v2681 = vld [vmem:[#allocation6 + $0x308] sm:$0xff]
    %v2682 = vld [vmem:[#allocation6 + $0x310] sm:$0xff]
    %v2683 = vld [vmem:[#allocation6 + $0x318] sm:$0xff]
    %v2684 = vld [vmem:[#allocation6 + $0x320] sm:$0xff]
    %v2685 = vld [vmem:[#allocation6 + $0x328] sm:$0xff]
    %v2686 = vld [vmem:[#allocation6 + $0x330] sm:$0xff]
    %v2687 = vld [vmem:[#allocation6 + $0x338] sm:$0xff]
    %v2688 = vld [vmem:[#allocation6 + $0x340] sm:$0xff]
    %v2689 = vld [vmem:[#allocation6 + $0x348] sm:$0xff]
    %v2690 = vld [vmem:[#allocation6 + $0x350] sm:$0xff]
    %v2691 = vld [vmem:[#allocation6 + $0x358] sm:$0xff]
    %v2692 = vld [vmem:[#allocation6 + $0x360] sm:$0xff]
    %v2693 = vld [vmem:[#allocation6 + $0x368] sm:$0xff]
    %v2694 = vld [vmem:[#allocation6 + $0x370] sm:$0xff]
    %v2695 = vld [vmem:[#allocation6 + $0x378] sm:$0xff]
    %v2696 = vld [vmem:[#allocation6 + $0x380] sm:$0xff]
    %v2697 = vld [vmem:[#allocation6 + $0x388] sm:$0xff]
    %v2698 = vld [vmem:[#allocation6 + $0x390] sm:$0xff]
    %v2699 = vld [vmem:[#allocation6 + $0x398] sm:$0xff]
    %v2700 = vld [vmem:[#allocation6 + $0x3a0] sm:$0xff]
    %v2701 = vld [vmem:[#allocation6 + $0x3a8] sm:$0xff]
    %v2702 = vld [vmem:[#allocation6 + $0x3b0] sm:$0xff]
    %v2703 = vld [vmem:[#allocation6 + $0x3b8] sm:$0xff]
    %v2704 = vld [vmem:[#allocation6 + $0x3c0] sm:$0xff]
    %v2705 = vld [vmem:[#allocation6 + $0x3c8] sm:$0xff]
    %v2706 = vld [vmem:[#allocation6 + $0x3d0] sm:$0xff]
    %v2707 = vld [vmem:[#allocation6 + $0x3d8] sm:$0xff]
    %v2708 = vld [vmem:[#allocation6 + $0x3e0] sm:$0xff]
    %v2709 = vld [vmem:[#allocation6 + $0x3e8] sm:$0xff]
    %v2710 = vld [vmem:[#allocation6 + $0x3f0] sm:$0xff]
    %v2711 = vld [vmem:[#allocation6 + $0x3f8] sm:$0xff]
    %v2712 = vld [vmem:[%s6] sm:$0xf]
    %v2714 = vlaneseq
    %v2715 = vshrl.u32 %v2714, 7
    %v2716 = vsub.s32 0, %v2715
    %v2717 = vrot.slane %v2712, %v2716
    %v2718 = vlaneseq
    %v2719 = vshrl.u32 %v2718, 7
    %v2720 = vsub.s32 1, %v2719
    %v2721 = vrot.slane %v2712, %v2720
    %v2722 = vlaneseq
    %v2723 = vshrl.u32 %v2722, 7
    %v2724 = vsub.s32 2, %v2723
    %v2725 = vrot.slane %v2712, %v2724
    %v2726 = vlaneseq
    %v2727 = vshrl.u32 %v2726, 7
    %v2728 = vsub.s32 3, %v2727
    %v2729 = vrot.slane %v2712, %v2728
    %v2862 = vunpack.c.l.b16 %v2584
    %v2863 = vunpack.c.h.b16 %v2584
    %v2864 = vunpack.c.l.b16 %v2585
    %v2865 = vunpack.c.h.b16 %v2585
    %v2866 = vunpack.c.l.b16 %v2586
    %v2867 = vunpack.c.h.b16 %v2586
    %v2868 = vunpack.c.l.b16 %v2587
    %v2869 = vunpack.c.h.b16 %v2587
    %v2870 = vunpack.c.l.b16 %v2588
    %v2871 = vunpack.c.h.b16 %v2588
    %v2872 = vunpack.c.l.b16 %v2589
    %v2873 = vunpack.c.h.b16 %v2589
    %v2874 = vunpack.c.l.b16 %v2590
    %v2875 = vunpack.c.h.b16 %v2590
    %v2876 = vunpack.c.l.b16 %v2591
    %v2877 = vunpack.c.h.b16 %v2591
    %v2878 = vunpack.c.l.b16 %v2592
    %v2879 = vunpack.c.h.b16 %v2592
    %v2880 = vunpack.c.l.b16 %v2593
    %v2881 = vunpack.c.h.b16 %v2593
    %v2882 = vunpack.c.l.b16 %v2594
    %v2883 = vunpack.c.h.b16 %v2594
    %v2884 = vunpack.c.l.b16 %v2595
    %v2885 = vunpack.c.h.b16 %v2595
    %v2886 = vunpack.c.l.b16 %v2596
    %v2887 = vunpack.c.h.b16 %v2596
    %v2888 = vunpack.c.l.b16 %v2597
    %v2889 = vunpack.c.h.b16 %v2597
    %v2890 = vunpack.c.l.b16 %v2598
    %v2891 = vunpack.c.h.b16 %v2598
    %v2892 = vunpack.c.l.b16 %v2599
    %v2893 = vunpack.c.h.b16 %v2599
    %v2894 = vunpack.c.l.b16 %v2600
    %v2895 = vunpack.c.h.b16 %v2600
    %v2896 = vunpack.c.l.b16 %v2601
    %v2897 = vunpack.c.h.b16 %v2601
    %v2898 = vunpack.c.l.b16 %v2602
    %v2899 = vunpack.c.h.b16 %v2602
    %v2900 = vunpack.c.l.b16 %v2603
    %v2901 = vunpack.c.h.b16 %v2603
    %v2902 = vunpack.c.l.b16 %v2604
    %v2903 = vunpack.c.h.b16 %v2604
    %v2904 = vunpack.c.l.b16 %v2605
    %v2905 = vunpack.c.h.b16 %v2605
    %v2906 = vunpack.c.l.b16 %v2606
    %v2907 = vunpack.c.h.b16 %v2606
    %v2908 = vunpack.c.l.b16 %v2607
    %v2909 = vunpack.c.h.b16 %v2607
    %v2910 = vunpack.c.l.b16 %v2608
    %v2911 = vunpack.c.h.b16 %v2608
    %v2912 = vunpack.c.l.b16 %v2609
    %v2913 = vunpack.c.h.b16 %v2609
    %v2914 = vunpack.c.l.b16 %v2610
    %v2915 = vunpack.c.h.b16 %v2610
    %v2916 = vunpack.c.l.b16 %v2611
    %v2917 = vunpack.c.h.b16 %v2611
    %v2918 = vunpack.c.l.b16 %v2612
    %v2919 = vunpack.c.h.b16 %v2612
    %v2920 = vunpack.c.l.b16 %v2613
    %v2921 = vunpack.c.h.b16 %v2613
    %v2922 = vunpack.c.l.b16 %v2614
    %v2923 = vunpack.c.h.b16 %v2614
    %v2924 = vunpack.c.l.b16 %v2615
    %v2925 = vunpack.c.h.b16 %v2615
    %v2926 = vunpack.c.l.b16 %v2616
    %v2927 = vunpack.c.h.b16 %v2616
    %v2928 = vunpack.c.l.b16 %v2617
    %v2929 = vunpack.c.h.b16 %v2617
    %v2930 = vunpack.c.l.b16 %v2618
    %v2931 = vunpack.c.h.b16 %v2618
    %v2932 = vunpack.c.l.b16 %v2619
    %v2933 = vunpack.c.h.b16 %v2619
    %v2934 = vunpack.c.l.b16 %v2620
    %v2935 = vunpack.c.h.b16 %v2620
    %v2936 = vunpack.c.l.b16 %v2621
    %v2937 = vunpack.c.h.b16 %v2621
    %v2938 = vunpack.c.l.b16 %v2622
    %v2939 = vunpack.c.h.b16 %v2622
    %v2940 = vunpack.c.l.b16 %v2623
    %v2941 = vunpack.c.h.b16 %v2623
    %v2942 = vunpack.c.l.b16 %v2624
    %v2943 = vunpack.c.h.b16 %v2624
    %v2944 = vunpack.c.l.b16 %v2625
    %v2945 = vunpack.c.h.b16 %v2625
    %v2946 = vunpack.c.l.b16 %v2626
    %v2947 = vunpack.c.h.b16 %v2626
    %v2948 = vunpack.c.l.b16 %v2627
    %v2949 = vunpack.c.h.b16 %v2627
    %v2950 = vunpack.c.l.b16 %v2628
    %v2951 = vunpack.c.h.b16 %v2628
    %v2952 = vunpack.c.l.b16 %v2629
    %v2953 = vunpack.c.h.b16 %v2629
    %v2954 = vunpack.c.l.b16 %v2630
    %v2955 = vunpack.c.h.b16 %v2630
    %v2956 = vunpack.c.l.b16 %v2631
    %v2957 = vunpack.c.h.b16 %v2631
    %v2958 = vunpack.c.l.b16 %v2632
    %v2959 = vunpack.c.h.b16 %v2632
    %v2960 = vunpack.c.l.b16 %v2633
    %v2961 = vunpack.c.h.b16 %v2633
    %v2962 = vunpack.c.l.b16 %v2634
    %v2963 = vunpack.c.h.b16 %v2634
    %v2964 = vunpack.c.l.b16 %v2635
    %v2965 = vunpack.c.h.b16 %v2635
    %v2966 = vunpack.c.l.b16 %v2636
    %v2967 = vunpack.c.h.b16 %v2636
    %v2968 = vunpack.c.l.b16 %v2637
    %v2969 = vunpack.c.h.b16 %v2637
    %v2970 = vunpack.c.l.b16 %v2638
    %v2971 = vunpack.c.h.b16 %v2638
    %v2972 = vunpack.c.l.b16 %v2639
    %v2973 = vunpack.c.h.b16 %v2639
    %v2974 = vunpack.c.l.b16 %v2640
    %v2975 = vunpack.c.h.b16 %v2640
    %v2976 = vunpack.c.l.b16 %v2641
    %v2977 = vunpack.c.h.b16 %v2641
    %v2978 = vunpack.c.l.b16 %v2642
    %v2979 = vunpack.c.h.b16 %v2642
    %v2980 = vunpack.c.l.b16 %v2643
    %v2981 = vunpack.c.h.b16 %v2643
    %v2982 = vunpack.c.l.b16 %v2644
    %v2983 = vunpack.c.h.b16 %v2644
    %v2984 = vunpack.c.l.b16 %v2645
    %v2985 = vunpack.c.h.b16 %v2645
    %v2986 = vunpack.c.l.b16 %v2646
    %v2987 = vunpack.c.h.b16 %v2646
    %v2988 = vunpack.c.l.b16 %v2647
    %v2989 = vunpack.c.h.b16 %v2647
    %v2990 = vunpack.c.l.b16 %v2648
    %v2991 = vunpack.c.h.b16 %v2648
    %v2992 = vunpack.c.l.b16 %v2649
    %v2993 = vunpack.c.h.b16 %v2649
    %v2994 = vunpack.c.l.b16 %v2650
    %v2995 = vunpack.c.h.b16 %v2650
    %v2996 = vunpack.c.l.b16 %v2651
    %v2997 = vunpack.c.h.b16 %v2651
    %v2998 = vunpack.c.l.b16 %v2652
    %v2999 = vunpack.c.h.b16 %v2652
    %v3000 = vunpack.c.l.b16 %v2653
    %v3001 = vunpack.c.h.b16 %v2653
    %v3002 = vunpack.c.l.b16 %v2654
    %v3003 = vunpack.c.h.b16 %v2654
    %v3004 = vunpack.c.l.b16 %v2655
    %v3005 = vunpack.c.h.b16 %v2655
    %v3006 = vunpack.c.l.b16 %v2656
    %v3007 = vunpack.c.h.b16 %v2656
    %v3008 = vunpack.c.l.b16 %v2657
    %v3009 = vunpack.c.h.b16 %v2657
    %v3010 = vunpack.c.l.b16 %v2658
    %v3011 = vunpack.c.h.b16 %v2658
    %v3012 = vunpack.c.l.b16 %v2659
    %v3013 = vunpack.c.h.b16 %v2659
    %v3014 = vunpack.c.l.b16 %v2660
    %v3015 = vunpack.c.h.b16 %v2660
    %v3016 = vunpack.c.l.b16 %v2661
    %v3017 = vunpack.c.h.b16 %v2661
    %v3018 = vunpack.c.l.b16 %v2662
    %v3019 = vunpack.c.h.b16 %v2662
    %v3020 = vunpack.c.l.b16 %v2663
    %v3021 = vunpack.c.h.b16 %v2663
    %v3022 = vunpack.c.l.b16 %v2664
    %v3023 = vunpack.c.h.b16 %v2664
    %v3024 = vunpack.c.l.b16 %v2665
    %v3025 = vunpack.c.h.b16 %v2665
    %v3026 = vunpack.c.l.b16 %v2666
    %v3027 = vunpack.c.h.b16 %v2666
    %v3028 = vunpack.c.l.b16 %v2667
    %v3029 = vunpack.c.h.b16 %v2667
    %v3030 = vunpack.c.l.b16 %v2668
    %v3031 = vunpack.c.h.b16 %v2668
    %v3032 = vunpack.c.l.b16 %v2669
    %v3033 = vunpack.c.h.b16 %v2669
    %v3034 = vunpack.c.l.b16 %v2670
    %v3035 = vunpack.c.h.b16 %v2670
    %v3036 = vunpack.c.l.b16 %v2671
    %v3037 = vunpack.c.h.b16 %v2671
    %v3038 = vunpack.c.l.b16 %v2672
    %v3039 = vunpack.c.h.b16 %v2672
    %v3040 = vunpack.c.l.b16 %v2673
    %v3041 = vunpack.c.h.b16 %v2673
    %v3042 = vunpack.c.l.b16 %v2674
    %v3043 = vunpack.c.h.b16 %v2674
    %v3044 = vunpack.c.l.b16 %v2675
    %v3045 = vunpack.c.h.b16 %v2675
    %v3046 = vunpack.c.l.b16 %v2676
    %v3047 = vunpack.c.h.b16 %v2676
    %v3048 = vunpack.c.l.b16 %v2677
    %v3049 = vunpack.c.h.b16 %v2677
    %v3050 = vunpack.c.l.b16 %v2678
    %v3051 = vunpack.c.h.b16 %v2678
    %v3052 = vunpack.c.l.b16 %v2679
    %v3053 = vunpack.c.h.b16 %v2679
    %v3054 = vunpack.c.l.b16 %v2680
    %v3055 = vunpack.c.h.b16 %v2680
    %v3056 = vunpack.c.l.b16 %v2681
    %v3057 = vunpack.c.h.b16 %v2681
    %v3058 = vunpack.c.l.b16 %v2682
    %v3059 = vunpack.c.h.b16 %v2682
    %v3060 = vunpack.c.l.b16 %v2683
    %v3061 = vunpack.c.h.b16 %v2683
    %v3062 = vunpack.c.l.b16 %v2684
    %v3063 = vunpack.c.h.b16 %v2684
    %v3064 = vunpack.c.l.b16 %v2685
    %v3065 = vunpack.c.h.b16 %v2685
    %v3066 = vunpack.c.l.b16 %v2686
    %v3067 = vunpack.c.h.b16 %v2686
    %v3068 = vunpack.c.l.b16 %v2687
    %v3069 = vunpack.c.h.b16 %v2687
    %v3070 = vunpack.c.l.b16 %v2688
    %v3071 = vunpack.c.h.b16 %v2688
    %v3072 = vunpack.c.l.b16 %v2689
    %v3073 = vunpack.c.h.b16 %v2689
    %v3074 = vunpack.c.l.b16 %v2690
    %v3075 = vunpack.c.h.b16 %v2690
    %v3076 = vunpack.c.l.b16 %v2691
    %v3077 = vunpack.c.h.b16 %v2691
    %v3078 = vunpack.c.l.b16 %v2692
    %v3079 = vunpack.c.h.b16 %v2692
    %v3080 = vunpack.c.l.b16 %v2693
    %v3081 = vunpack.c.h.b16 %v2693
    %v3082 = vunpack.c.l.b16 %v2694
    %v3083 = vunpack.c.h.b16 %v2694
    %v3084 = vunpack.c.l.b16 %v2695
    %v3085 = vunpack.c.h.b16 %v2695
    %v3086 = vunpack.c.l.b16 %v2696
    %v3087 = vunpack.c.h.b16 %v2696
    %v3088 = vunpack.c.l.b16 %v2697
    %v3089 = vunpack.c.h.b16 %v2697
    %v3090 = vunpack.c.l.b16 %v2698
    %v3091 = vunpack.c.h.b16 %v2698
    %v3092 = vunpack.c.l.b16 %v2699
    %v3093 = vunpack.c.h.b16 %v2699
    %v3094 = vunpack.c.l.b16 %v2700
    %v3095 = vunpack.c.h.b16 %v2700
    %v3096 = vunpack.c.l.b16 %v2701
    %v3097 = vunpack.c.h.b16 %v2701
    %v3098 = vunpack.c.l.b16 %v2702
    %v3099 = vunpack.c.h.b16 %v2702
    %v3100 = vunpack.c.l.b16 %v2703
    %v3101 = vunpack.c.h.b16 %v2703
    %v3102 = vunpack.c.l.b16 %v2704
    %v3103 = vunpack.c.h.b16 %v2704
    %v3104 = vunpack.c.l.b16 %v2705
    %v3105 = vunpack.c.h.b16 %v2705
    %v3106 = vunpack.c.l.b16 %v2706
    %v3107 = vunpack.c.h.b16 %v2706
    %v3108 = vunpack.c.l.b16 %v2707
    %v3109 = vunpack.c.h.b16 %v2707
    %v3110 = vunpack.c.l.b16 %v2708
    %v3111 = vunpack.c.h.b16 %v2708
    %v3112 = vunpack.c.l.b16 %v2709
    %v3113 = vunpack.c.h.b16 %v2709
    %v3114 = vunpack.c.l.b16 %v2710
    %v3115 = vunpack.c.h.b16 %v2710
    %v3116 = vunpack.c.l.b16 %v2711
    %v3117 = vunpack.c.h.b16 %v2711
    %v3118 = vpack.c.b16 %v2866, %v2862
    %v3119 = vpack.c.b16 %v2867, %v2863
    %v3120 = vpack.c.b16 %v2868, %v2864
    %v3121 = vpack.c.b16 %v2869, %v2865
    %v3122 = vpack.c.b16 %v2874, %v2870
    %v3123 = vpack.c.b16 %v2875, %v2871
    %v3124 = vpack.c.b16 %v2876, %v2872
    %v3125 = vpack.c.b16 %v2877, %v2873
    %v3126 = vpack.c.b16 %v2882, %v2878
    %v3127 = vpack.c.b16 %v2883, %v2879
    %v3128 = vpack.c.b16 %v2884, %v2880
    %v3129 = vpack.c.b16 %v2885, %v2881
    %v3130 = vpack.c.b16 %v2890, %v2886
    %v3131 = vpack.c.b16 %v2891, %v2887
    %v3132 = vpack.c.b16 %v2892, %v2888
    %v3133 = vpack.c.b16 %v2893, %v2889
    %v3134 = vpack.c.b16 %v2898, %v2894
    %v3135 = vpack.c.b16 %v2899, %v2895
    %v3136 = vpack.c.b16 %v2900, %v2896
    %v3137 = vpack.c.b16 %v2901, %v2897
    %v3138 = vpack.c.b16 %v2906, %v2902
    %v3139 = vpack.c.b16 %v2907, %v2903
    %v3140 = vpack.c.b16 %v2908, %v2904
    %v3141 = vpack.c.b16 %v2909, %v2905
    %v3142 = vpack.c.b16 %v2914, %v2910
    %v3143 = vpack.c.b16 %v2915, %v2911
    %v3144 = vpack.c.b16 %v2916, %v2912
    %v3145 = vpack.c.b16 %v2917, %v2913
    %v3146 = vpack.c.b16 %v2922, %v2918
    %v3147 = vpack.c.b16 %v2923, %v2919
    %v3148 = vpack.c.b16 %v2924, %v2920
    %v3149 = vpack.c.b16 %v2925, %v2921
    %v3150 = vpack.c.b16 %v2930, %v2926
    %v3151 = vpack.c.b16 %v2931, %v2927
    %v3152 = vpack.c.b16 %v2932, %v2928
    %v3153 = vpack.c.b16 %v2933, %v2929
    %v3154 = vpack.c.b16 %v2938, %v2934
    %v3155 = vpack.c.b16 %v2939, %v2935
    %v3156 = vpack.c.b16 %v2940, %v2936
    %v3157 = vpack.c.b16 %v2941, %v2937
    %v3158 = vpack.c.b16 %v2946, %v2942
    %v3159 = vpack.c.b16 %v2947, %v2943
    %v3160 = vpack.c.b16 %v2948, %v2944
    %v3161 = vpack.c.b16 %v2949, %v2945
    %v3162 = vpack.c.b16 %v2954, %v2950
    %v3163 = vpack.c.b16 %v2955, %v2951
    %v3164 = vpack.c.b16 %v2956, %v2952
    %v3165 = vpack.c.b16 %v2957, %v2953
    %v3166 = vpack.c.b16 %v2962, %v2958
    %v3167 = vpack.c.b16 %v2963, %v2959
    %v3168 = vpack.c.b16 %v2964, %v2960
    %v3169 = vpack.c.b16 %v2965, %v2961
    %v3170 = vpack.c.b16 %v2970, %v2966
    %v3171 = vpack.c.b16 %v2971, %v2967
    %v3172 = vpack.c.b16 %v2972, %v2968
    %v3173 = vpack.c.b16 %v2973, %v2969
    %v3174 = vpack.c.b16 %v2978, %v2974
    %v3175 = vpack.c.b16 %v2979, %v2975
    %v3176 = vpack.c.b16 %v2980, %v2976
    %v3177 = vpack.c.b16 %v2981, %v2977
    %v3178 = vpack.c.b16 %v2986, %v2982
    %v3179 = vpack.c.b16 %v2987, %v2983
    %v3180 = vpack.c.b16 %v2988, %v2984
    %v3181 = vpack.c.b16 %v2989, %v2985
    %v3182 = vpack.c.b16 %v2994, %v2990
    %v3183 = vpack.c.b16 %v2995, %v2991
    %v3184 = vpack.c.b16 %v2996, %v2992
    %v3185 = vpack.c.b16 %v2997, %v2993
    %v3186 = vpack.c.b16 %v3002, %v2998
    %v3187 = vpack.c.b16 %v3003, %v2999
    %v3188 = vpack.c.b16 %v3004, %v3000
    %v3189 = vpack.c.b16 %v3005, %v3001
    %v3190 = vpack.c.b16 %v3010, %v3006
    %v3191 = vpack.c.b16 %v3011, %v3007
    %v3192 = vpack.c.b16 %v3012, %v3008
    %v3193 = vpack.c.b16 %v3013, %v3009
    %v3194 = vpack.c.b16 %v3018, %v3014
    %v3195 = vpack.c.b16 %v3019, %v3015
    %v3196 = vpack.c.b16 %v3020, %v3016
    %v3197 = vpack.c.b16 %v3021, %v3017
    %v3198 = vpack.c.b16 %v3026, %v3022
    %v3199 = vpack.c.b16 %v3027, %v3023
    %v3200 = vpack.c.b16 %v3028, %v3024
    %v3201 = vpack.c.b16 %v3029, %v3025
    %v3202 = vpack.c.b16 %v3034, %v3030
    %v3203 = vpack.c.b16 %v3035, %v3031
    %v3204 = vpack.c.b16 %v3036, %v3032
    %v3205 = vpack.c.b16 %v3037, %v3033
    %v3206 = vpack.c.b16 %v3042, %v3038
    %v3207 = vpack.c.b16 %v3043, %v3039
    %v3208 = vpack.c.b16 %v3044, %v3040
    %v3209 = vpack.c.b16 %v3045, %v3041
    %v3210 = vpack.c.b16 %v3050, %v3046
    %v3211 = vpack.c.b16 %v3051, %v3047
    %v3212 = vpack.c.b16 %v3052, %v3048
    %v3213 = vpack.c.b16 %v3053, %v3049
    %v3214 = vpack.c.b16 %v3058, %v3054
    %v3215 = vpack.c.b16 %v3059, %v3055
    %v3216 = vpack.c.b16 %v3060, %v3056
    %v3217 = vpack.c.b16 %v3061, %v3057
    %v3218 = vpack.c.b16 %v3066, %v3062
    %v3219 = vpack.c.b16 %v3067, %v3063
    %v3220 = vpack.c.b16 %v3068, %v3064
    %v3221 = vpack.c.b16 %v3069, %v3065
    %v3222 = vpack.c.b16 %v3074, %v3070
    %v3223 = vpack.c.b16 %v3075, %v3071
    %v3224 = vpack.c.b16 %v3076, %v3072
    %v3225 = vpack.c.b16 %v3077, %v3073
    %v3226 = vpack.c.b16 %v3082, %v3078
    %v3227 = vpack.c.b16 %v3083, %v3079
    %v3228 = vpack.c.b16 %v3084, %v3080
    %v3229 = vpack.c.b16 %v3085, %v3081
    %v3230 = vpack.c.b16 %v3090, %v3086
    %v3231 = vpack.c.b16 %v3091, %v3087
    %v3232 = vpack.c.b16 %v3092, %v3088
    %v3233 = vpack.c.b16 %v3093, %v3089
    %v3234 = vpack.c.b16 %v3098, %v3094
    %v3235 = vpack.c.b16 %v3099, %v3095
    %v3236 = vpack.c.b16 %v3100, %v3096
    %v3237 = vpack.c.b16 %v3101, %v3097
    %v3238 = vpack.c.b16 %v3106, %v3102
    %v3239 = vpack.c.b16 %v3107, %v3103
    %v3240 = vpack.c.b16 %v3108, %v3104
    %v3241 = vpack.c.b16 %v3109, %v3105
    %v3242 = vpack.c.b16 %v3114, %v3110
    %v3243 = vpack.c.b16 %v3115, %v3111
    %v3244 = vpack.c.b16 %v3116, %v3112
    %v3245 = vpack.c.b16 %v3117, %v3113
    %3374 = vmatprep.subr.bf16.mxu0 %v3119
    %3375 = vmatpush1.bf16.msra.mxu0 %v3118
    %3376 = vmatprep.subr.bf16.mxu0 %v3123
    %3377 = vmatpush1.bf16.msra.mxu0 %v3122
    %3378 = vmatprep.subr.bf16.mxu0 %v3127
    %3379 = vmatpush1.bf16.msra.mxu0 %v3126
    %3380 = vmatprep.subr.bf16.mxu0 %v3131
    %3381 = vmatpush1.bf16.msra.mxu0 %v3130
    %3382 = vmatprep.subr.bf16.mxu0 %v3135
    %3383 = vmatpush1.bf16.msra.mxu0 %v3134
    %3384 = vmatprep.subr.bf16.mxu0 %v3139
    %3385 = vmatpush1.bf16.msra.mxu0 %v3138
    %3386 = vmatprep.subr.bf16.mxu0 %v3143
    %3387 = vmatpush1.bf16.msra.mxu0 %v3142
    %3388 = vmatprep.subr.bf16.mxu0 %v3147
    %3389 = vmatpush1.bf16.msra.mxu0 %v3146
    %3390 = vmatprep.subr.bf16.mxu0 %v3151
    %3391 = vmatpush1.bf16.msra.mxu0 %v3150
    %3392 = vmatprep.subr.bf16.mxu0 %v3155
    %3393 = vmatpush1.bf16.msra.mxu0 %v3154
    %3394 = vmatprep.subr.bf16.mxu0 %v3159
    %3395 = vmatpush1.bf16.msra.mxu0 %v3158
    %3396 = vmatprep.subr.bf16.mxu0 %v3163
    %3397 = vmatpush1.bf16.msra.mxu0 %v3162
    %3398 = vmatprep.subr.bf16.mxu0 %v3167
    %3399 = vmatpush1.bf16.msra.mxu0 %v3166
    %3400 = vmatprep.subr.bf16.mxu0 %v3171
    %3401 = vmatpush1.bf16.msra.mxu0 %v3170
    %3402 = vmatprep.subr.bf16.mxu0 %v3175
    %3403 = vmatpush1.bf16.msra.mxu0 %v3174
    %3404 = vmatprep.subr.bf16.mxu0 %v3179
    %3405 = vmatpush1.bf16.msra.mxu0 %v3178
    %3406 = vmatprep.mubr.bf16.mxu0 %v2581
    %3407 = vmatmul.mubr.bf16.gmra.mrb[0].mxu0 %v2580
    %v3408 = vpop.f32.mrb[0].mxu0
    %v3409 = vadd.f32 %v2717, %v3408
    %v3410 = vpop.f32.mrb[0].mxu0
    %v3411 = vadd.f32 %v2721, %v3410
    %v3412 = vpop.f32.mrb[0].mxu0
    %v3413 = vadd.f32 %v2717, %v3412
    %v3414 = vpop.f32.mrb[0].mxu0
    %v3415 = vadd.f32 %v2721, %v3414
    %3416 = vdwg.mxu0
    %3417 = vmatprep.subr.bf16.mxu0 %v3183
    %3418 = vmatpush1.bf16.msra.mxu0 %v3182
    %3419 = vmatprep.subr.bf16.mxu0 %v3187
    %3420 = vmatpush1.bf16.msra.mxu0 %v3186
    %3421 = vmatprep.subr.bf16.mxu0 %v3191
    %3422 = vmatpush1.bf16.msra.mxu0 %v3190
    %3423 = vmatprep.subr.bf16.mxu0 %v3195
    %3424 = vmatpush1.bf16.msra.mxu0 %v3194
    %3425 = vmatprep.subr.bf16.mxu0 %v3199
    %3426 = vmatpush1.bf16.msra.mxu0 %v3198
    %3427 = vmatprep.subr.bf16.mxu0 %v3203
    %3428 = vmatpush1.bf16.msra.mxu0 %v3202
    %3429 = vmatprep.subr.bf16.mxu0 %v3207
    %3430 = vmatpush1.bf16.msra.mxu0 %v3206
    %3431 = vmatprep.subr.bf16.mxu0 %v3211
    %3432 = vmatpush1.bf16.msra.mxu0 %v3210
    %3433 = vmatprep.subr.bf16.mxu0 %v3215
    %3434 = vmatpush1.bf16.msra.mxu0 %v3214
    %3435 = vmatprep.subr.bf16.mxu0 %v3219
    %3436 = vmatpush1.bf16.msra.mxu0 %v3218
    %3437 = vmatprep.subr.bf16.mxu0 %v3223
    %3438 = vmatpush1.bf16.msra.mxu0 %v3222
    %3439 = vmatprep.subr.bf16.mxu0 %v3227
    %3440 = vmatpush1.bf16.msra.mxu0 %v3226
    %3441 = vmatprep.subr.bf16.mxu0 %v3231
    %3442 = vmatpush1.bf16.msra.mxu0 %v3230
    %3443 = vmatprep.subr.bf16.mxu0 %v3235
    %3444 = vmatpush1.bf16.msra.mxu0 %v3234
    %3445 = vmatprep.subr.bf16.mxu0 %v3239
    %3446 = vmatpush1.bf16.msra.mxu0 %v3238
    %3447 = vmatprep.subr.bf16.mxu0 %v3243
    %3448 = vmatpush1.bf16.msra.mxu0 %v3242
    %3449 = vmatprep.mubr.bf16.mxu0 %v2583
    %3450 = vmatmul.mubr.bf16.gmra.mrb[0].mxu0 %v2582
    %v3451 = vpop.f32.mrb[0].mxu0
    %v3452 = vadd.f32 %v3409, %v3451
    %v3453 = vpop.f32.mrb[0].mxu0
    %v3454 = vadd.f32 %v3411, %v3453
    %v3455 = vpop.f32.mrb[0].mxu0
    %v3456 = vadd.f32 %v3413, %v3455
    %v3457 = vpop.f32.mrb[0].mxu0
    %v3458 = vadd.f32 %v3415, %v3457
    %3459 = vdwg.mxu0
    %3460 = vmatprep.subr.bf16.mxu0 %v3121
    %3461 = vmatpush1.bf16.msra.mxu0 %v3120
    %3462 = vmatprep.subr.bf16.mxu0 %v3125
    %3463 = vmatpush1.bf16.msra.mxu0 %v3124
    %3464 = vmatprep.subr.bf16.mxu0 %v3129
    %3465 = vmatpush1.bf16.msra.mxu0 %v3128
    %3466 = vmatprep.subr.bf16.mxu0 %v3133
    %3467 = vmatpush1.bf16.msra.mxu0 %v3132
    %3468 = vmatprep.subr.bf16.mxu0 %v3137
    %3469 = vmatpush1.bf16.msra.mxu0 %v3136
    %3470 = vmatprep.subr.bf16.mxu0 %v3141
    %3471 = vmatpush1.bf16.msra.mxu0 %v3140
    %3472 = vmatprep.subr.bf16.mxu0 %v3145
    %3473 = vmatpush1.bf16.msra.mxu0 %v3144
    %3474 = vmatprep.subr.bf16.mxu0 %v3149
    %3475 = vmatpush1.bf16.msra.mxu0 %v3148
    %3476 = vmatprep.subr.bf16.mxu0 %v3153
    %3477 = vmatpush1.bf16.msra.mxu0 %v3152
    %3478 = vmatprep.subr.bf16.mxu0 %v3157
    %3479 = vmatpush1.bf16.msra.mxu0 %v3156
    %3480 = vmatprep.subr.bf16.mxu0 %v3161
    %3481 = vmatpush1.bf16.msra.mxu0 %v3160
    %3482 = vmatprep.subr.bf16.mxu0 %v3165
    %3483 = vmatpush1.bf16.msra.mxu0 %v3164
    %3484 = vmatprep.subr.bf16.mxu0 %v3169
    %3485 = vmatpush1.bf16.msra.mxu0 %v3168
    %3486 = vmatprep.subr.bf16.mxu0 %v3173
    %3487 = vmatpush1.bf16.msra.mxu0 %v3172
    %3488 = vmatprep.subr.bf16.mxu0 %v3177
    %3489 = vmatpush1.bf16.msra.mxu0 %v3176
    %3490 = vmatprep.subr.bf16.mxu0 %v3181
    %3491 = vmatpush1.bf16.msra.mxu0 %v3180
    %3492 = vmatprep.mubr.bf16.mxu0 %v2581
    %3493 = vmatmul.mubr.bf16.gmra.mrb[0].mxu0 %v2580
    %v3494 = vpop.f32.mrb[0].mxu0
    %v3495 = vadd.f32 %v2725, %v3494
    %v3496 = vpop.f32.mrb[0].mxu0
    %v3497 = vadd.f32 %v2729, %v3496
    %v3498 = vpop.f32.mrb[0].mxu0
    %v3499 = vadd.f32 %v2725, %v3498
    %v3500 = vpop.f32.mrb[0].mxu0
    %v3501 = vadd.f32 %v2729, %v3500
    %3502 = vdwg.mxu0
    %3503 = vmatprep.subr.bf16.mxu0 %v3185
    %3504 = vmatpush1.bf16.msra.mxu0 %v3184
    %3505 = vmatprep.subr.bf16.mxu0 %v3189
    %3506 = vmatpush1.bf16.msra.mxu0 %v3188
    %3507 = vmatprep.subr.bf16.mxu0 %v3193
    %3508 = vmatpush1.bf16.msra.mxu0 %v3192
    %3509 = vmatprep.subr.bf16.mxu0 %v3197
    %3510 = vmatpush1.bf16.msra.mxu0 %v3196
    %3511 = vmatprep.subr.bf16.mxu0 %v3201
    %3512 = vmatpush1.bf16.msra.mxu0 %v3200
    %3513 = vmatprep.subr.bf16.mxu0 %v3205
    %3514 = vmatpush1.bf16.msra.mxu0 %v3204
    %3515 = vmatprep.subr.bf16.mxu0 %v3209
    %3516 = vmatpush1.bf16.msra.mxu0 %v3208
    %3517 = vmatprep.subr.bf16.mxu0 %v3213
    %3518 = vmatpush1.bf16.msra.mxu0 %v3212
    %3519 = vmatprep.subr.bf16.mxu0 %v3217
    %3520 = vmatpush1.bf16.msra.mxu0 %v3216
    %3521 = vmatprep.subr.bf16.mxu0 %v3221
    %3522 = vmatpush1.bf16.msra.mxu0 %v3220
    %3523 = vmatprep.subr.bf16.mxu0 %v3225
    %3524 = vmatpush1.bf16.msra.mxu0 %v3224
    %3525 = vmatprep.subr.bf16.mxu0 %v3229
    %3526 = vmatpush1.bf16.msra.mxu0 %v3228
    %3527 = vmatprep.subr.bf16.mxu0 %v3233
    %3528 = vmatpush1.bf16.msra.mxu0 %v3232
    %3529 = vmatprep.subr.bf16.mxu0 %v3237
    %3530 = vmatpush1.bf16.msra.mxu0 %v3236
    %3531 = vmatprep.subr.bf16.mxu0 %v3241
    %3532 = vmatpush1.bf16.msra.mxu0 %v3240
    %3533 = vmatprep.subr.bf16.mxu0 %v3245
    %3534 = vmatpush1.bf16.msra.mxu0 %v3244
    %3535 = vmatprep.mubr.bf16.mxu0 %v2583
    %3536 = vmatmul.mubr.bf16.gmra.mrb[0].mxu0 %v2582
    %v3537 = vpop.f32.mrb[0].mxu0
    %v3538 = vadd.f32 %v3495, %v3537
    %v3539 = vpop.f32.mrb[0].mxu0
    %v3540 = vadd.f32 %v3497, %v3539
    %v3541 = vpop.f32.mrb[0].mxu0
    %v3542 = vadd.f32 %v3499, %v3541
    %v3543 = vpop.f32.mrb[0].mxu0
    %v3544 = vadd.f32 %v3501, %v3543
    %3545 = vdwg.mxu0
    %v3546 = vmax.f32 %v3452, 0.0
    %v3547 = vmax.f32 %v3454, 0.0
    %v3548 = vmax.f32 %v3538, 0.0
    %v3549 = vmax.f32 %v3540, 0.0
    %v3550 = vmax.f32 %v3456, 0.0
    %v3551 = vmax.f32 %v3458, 0.0
    %v3552 = vmax.f32 %v3542, 0.0
    %v3553 = vmax.f32 %v3544, 0.0
    %v3554 = vpack.c.bf16 %v3550, %v3546
    %v3555 = vpack.c.bf16 %v3551, %v3547
    %v3556 = vpack.c.bf16 %v3552, %v3548
    %v3557 = vpack.c.bf16 %v3553, %v3549
    %v3558 = vld [vmem:[#allocation7] sm:$0xf]
    %v3559 = vld [vmem:[#allocation7 + $0x4] sm:$0xf]
    %v3560 = vld [vmem:[#allocation7 + $0x8] sm:$0xf]
    %v3561 = vld [vmem:[#allocation7 + $0xc] sm:$0xf]
    %v3562 = vld [vmem:[#allocation7 + $0x10] sm:$0xf]
    %v3563 = vld [vmem:[#allocation7 + $0x14] sm:$0xf]
    %v3564 = vld [vmem:[#allocation7 + $0x18] sm:$0xf]
    %v3565 = vld [vmem:[#allocation7 + $0x1c] sm:$0xf]
    %v3566 = vld [vmem:[#allocation7 + $0x20] sm:$0xf]
    %v3567 = vld [vmem:[#allocation7 + $0x24] sm:$0xf]
    %v3568 = vld [vmem:[#allocation7 + $0x28] sm:$0xf]
    %v3569 = vld [vmem:[#allocation7 + $0x2c] sm:$0xf]
    %v3570 = vld [vmem:[#allocation7 + $0x30] sm:$0xf]
    %v3571 = vld [vmem:[#allocation7 + $0x34] sm:$0xf]
    %v3572 = vld [vmem:[#allocation7 + $0x38] sm:$0xf]
    %v3573 = vld [vmem:[#allocation7 + $0x3c] sm:$0xf]
    %v3574 = vld [vmem:[#allocation7 + $0x40] sm:$0xf]
    %v3575 = vld [vmem:[#allocation7 + $0x44] sm:$0xf]
    %v3576 = vld [vmem:[#allocation7 + $0x48] sm:$0xf]
    %v3577 = vld [vmem:[#allocation7 + $0x4c] sm:$0xf]
    %v3578 = vld [vmem:[#allocation7 + $0x50] sm:$0xf]
    %v3579 = vld [vmem:[#allocation7 + $0x54] sm:$0xf]
    %v3580 = vld [vmem:[#allocation7 + $0x58] sm:$0xf]
    %v3581 = vld [vmem:[#allocation7 + $0x5c] sm:$0xf]
    %v3582 = vld [vmem:[#allocation7 + $0x60] sm:$0xf]
    %v3583 = vld [vmem:[#allocation7 + $0x64] sm:$0xf]
    %v3584 = vld [vmem:[#allocation7 + $0x68] sm:$0xf]
    %v3585 = vld [vmem:[#allocation7 + $0x6c] sm:$0xf]
    %v3586 = vld [vmem:[#allocation7 + $0x70] sm:$0xf]
    %v3587 = vld [vmem:[#allocation7 + $0x74] sm:$0xf]
    %v3588 = vld [vmem:[#allocation7 + $0x78] sm:$0xf]
    %v3589 = vld [vmem:[#allocation7 + $0x7c] sm:$0xf]
    %v3590 = vld [vmem:[#allocation7 + $0x80] sm:$0xf]
    %v3591 = vld [vmem:[#allocation7 + $0x84] sm:$0xf]
    %v3592 = vld [vmem:[#allocation7 + $0x88] sm:$0xf]
    %v3593 = vld [vmem:[#allocation7 + $0x8c] sm:$0xf]
    %v3594 = vld [vmem:[#allocation7 + $0x90] sm:$0xf]
    %v3595 = vld [vmem:[#allocation7 + $0x94] sm:$0xf]
    %v3596 = vld [vmem:[#allocation7 + $0x98] sm:$0xf]
    %v3597 = vld [vmem:[#allocation7 + $0x9c] sm:$0xf]
    %v3598 = vld [vmem:[#allocation7 + $0xa0] sm:$0xf]
    %v3599 = vld [vmem:[#allocation7 + $0xa4] sm:$0xf]
    %v3600 = vld [vmem:[#allocation7 + $0xa8] sm:$0xf]
    %v3601 = vld [vmem:[#allocation7 + $0xac] sm:$0xf]
    %v3602 = vld [vmem:[#allocation7 + $0xb0] sm:$0xf]
    %v3603 = vld [vmem:[#allocation7 + $0xb4] sm:$0xf]
    %v3604 = vld [vmem:[#allocation7 + $0xb8] sm:$0xf]
    %v3605 = vld [vmem:[#allocation7 + $0xbc] sm:$0xf]
    %v3606 = vld [vmem:[#allocation7 + $0xc0] sm:$0xf]
    %v3607 = vld [vmem:[#allocation7 + $0xc4] sm:$0xf]
    %v3608 = vld [vmem:[#allocation7 + $0xc8] sm:$0xf]
    %v3609 = vld [vmem:[#allocation7 + $0xcc] sm:$0xf]
    %v3610 = vld [vmem:[#allocation7 + $0xd0] sm:$0xf]
    %v3611 = vld [vmem:[#allocation7 + $0xd4] sm:$0xf]
    %v3612 = vld [vmem:[#allocation7 + $0xd8] sm:$0xf]
    %v3613 = vld [vmem:[#allocation7 + $0xdc] sm:$0xf]
    %v3614 = vld [vmem:[#allocation7 + $0xe0] sm:$0xf]
    %v3615 = vld [vmem:[#allocation7 + $0xe4] sm:$0xf]
    %v3616 = vld [vmem:[#allocation7 + $0xe8] sm:$0xf]
    %v3617 = vld [vmem:[#allocation7 + $0xec] sm:$0xf]
    %v3618 = vld [vmem:[#allocation7 + $0xf0] sm:$0xf]
    %v3619 = vld [vmem:[#allocation7 + $0xf4] sm:$0xf]
    %v3620 = vld [vmem:[#allocation7 + $0xf8] sm:$0xf]
    %v3621 = vld [vmem:[#allocation7 + $0xfc] sm:$0xf]
    %v3622 = vld [vmem:[%s8] sm:$0x1]
    %v3624 = vlaneseq
    %v3625 = vshrl.u32 %v3624, 7
    %v3626 = vsub.s32 0, %v3625
    %v3627 = vrot.slane %v3622, %v3626
    %v3693 = vunpack.c.l.b16 %v3558
    %v3694 = vunpack.c.l.b16 %v3559
    %v3695 = vunpack.c.l.b16 %v3560
    %v3696 = vunpack.c.l.b16 %v3561
    %v3697 = vunpack.c.l.b16 %v3562
    %v3698 = vunpack.c.l.b16 %v3563
    %v3699 = vunpack.c.l.b16 %v3564
    %v3700 = vunpack.c.l.b16 %v3565
    %v3701 = vunpack.c.l.b16 %v3566
    %v3702 = vunpack.c.l.b16 %v3567
    %v3703 = vunpack.c.l.b16 %v3568
    %v3704 = vunpack.c.l.b16 %v3569
    %v3705 = vunpack.c.l.b16 %v3570
    %v3706 = vunpack.c.l.b16 %v3571
    %v3707 = vunpack.c.l.b16 %v3572
    %v3708 = vunpack.c.l.b16 %v3573
    %v3709 = vunpack.c.l.b16 %v3574
    %v3710 = vunpack.c.l.b16 %v3575
    %v3711 = vunpack.c.l.b16 %v3576
    %v3712 = vunpack.c.l.b16 %v3577
    %v3713 = vunpack.c.l.b16 %v3578
    %v3714 = vunpack.c.l.b16 %v3579
    %v3715 = vunpack.c.l.b16 %v3580
    %v3716 = vunpack.c.l.b16 %v3581
    %v3717 = vunpack.c.l.b16 %v3582
    %v3718 = vunpack.c.l.b16 %v3583
    %v3719 = vunpack.c.l.b16 %v3584
    %v3720 = vunpack.c.l.b16 %v3585
    %v3721 = vunpack.c.l.b16 %v3586
    %v3722 = vunpack.c.l.b16 %v3587
    %v3723 = vunpack.c.l.b16 %v3588
    %v3724 = vunpack.c.l.b16 %v3589
    %v3725 = vunpack.c.l.b16 %v3590
    %v3726 = vunpack.c.l.b16 %v3591
    %v3727 = vunpack.c.l.b16 %v3592
    %v3728 = vunpack.c.l.b16 %v3593
    %v3729 = vunpack.c.l.b16 %v3594
    %v3730 = vunpack.c.l.b16 %v3595
    %v3731 = vunpack.c.l.b16 %v3596
    %v3732 = vunpack.c.l.b16 %v3597
    %v3733 = vunpack.c.l.b16 %v3598
    %v3734 = vunpack.c.l.b16 %v3599
    %v3735 = vunpack.c.l.b16 %v3600
    %v3736 = vunpack.c.l.b16 %v3601
    %v3737 = vunpack.c.l.b16 %v3602
    %v3738 = vunpack.c.l.b16 %v3603
    %v3739 = vunpack.c.l.b16 %v3604
    %v3740 = vunpack.c.l.b16 %v3605
    %v3741 = vunpack.c.l.b16 %v3606
    %v3742 = vunpack.c.l.b16 %v3607
    %v3743 = vunpack.c.l.b16 %v3608
    %v3744 = vunpack.c.l.b16 %v3609
    %v3745 = vunpack.c.l.b16 %v3610
    %v3746 = vunpack.c.l.b16 %v3611
    %v3747 = vunpack.c.l.b16 %v3612
    %v3748 = vunpack.c.l.b16 %v3613
    %v3749 = vunpack.c.l.b16 %v3614
    %v3750 = vunpack.c.l.b16 %v3615
    %v3751 = vunpack.c.l.b16 %v3616
    %v3752 = vunpack.c.l.b16 %v3617
    %v3753 = vunpack.c.l.b16 %v3618
    %v3754 = vunpack.c.l.b16 %v3619
    %v3755 = vunpack.c.l.b16 %v3620
    %v3756 = vunpack.c.l.b16 %v3621
    %v3757 = vpack.c.b16 %v3694, %v3693
    %v3758 = vpack.c.b16 %v3696, %v3695
    %v3759 = vpack.c.b16 %v3698, %v3697
    %v3760 = vpack.c.b16 %v3700, %v3699
    %v3761 = vpack.c.b16 %v3702, %v3701
    %v3762 = vpack.c.b16 %v3704, %v3703
    %v3763 = vpack.c.b16 %v3706, %v3705
    %v3764 = vpack.c.b16 %v3708, %v3707
    %v3765 = vpack.c.b16 %v3710, %v3709
    %v3766 = vpack.c.b16 %v3712, %v3711
    %v3767 = vpack.c.b16 %v3714, %v3713
    %v3768 = vpack.c.b16 %v3716, %v3715
    %v3769 = vpack.c.b16 %v3718, %v3717
    %v3770 = vpack.c.b16 %v3720, %v3719
    %v3771 = vpack.c.b16 %v3722, %v3721
    %v3772 = vpack.c.b16 %v3724, %v3723
    %v3773 = vpack.c.b16 %v3726, %v3725
    %v3774 = vpack.c.b16 %v3728, %v3727
    %v3775 = vpack.c.b16 %v3730, %v3729
    %v3776 = vpack.c.b16 %v3732, %v3731
    %v3777 = vpack.c.b16 %v3734, %v3733
    %v3778 = vpack.c.b16 %v3736, %v3735
    %v3779 = vpack.c.b16 %v3738, %v3737
    %v3780 = vpack.c.b16 %v3740, %v3739
    %v3781 = vpack.c.b16 %v3742, %v3741
    %v3782 = vpack.c.b16 %v3744, %v3743
    %v3783 = vpack.c.b16 %v3746, %v3745
    %v3784 = vpack.c.b16 %v3748, %v3747
    %v3785 = vpack.c.b16 %v3750, %v3749
    %v3786 = vpack.c.b16 %v3752, %v3751
    %v3787 = vpack.c.b16 %v3754, %v3753
    %v3788 = vpack.c.b16 %v3756, %v3755
    %3821 = vmatprep.subr.bf16.mxu0 0
    %3822 = vmatpush1.bf16.msra.mxu0 %v3757
    %3823 = vmatprep.subr.bf16.mxu0 0
    %3824 = vmatpush1.bf16.msra.mxu0 %v3758
    %3825 = vmatprep.subr.bf16.mxu0 0
    %3826 = vmatpush1.bf16.msra.mxu0 %v3759
    %3827 = vmatprep.subr.bf16.mxu0 0
    %3828 = vmatpush1.bf16.msra.mxu0 %v3760
    %3829 = vmatprep.subr.bf16.mxu0 0
    %3830 = vmatpush1.bf16.msra.mxu0 %v3761
    %3831 = vmatprep.subr.bf16.mxu0 0
    %3832 = vmatpush1.bf16.msra.mxu0 %v3762
    %3833 = vmatprep.subr.bf16.mxu0 0
    %3834 = vmatpush1.bf16.msra.mxu0 %v3763
    %3835 = vmatprep.subr.bf16.mxu0 0
    %3836 = vmatpush1.bf16.msra.mxu0 %v3764
    %3837 = vmatprep.subr.bf16.mxu0 0
    %3838 = vmatpush1.bf16.msra.mxu0 %v3765
    %3839 = vmatprep.subr.bf16.mxu0 0
    %3840 = vmatpush1.bf16.msra.mxu0 %v3766
    %3841 = vmatprep.subr.bf16.mxu0 0
    %3842 = vmatpush1.bf16.msra.mxu0 %v3767
    %3843 = vmatprep.subr.bf16.mxu0 0
    %3844 = vmatpush1.bf16.msra.mxu0 %v3768
    %3845 = vmatprep.subr.bf16.mxu0 0
    %3846 = vmatpush1.bf16.msra.mxu0 %v3769
    %3847 = vmatprep.subr.bf16.mxu0 0
    %3848 = vmatpush1.bf16.msra.mxu0 %v3770
    %3849 = vmatprep.subr.bf16.mxu0 0
    %3850 = vmatpush1.bf16.msra.mxu0 %v3771
    %3851 = vmatprep.subr.bf16.mxu0 0
    %3852 = vmatpush1.bf16.msra.mxu0 %v3772
    %3853 = vmatprep.mubr.bf16.mxu0 %v3555
    %3854 = vmatmul.mubr.bf16.gmra.mrb[0].mxu0 %v3554
    %v3855 = vpop.f32.mrb[0].mxu0
    %v3856 = vadd.f32 %v3627, %v3855
    %v3857 = vpop.f32.mrb[0].mxu0
    %v3858 = vpop.f32.mrb[0].mxu0
    %v3859 = vadd.f32 %v3627, %v3858
    %v3860 = vpop.f32.mrb[0].mxu0
    %3861 = vdwg.mxu0
    %3862 = vmatprep.subr.bf16.mxu0 0
    %3863 = vmatpush1.bf16.msra.mxu0 %v3773
    %3864 = vmatprep.subr.bf16.mxu0 0
    %3865 = vmatpush1.bf16.msra.mxu0 %v3774
    %3866 = vmatprep.subr.bf16.mxu0 0
    %3867 = vmatpush1.bf16.msra.mxu0 %v3775
    %3868 = vmatprep.subr.bf16.mxu0 0
    %3869 = vmatpush1.bf16.msra.mxu0 %v3776
    %3870 = vmatprep.subr.bf16.mxu0 0
    %3871 = vmatpush1.bf16.msra.mxu0 %v3777
    %3872 = vmatprep.subr.bf16.mxu0 0
    %3873 = vmatpush1.bf16.msra.mxu0 %v3778
    %3874 = vmatprep.subr.bf16.mxu0 0
    %3875 = vmatpush1.bf16.msra.mxu0 %v3779
    %3876 = vmatprep.subr.bf16.mxu0 0
    %3877 = vmatpush1.bf16.msra.mxu0 %v3780
    %3878 = vmatprep.subr.bf16.mxu0 0
    %3879 = vmatpush1.bf16.msra.mxu0 %v3781
    %3880 = vmatprep.subr.bf16.mxu0 0
    %3881 = vmatpush1.bf16.msra.mxu0 %v3782
    %3882 = vmatprep.subr.bf16.mxu0 0
    %3883 = vmatpush1.bf16.msra.mxu0 %v3783
    %3884 = vmatprep.subr.bf16.mxu0 0
    %3885 = vmatpush1.bf16.msra.mxu0 %v3784
    %3886 = vmatprep.subr.bf16.mxu0 0
    %3887 = vmatpush1.bf16.msra.mxu0 %v3785
    %3888 = vmatprep.subr.bf16.mxu0 0
    %3889 = vmatpush1.bf16.msra.mxu0 %v3786
    %3890 = vmatprep.subr.bf16.mxu0 0
    %3891 = vmatpush1.bf16.msra.mxu0 %v3787
    %3892 = vmatprep.subr.bf16.mxu0 0
    %3893 = vmatpush1.bf16.msra.mxu0 %v3788
    %3894 = vmatprep.mubr.bf16.mxu0 %v3557
    %3895 = vmatmul.mubr.bf16.gmra.mrb[0].mxu0 %v3556
    %v3896 = vpop.f32.mrb[0].mxu0
    %v3897 = vadd.f32 %v3856, %v3896
    %v3898 = vpop.f32.mrb[0].mxu0
    %v3899 = vpop.f32.mrb[0].mxu0
    %v3900 = vadd.f32 %v3859, %v3899
    %v3901 = vpop.f32.mrb[0].mxu0
    %3902 = vdwg.mxu0
    %v3903 = vxor.u32 %v3897, 2147483648
    %v3904 = vxor.u32 %v3900, 2147483648
    %v3905 = vmul.f32 %v3903, 1.442695
    %v3906 = vpow.pop %v3905
    %v3907 = vmul.f32 %v3904, 1.442695
    %v3908 = vpow.pop %v3907
    %v3909 = vadd.f32 %v3906, 1.0
    %v3910 = vadd.f32 %v3908, 1.0
    %v3911 = vrcp.pop %v3909
    %v3912 = vmul.f32 1.0, %v3911
    %v3913 = vrcp.pop %v3910
    %v3914 = vmul.f32 1.0, %v3913
    %vm3915 = vcmask 990208
    %3916 = vst.msk [vmem:[%s9] sm:$0xff] %vm3915, %v3912
    %3917 = vst.msk [vmem:[%s9 + $0x8] sm:$0xff] %vm3915, %v3914
    // Predicated region
    $region54: #{decoder_forward.1} parent=1 // pred_check
      _
    $region55: #{decoder_forward.1} parent=1 // pred_check_branch
      %3919 = sbr.rel (0) target = $region57
    $region56: #{decoder_forward.1} parent=1 // pred_region
      _
    $region57: #{decoder_forward.1} parent=1 // pred_fallthru
      _
    // Predicated region
    $region58: #{decoder_forward.1} parent=1 // pred_check
      _
    $region59: #{decoder_forward.1} parent=1 // pred_check_branch
      %3921 = sbr.rel (0) target = $region61
    $region60: #{decoder_forward.1} parent=1 // pred_region
      _
    $region61: #{decoder_forward.1} parent=1 // pred_fallthru
      _
    %3922 = vsyncpa [#allocation3], 1
    %3923 = vsyncpa [#allocation5], 1
    %3924 = vsyncpa [#allocation8], 1

</llo_original>
